<compile_context>
chip_gen: v6e
topology: v6e:2x2x1
jax: 0.10.0
libtpu: 0.0.40
codegen_flags: <defaults>
</compile_context>

<pallas_src>
import numpy as np
import jax
import jax.numpy as jnp
from jax.experimental import pallas as pl
from jax.experimental.pallas import tpu as pltpu


# ----------------------------------------------------------------------------
# Fused CBAM kernel (one batch element per grid step)
# ----------------------------------------------------------------------------
def _cbam_kernel(x_ref, w1_ref, w2_ref, wsp_ref, bsp_ref, o_ref, pad_a, pad_b):
    # x_ref: (1, C, H, W) VMEM      w1_ref/w2_ref: (C, 1, mid) VMEM
    # wsp_ref: (98,) SMEM (2*7*7 conv taps)     bsp_ref: (1,) SMEM (conv bias)
    # pad_a/pad_b: (H+6, W+6) VMEM scratch (zero-padded avg / max maps)
    C, H, W = x_ref.shape[1], x_ref.shape[2], x_ref.shape[3]
    x = x_ref[0]                                              # (C, H, W)

    # ---------------- channel attention ----------------
    # adaptive avg / max pool over spatial dims -> (C, 1, 1)
    avg_c = jnp.sum(jnp.sum(x, axis=2, keepdims=True),
                    axis=1, keepdims=True) * (1.0 / (H * W))  # (C,1,1)
    max_c = jnp.max(jnp.max(x, axis=2, keepdims=True),
                    axis=1, keepdims=True)                    # (C,1,1)

    w1 = w1_ref[...]                                          # (C,1,mid)
    w2 = w2_ref[...]                                          # (C,1,mid)

    def shared_mlp(p):                                        # p: (C,1,1)
        h = jnp.maximum(jnp.sum(w1 * p, axis=0, keepdims=True), 0.0)  # (1,1,mid)
        return jnp.sum(w2 * h, axis=2, keepdims=True)                  # (C,1,1)

    logits = shared_mlp(avg_c) + shared_mlp(max_c)            # (C,1,1)
    ca = 1.0 / (1.0 + jnp.exp(-logits))                       # sigmoid
    xc = x * ca                                               # (C,H,W)

    # ---------------- spatial attention ----------------
    avg_s = jnp.sum(xc, axis=0) * (1.0 / C)                   # (H, W)
    max_s = jnp.max(xc, axis=0)                               # (H, W)

    # zero-padded maps for the 7x7 conv (padding = 3)
    pad_a[...] = jnp.zeros((H + 6, W + 6), jnp.float32)
    pad_b[...] = jnp.zeros((H + 6, W + 6), jnp.float32)
    pad_a[pl.ds(3, H), pl.ds(3, W)] = avg_s
    pad_b[pl.ds(3, H), pl.ds(3, W)] = max_s

    acc = jnp.zeros((H, W), jnp.float32) + bsp_ref[0]
    pads = (pad_a, pad_b)                                     # channel order: [avg, max]
    for c in range(2):
        for dy in range(7):
            for dx in range(7):
                w_tap = wsp_ref[c * 49 + dy * 7 + dx]         # f32 scalar from SMEM
                acc = acc + w_tap * pads[c][pl.ds(dy, H), pl.ds(dx, W)]

    sa = 1.0 / (1.0 + jnp.exp(-acc))                          # (H, W)
    o_ref[0] = xc * sa[None, :, :]                            # (C, H, W)


# ----------------------------------------------------------------------------
# Wrapper
# ----------------------------------------------------------------------------
def cbam_forward(x, params):
    N, C, H, W = x.shape
    mid = params['w1'].shape[-1]

    return pl.pallas_call(
        _cbam_kernel,
        out_shape=jax.ShapeDtypeStruct((N, C, H, W), jnp.float32),
        grid=(N,),
        in_specs=[
            pl.BlockSpec((1, C, H, W), lambda b: (b, 0, 0, 0)),
            pl.BlockSpec((C, 1, mid), lambda b: (0, 0, 0)),
            pl.BlockSpec((C, 1, mid), lambda b: (0, 0, 0)),
            pl.BlockSpec(memory_space=pltpu.MemorySpace.SMEM),
            pl.BlockSpec(memory_space=pltpu.MemorySpace.SMEM),
        ],
        out_specs=pl.BlockSpec((1, C, H, W), lambda b: (b, 0, 0, 0)),
        scratch_shapes=[
            pltpu.VMEM((H + 6, W + 6), jnp.float32),
            pltpu.VMEM((H + 6, W + 6), jnp.float32),
        ],
        compiler_params=pltpu.CompilerParams(
            dimension_semantics=("parallel",)),
    )(x.astype(jnp.float32), params['w1'], params['w2'],
      params['wsp'], params['bsp'])


# ----------------------------------------------------------------------------
# Parameter init (matches the PyTorch module's layer shapes)
# ----------------------------------------------------------------------------
def init_cbam_params(key, channel, ratio=16):
    mid = channel // ratio
    assert mid >= 1, "channel must be >= ratio for the CBAM bottleneck"
    k1, k2, k3, k4 = jax.random.split(key, 4)
    w1 = 0.1 * jax.random.normal(k1, (mid, channel, 1, 1), jnp.float32)  # Conv2d(C, mid, 1)
    w2 = 0.1 * jax.random.normal(k2, (channel, mid, 1, 1), jnp.float32)  # Conv2d(mid, C, 1)
    wsp = 0.1 * jax.random.normal(k3, (1, 2, 7, 7), jnp.float32)         # Conv2d(2, 1, 7)
    bsp = 0.1 * jax.random.normal(k4, (1,), jnp.float32)
    return dict(
        # (C, 1, mid): w1[c, 0, j] = W1[j, c]   (input-major, broadcast-safe)
        w1=jnp.transpose(w1[:, :, 0, 0]).reshape(channel, 1, mid),
        # (C, 1, mid): w2[c, 0, j] = W2[c, j]
        w2=w2[:, :, 0, 0].reshape(channel, 1, mid),
        # flattened taps, index = c*49 + dy*7 + dx
        wsp=wsp[0].reshape(2 * 7 * 7),
        bsp=bsp,
    )


# ----------------------------------------------------------------------------
# Pure-JAX reference (for numerical validation)
# ----------------------------------------------------------------------------
def cbam_reference(x, params):
    N, C, H, W = x.shape
    mid = params['w1'].shape[-1]
    w1 = params['w1'].reshape(C, mid)          # [c, j] = W1[j, c]
    w2 = params['w2'].reshape(C, mid)          # [c, j] = W2[c, j]
    wsp = params['wsp'].reshape(1, 2, 7, 7)
    bsp = params['bsp'][0]
    hi = jax.lax.Precision.HIGHEST

    avg = jnp.mean(x, axis=(2, 3))             # (N, C)
    mx = jnp.max(x, axis=(2, 3))               # (N, C)

    def mlp(p):
        h = jnp.maximum(jnp.einsum('nc,cj->nj', p, w1, precision=hi), 0.0)
        return jnp.einsum('nj,cj->nc', h, w2, precision=hi)

    ca = jax.nn.sigmoid(mlp(avg) + mlp(mx))    # (N, C)
    xc = x * ca[:, :, None, None]

    avg_s = jnp.mean(xc, axis=1, keepdims=True)
    max_s = jnp.max(xc, axis=1, keepdims=True)
    sp = jnp.concatenate([avg_s, max_s], axis=1)          # (N, 2, H, W)
    conv = jax.lax.conv_general_dilated(
        sp, wsp, window_strides=(1, 1), padding=((3, 3), (3, 3)),
        dimension_numbers=('NCHW', 'OIHW', 'NCHW'), precision=hi)
    sa = jax.nn.sigmoid(conv + bsp)
    return xc * sa


# ----------------------------------------------------------------------------
if __name__ == "__main__":
    # CBAM(channel=32) with default ratio=16 -> hidden = 2; NCHW input.
    B, C, H, W = 2, 32, 16, 16

    key = jax.random.PRNGKey(0)
    kx, kp = jax.random.split(key)
    x = jax.random.normal(kx, (B, C, H, W), jnp.float32)
    params = init_cbam_params(kp, C, ratio=16)

    fwd = jax.jit(cbam_forward)
    y = fwd(x, params)
    jax.block_until_ready(y)

    assert y.shape == (B, C, H, W), y.shape
    assert bool(jnp.all(jnp.isfinite(y)))

    y_ref = jax.jit(cbam_reference)(x, params)
    np.testing.assert_allclose(np.asarray(y), np.asarray(y_ref),
                               rtol=1e-3, atol=1e-3)
    print("KERNEL_OK")
</pallas_src>

<mosaic_0001>
module attributes {stable_mosaic.version = 11 : i64} {
  func.func @_cbam_kernel(%arg0: i32, %arg1: memref<1x32x16x16xf32, #tpu.memory_space<vmem>>, %arg2: memref<32x1x2xf32, #tpu.memory_space<vmem>>, %arg3: memref<32x1x2xf32, #tpu.memory_space<vmem>>, %arg4: memref<98xf32, #tpu.memory_space<smem>>, %arg5: memref<1xf32, #tpu.memory_space<smem>>, %arg6: memref<1x32x16x16xf32, #tpu.memory_space<vmem>>, %arg7: memref<22x22xf32, #tpu.memory_space<vmem>>, %arg8: memref<22x22xf32, #tpu.memory_space<vmem>>) attributes {dimension_semantics = [#tpu.dimension_semantics<parallel>], iteration_bounds = array<i64: 2>, scalar_prefetch = 0 : i64, scratch_operands = 2 : i64, tpu.core_type = #tpu.core_type<tc>, window_params = [{transform_indices = @transform_0, window_bounds = array<i64: 1, 32, 16, 16>}, {pipeline_mode = #tpu.pipeline_mode<synchronous>, transform_indices = @transform_1, window_bounds = array<i64: 32, 1, 2>}, {pipeline_mode = #tpu.pipeline_mode<synchronous>, transform_indices = @transform_2, window_bounds = array<i64: 32, 1, 2>}, {transform_indices = @transform_3, window_bounds = array<i64: 98>}, {transform_indices = @transform_4, window_bounds = array<i64: 1>}, {transform_indices = @transform_5, window_bounds = array<i64: 1, 32, 16, 16>}]} {
    %c0 = arith.constant 0 : index
    %c0_0 = arith.constant 0 : index
    %c0_1 = arith.constant 0 : index
    %c0_2 = arith.constant 0 : index
    %0 = vector.load %arg1[%c0, %c0_0, %c0_1, %c0_2] : memref<1x32x16x16xf32, #tpu.memory_space<vmem>>, vector<1x32x16x16xf32>
    %1 = vector.shape_cast %0 : vector<1x32x16x16xf32> to vector<32x16x16xf32>
    %cst = arith.constant dense<0.000000e+00> : vector<32x16xf32>
    %2 = vector.multi_reduction <add>, %1, %cst [2] : vector<32x16x16xf32> to vector<32x16xf32>
    %3 = vector.shape_cast %2 : vector<32x16xf32> to vector<32x16x1xf32>
    %cst_3 = arith.constant dense<0.000000e+00> : vector<32x1xf32>
    %4 = vector.multi_reduction <add>, %3, %cst_3 [1] : vector<32x16x1xf32> to vector<32x1xf32>
    %5 = vector.shape_cast %4 : vector<32x1xf32> to vector<32x1x1xf32>
    %cst_4 = arith.constant 3.906250e-03 : f32
    %6 = vector.broadcast %cst_4 : f32 to vector<32x1x1xf32>
    %7 = arith.mulf %5, %6 : vector<32x1x1xf32>
    %cst_5 = arith.constant dense<0xFF800000> : vector<32x16xf32>
    %8 = vector.multi_reduction <maximumf>, %1, %cst_5 [2] : vector<32x16x16xf32> to vector<32x16xf32>
    %9 = vector.shape_cast %8 : vector<32x16xf32> to vector<32x16x1xf32>
    %cst_6 = arith.constant dense<0xFF800000> : vector<32x1xf32>
    %10 = vector.multi_reduction <maximumf>, %9, %cst_6 [1] : vector<32x16x1xf32> to vector<32x1xf32>
    %11 = vector.shape_cast %10 : vector<32x1xf32> to vector<32x1x1xf32>
    %c0_7 = arith.constant 0 : index
    %c0_8 = arith.constant 0 : index
    %c0_9 = arith.constant 0 : index
    %12 = vector.load %arg2[%c0_7, %c0_8, %c0_9] : memref<32x1x2xf32, #tpu.memory_space<vmem>>, vector<32x1x2xf32>
    %c0_10 = arith.constant 0 : index
    %c0_11 = arith.constant 0 : index
    %c0_12 = arith.constant 0 : index
    %13 = vector.load %arg3[%c0_10, %c0_11, %c0_12] : memref<32x1x2xf32, #tpu.memory_space<vmem>>, vector<32x1x2xf32>
    %14 = vector.broadcast %7 : vector<32x1x1xf32> to vector<32x1x2xf32>
    %15 = arith.mulf %12, %14 : vector<32x1x2xf32>
    %cst_13 = arith.constant dense<0.000000e+00> : vector<1x2xf32>
    %16 = vector.multi_reduction <add>, %15, %cst_13 [0] : vector<32x1x2xf32> to vector<1x2xf32>
    %17 = vector.shape_cast %16 : vector<1x2xf32> to vector<1x1x2xf32>
    %cst_14 = arith.constant 0.000000e+00 : f32
    %18 = vector.broadcast %cst_14 : f32 to vector<1x1x2xf32>
    %19 = arith.maximumf %17, %18 : vector<1x1x2xf32>
    %20 = vector.broadcast %19 : vector<1x1x2xf32> to vector<32x1x2xf32>
    %21 = arith.mulf %13, %20 : vector<32x1x2xf32>
    %cst_15 = arith.constant dense<0.000000e+00> : vector<32x1xf32>
    %22 = vector.multi_reduction <add>, %21, %cst_15 [2] : vector<32x1x2xf32> to vector<32x1xf32>
    %23 = vector.shape_cast %22 : vector<32x1xf32> to vector<32x1x1xf32>
    %24 = vector.broadcast %11 : vector<32x1x1xf32> to vector<32x1x2xf32>
    %25 = arith.mulf %12, %24 : vector<32x1x2xf32>
    %cst_16 = arith.constant dense<0.000000e+00> : vector<1x2xf32>
    %26 = vector.multi_reduction <add>, %25, %cst_16 [0] : vector<32x1x2xf32> to vector<1x2xf32>
    %27 = vector.shape_cast %26 : vector<1x2xf32> to vector<1x1x2xf32>
    %cst_17 = arith.constant 0.000000e+00 : f32
    %28 = vector.broadcast %cst_17 : f32 to vector<1x1x2xf32>
    %29 = arith.maximumf %27, %28 : vector<1x1x2xf32>
    %30 = vector.broadcast %29 : vector<1x1x2xf32> to vector<32x1x2xf32>
    %31 = arith.mulf %13, %30 : vector<32x1x2xf32>
    %cst_18 = arith.constant dense<0.000000e+00> : vector<32x1xf32>
    %32 = vector.multi_reduction <add>, %31, %cst_18 [2] : vector<32x1x2xf32> to vector<32x1xf32>
    %33 = vector.shape_cast %32 : vector<32x1xf32> to vector<32x1x1xf32>
    %34 = arith.addf %23, %33 : vector<32x1x1xf32>
    %cst_19 = arith.constant 0.000000e+00 : f32
    %35 = vector.broadcast %cst_19 : f32 to vector<32x1x1xf32>
    %36 = arith.subf %35, %34 : vector<32x1x1xf32>
    %37 = math.exp %36 : vector<32x1x1xf32>
    %cst_20 = arith.constant 1.000000e+00 : f32
    %38 = vector.broadcast %cst_20 : f32 to vector<32x1x1xf32>
    %39 = arith.addf %38, %37 : vector<32x1x1xf32>
    %cst_21 = arith.constant 1.000000e+00 : f32
    %40 = vector.broadcast %cst_21 : f32 to vector<32x1x1xf32>
    %41 = arith.divf %40, %39 : vector<32x1x1xf32>
    %42 = vector.broadcast %41 : vector<32x1x1xf32> to vector<32x16x16xf32>
    %43 = arith.mulf %1, %42 : vector<32x16x16xf32>
    %cst_22 = arith.constant dense<0.000000e+00> : vector<16x16xf32>
    %44 = vector.multi_reduction <add>, %43, %cst_22 [0] : vector<32x16x16xf32> to vector<16x16xf32>
    %cst_23 = arith.constant 3.125000e-02 : f32
    %45 = vector.broadcast %cst_23 : f32 to vector<16x16xf32>
    %46 = arith.mulf %44, %45 : vector<16x16xf32>
    %cst_24 = arith.constant dense<0xFF800000> : vector<16x16xf32>
    %47 = vector.multi_reduction <maximumf>, %43, %cst_24 [0] : vector<32x16x16xf32> to vector<16x16xf32>
    %cst_25 = arith.constant 0.000000e+00 : f32
    %48 = vector.broadcast %cst_25 : f32 to vector<22x22xf32>
    %c0_26 = arith.constant 0 : index
    %c0_27 = arith.constant 0 : index
    %49 = vector.load %arg7[%c0_26, %c0_27] : memref<22x22xf32, #tpu.memory_space<vmem>>, vector<22x22xf32>
    tpu.vector_store %arg7[%c0_26, %c0_27], %48 {strides = array<i32>} : memref<22x22xf32, #tpu.memory_space<vmem>>, vector<22x22xf32>,
    %cst_28 = arith.constant 0.000000e+00 : f32
    %50 = vector.broadcast %cst_28 : f32 to vector<22x22xf32>
    %c0_29 = arith.constant 0 : index
    %c0_30 = arith.constant 0 : index
    %51 = vector.load %arg8[%c0_29, %c0_30] : memref<22x22xf32, #tpu.memory_space<vmem>>, vector<22x22xf32>
    tpu.vector_store %arg8[%c0_29, %c0_30], %50 {strides = array<i32>} : memref<22x22xf32, #tpu.memory_space<vmem>>, vector<22x22xf32>,
    %c3 = arith.constant 3 : index
    %c3_31 = arith.constant 3 : index
    %52 = vector.load %arg7[%c3, %c3_31] : memref<22x22xf32, #tpu.memory_space<vmem>>, vector<16x16xf32>
    tpu.vector_store %arg7[%c3, %c3_31], %46 {strides = array<i32>} : memref<22x22xf32, #tpu.memory_space<vmem>>, vector<16x16xf32>,
    %c3_32 = arith.constant 3 : index
    %c3_33 = arith.constant 3 : index
    %53 = vector.load %arg8[%c3_32, %c3_33] : memref<22x22xf32, #tpu.memory_space<vmem>>, vector<16x16xf32>
    tpu.vector_store %arg8[%c3_32, %c3_33], %47 {strides = array<i32>} : memref<22x22xf32, #tpu.memory_space<vmem>>, vector<16x16xf32>,
    %cst_34 = arith.constant 0.000000e+00 : f32
    %54 = vector.broadcast %cst_34 : f32 to vector<16x16xf32>
    %c0_35 = arith.constant 0 : index
    %55 = memref.load %arg5[%c0_35] : memref<1xf32, #tpu.memory_space<smem>>
    %56 = vector.broadcast %55 : f32 to vector<16x16xf32>
    %57 = arith.addf %54, %56 : vector<16x16xf32>
    %c0_36 = arith.constant 0 : index
    %58 = memref.load %arg4[%c0_36] : memref<98xf32, #tpu.memory_space<smem>>
    %c0_37 = arith.constant 0 : index
    %c0_38 = arith.constant 0 : index
    %59 = vector.load %arg7[%c0_37, %c0_38] : memref<22x22xf32, #tpu.memory_space<vmem>>, vector<16x16xf32>
    %60 = vector.broadcast %58 : f32 to vector<16x16xf32>
    %61 = arith.mulf %60, %59 : vector<16x16xf32>
    %62 = arith.addf %57, %61 : vector<16x16xf32>
    %c1 = arith.constant 1 : index
    %63 = memref.load %arg4[%c1] : memref<98xf32, #tpu.memory_space<smem>>
    %c0_39 = arith.constant 0 : index
    %c1_40 = arith.constant 1 : index
    %64 = vector.load %arg7[%c0_39, %c1_40] : memref<22x22xf32, #tpu.memory_space<vmem>>, vector<16x16xf32>
    %65 = vector.broadcast %63 : f32 to vector<16x16xf32>
    %66 = arith.mulf %65, %64 : vector<16x16xf32>
    %67 = arith.addf %62, %66 : vector<16x16xf32>
    %c2 = arith.constant 2 : index
    %68 = memref.load %arg4[%c2] : memref<98xf32, #tpu.memory_space<smem>>
    %c0_41 = arith.constant 0 : index
    %c2_42 = arith.constant 2 : index
    %69 = vector.load %arg7[%c0_41, %c2_42] : memref<22x22xf32, #tpu.memory_space<vmem>>, vector<16x16xf32>
    %70 = vector.broadcast %68 : f32 to vector<16x16xf32>
    %71 = arith.mulf %70, %69 : vector<16x16xf32>
    %72 = arith.addf %67, %71 : vector<16x16xf32>
    %c3_43 = arith.constant 3 : index
    %73 = memref.load %arg4[%c3_43] : memref<98xf32, #tpu.memory_space<smem>>
    %c0_44 = arith.constant 0 : index
    %c3_45 = arith.constant 3 : index
    %74 = vector.load %arg7[%c0_44, %c3_45] : memref<22x22xf32, #tpu.memory_space<vmem>>, vector<16x16xf32>
    %75 = vector.broadcast %73 : f32 to vector<16x16xf32>
    %76 = arith.mulf %75, %74 : vector<16x16xf32>
    %77 = arith.addf %72, %76 : vector<16x16xf32>
    %c4 = arith.constant 4 : index
    %78 = memref.load %arg4[%c4] : memref<98xf32, #tpu.memory_space<smem>>
    %c0_46 = arith.constant 0 : index
    %c4_47 = arith.constant 4 : index
    %79 = vector.load %arg7[%c0_46, %c4_47] : memref<22x22xf32, #tpu.memory_space<vmem>>, vector<16x16xf32>
    %80 = vector.broadcast %78 : f32 to vector<16x16xf32>
    %81 = arith.mulf %80, %79 : vector<16x16xf32>
    %82 = arith.addf %77, %81 : vector<16x16xf32>
    %c5 = arith.constant 5 : index
    %83 = memref.load %arg4[%c5] : memref<98xf32, #tpu.memory_space<smem>>
    %c0_48 = arith.constant 0 : index
    %c5_49 = arith.constant 5 : index
    %84 = vector.load %arg7[%c0_48, %c5_49] : memref<22x22xf32, #tpu.memory_space<vmem>>, vector<16x16xf32>
    %85 = vector.broadcast %83 : f32 to vector<16x16xf32>
    %86 = arith.mulf %85, %84 : vector<16x16xf32>
    %87 = arith.addf %82, %86 : vector<16x16xf32>
    %c6 = arith.constant 6 : index
    %88 = memref.load %arg4[%c6] : memref<98xf32, #tpu.memory_space<smem>>
    %c0_50 = arith.constant 0 : index
    %c6_51 = arith.constant 6 : index
    %89 = vector.load %arg7[%c0_50, %c6_51] : memref<22x22xf32, #tpu.memory_space<vmem>>, vector<16x16xf32>
    %90 = vector.broadcast %88 : f32 to vector<16x16xf32>
    %91 = arith.mulf %90, %89 : vector<16x16xf32>
    %92 = arith.addf %87, %91 : vector<16x16xf32>
    %c7 = arith.constant 7 : index
    %93 = memref.load %arg4[%c7] : memref<98xf32, #tpu.memory_space<smem>>
    %c1_52 = arith.constant 1 : index
    %c0_53 = arith.constant 0 : index
    %94 = vector.load %arg7[%c1_52, %c0_53] : memref<22x22xf32, #tpu.memory_space<vmem>>, vector<16x16xf32>
    %95 = vector.broadcast %93 : f32 to vector<16x16xf32>
    %96 = arith.mulf %95, %94 : vector<16x16xf32>
    %97 = arith.addf %92, %96 : vector<16x16xf32>
    %c8 = arith.constant 8 : index
    %98 = memref.load %arg4[%c8] : memref<98xf32, #tpu.memory_space<smem>>
    %c1_54 = arith.constant 1 : index
    %c1_55 = arith.constant 1 : index
    %99 = vector.load %arg7[%c1_54, %c1_55] : memref<22x22xf32, #tpu.memory_space<vmem>>, vector<16x16xf32>
    %100 = vector.broadcast %98 : f32 to vector<16x16xf32>
    %101 = arith.mulf %100, %99 : vector<16x16xf32>
    %102 = arith.addf %97, %101 : vector<16x16xf32>
    %c9 = arith.constant 9 : index
    %103 = memref.load %arg4[%c9] : memref<98xf32, #tpu.memory_space<smem>>
    %c1_56 = arith.constant 1 : index
    %c2_57 = arith.constant 2 : index
    %104 = vector.load %arg7[%c1_56, %c2_57] : memref<22x22xf32, #tpu.memory_space<vmem>>, vector<16x16xf32>
    %105 = vector.broadcast %103 : f32 to vector<16x16xf32>
    %106 = arith.mulf %105, %104 : vector<16x16xf32>
    %107 = arith.addf %102, %106 : vector<16x16xf32>
    %c10 = arith.constant 10 : index
    %108 = memref.load %arg4[%c10] : memref<98xf32, #tpu.memory_space<smem>>
    %c1_58 = arith.constant 1 : index
    %c3_59 = arith.constant 3 : index
    %109 = vector.load %arg7[%c1_58, %c3_59] : memref<22x22xf32, #tpu.memory_space<vmem>>, vector<16x16xf32>
    %110 = vector.broadcast %108 : f32 to vector<16x16xf32>
    %111 = arith.mulf %110, %109 : vector<16x16xf32>
    %112 = arith.addf %107, %111 : vector<16x16xf32>
    %c11 = arith.constant 11 : index
    %113 = memref.load %arg4[%c11] : memref<98xf32, #tpu.memory_space<smem>>
    %c1_60 = arith.constant 1 : index
    %c4_61 = arith.constant 4 : index
    %114 = vector.load %arg7[%c1_60, %c4_61] : memref<22x22xf32, #tpu.memory_space<vmem>>, vector<16x16xf32>
    %115 = vector.broadcast %113 : f32 to vector<16x16xf32>
    %116 = arith.mulf %115, %114 : vector<16x16xf32>
    %117 = arith.addf %112, %116 : vector<16x16xf32>
    %c12 = arith.constant 12 : index
    %118 = memref.load %arg4[%c12] : memref<98xf32, #tpu.memory_space<smem>>
    %c1_62 = arith.constant 1 : index
    %c5_63 = arith.constant 5 : index
    %119 = vector.load %arg7[%c1_62, %c5_63] : memref<22x22xf32, #tpu.memory_space<vmem>>, vector<16x16xf32>
    %120 = vector.broadcast %118 : f32 to vector<16x16xf32>
    %121 = arith.mulf %120, %119 : vector<16x16xf32>
    %122 = arith.addf %117, %121 : vector<16x16xf32>
    %c13 = arith.constant 13 : index
    %123 = memref.load %arg4[%c13] : memref<98xf32, #tpu.memory_space<smem>>
    %c1_64 = arith.constant 1 : index
    %c6_65 = arith.constant 6 : index
    %124 = vector.load %arg7[%c1_64, %c6_65] : memref<22x22xf32, #tpu.memory_space<vmem>>, vector<16x16xf32>
    %125 = vector.broadcast %123 : f32 to vector<16x16xf32>
    %126 = arith.mulf %125, %124 : vector<16x16xf32>
    %127 = arith.addf %122, %126 : vector<16x16xf32>
    %c14 = arith.constant 14 : index
    %128 = memref.load %arg4[%c14] : memref<98xf32, #tpu.memory_space<smem>>
    %c2_66 = arith.constant 2 : index
    %c0_67 = arith.constant 0 : index
    %129 = vector.load %arg7[%c2_66, %c0_67] : memref<22x22xf32, #tpu.memory_space<vmem>>, vector<16x16xf32>
    %130 = vector.broadcast %128 : f32 to vector<16x16xf32>
    %131 = arith.mulf %130, %129 : vector<16x16xf32>
    %132 = arith.addf %127, %131 : vector<16x16xf32>
    %c15 = arith.constant 15 : index
    %133 = memref.load %arg4[%c15] : memref<98xf32, #tpu.memory_space<smem>>
    %c2_68 = arith.constant 2 : index
    %c1_69 = arith.constant 1 : index
    %134 = vector.load %arg7[%c2_68, %c1_69] : memref<22x22xf32, #tpu.memory_space<vmem>>, vector<16x16xf32>
    %135 = vector.broadcast %133 : f32 to vector<16x16xf32>
    %136 = arith.mulf %135, %134 : vector<16x16xf32>
    %137 = arith.addf %132, %136 : vector<16x16xf32>
    %c16 = arith.constant 16 : index
    %138 = memref.load %arg4[%c16] : memref<98xf32, #tpu.memory_space<smem>>
    %c2_70 = arith.constant 2 : index
    %c2_71 = arith.constant 2 : index
    %139 = vector.load %arg7[%c2_70, %c2_71] : memref<22x22xf32, #tpu.memory_space<vmem>>, vector<16x16xf32>
    %140 = vector.broadcast %138 : f32 to vector<16x16xf32>
    %141 = arith.mulf %140, %139 : vector<16x16xf32>
    %142 = arith.addf %137, %141 : vector<16x16xf32>
    %c17 = arith.constant 17 : index
    %143 = memref.load %arg4[%c17] : memref<98xf32, #tpu.memory_space<smem>>
    %c2_72 = arith.constant 2 : index
    %c3_73 = arith.constant 3 : index
    %144 = vector.load %arg7[%c2_72, %c3_73] : memref<22x22xf32, #tpu.memory_space<vmem>>, vector<16x16xf32>
    %145 = vector.broadcast %143 : f32 to vector<16x16xf32>
    %146 = arith.mulf %145, %144 : vector<16x16xf32>
    %147 = arith.addf %142, %146 : vector<16x16xf32>
    %c18 = arith.constant 18 : index
    %148 = memref.load %arg4[%c18] : memref<98xf32, #tpu.memory_space<smem>>
    %c2_74 = arith.constant 2 : index
    %c4_75 = arith.constant 4 : index
    %149 = vector.load %arg7[%c2_74, %c4_75] : memref<22x22xf32, #tpu.memory_space<vmem>>, vector<16x16xf32>
    %150 = vector.broadcast %148 : f32 to vector<16x16xf32>
    %151 = arith.mulf %150, %149 : vector<16x16xf32>
    %152 = arith.addf %147, %151 : vector<16x16xf32>
    %c19 = arith.constant 19 : index
    %153 = memref.load %arg4[%c19] : memref<98xf32, #tpu.memory_space<smem>>
    %c2_76 = arith.constant 2 : index
    %c5_77 = arith.constant 5 : index
    %154 = vector.load %arg7[%c2_76, %c5_77] : memref<22x22xf32, #tpu.memory_space<vmem>>, vector<16x16xf32>
    %155 = vector.broadcast %153 : f32 to vector<16x16xf32>
    %156 = arith.mulf %155, %154 : vector<16x16xf32>
    %157 = arith.addf %152, %156 : vector<16x16xf32>
    %c20 = arith.constant 20 : index
    %158 = memref.load %arg4[%c20] : memref<98xf32, #tpu.memory_space<smem>>
    %c2_78 = arith.constant 2 : index
    %c6_79 = arith.constant 6 : index
    %159 = vector.load %arg7[%c2_78, %c6_79] : memref<22x22xf32, #tpu.memory_space<vmem>>, vector<16x16xf32>
    %160 = vector.broadcast %158 : f32 to vector<16x16xf32>
    %161 = arith.mulf %160, %159 : vector<16x16xf32>
    %162 = arith.addf %157, %161 : vector<16x16xf32>
    %c21 = arith.constant 21 : index
    %163 = memref.load %arg4[%c21] : memref<98xf32, #tpu.memory_space<smem>>
    %c3_80 = arith.constant 3 : index
    %c0_81 = arith.constant 0 : index
    %164 = vector.load %arg7[%c3_80, %c0_81] : memref<22x22xf32, #tpu.memory_space<vmem>>, vector<16x16xf32>
    %165 = vector.broadcast %163 : f32 to vector<16x16xf32>
    %166 = arith.mulf %165, %164 : vector<16x16xf32>
    %167 = arith.addf %162, %166 : vector<16x16xf32>
    %c22 = arith.constant 22 : index
    %168 = memref.load %arg4[%c22] : memref<98xf32, #tpu.memory_space<smem>>
    %c3_82 = arith.constant 3 : index
    %c1_83 = arith.constant 1 : index
    %169 = vector.load %arg7[%c3_82, %c1_83] : memref<22x22xf32, #tpu.memory_space<vmem>>, vector<16x16xf32>
    %170 = vector.broadcast %168 : f32 to vector<16x16xf32>
    %171 = arith.mulf %170, %169 : vector<16x16xf32>
    %172 = arith.addf %167, %171 : vector<16x16xf32>
    %c23 = arith.constant 23 : index
    %173 = memref.load %arg4[%c23] : memref<98xf32, #tpu.memory_space<smem>>
    %c3_84 = arith.constant 3 : index
    %c2_85 = arith.constant 2 : index
    %174 = vector.load %arg7[%c3_84, %c2_85] : memref<22x22xf32, #tpu.memory_space<vmem>>, vector<16x16xf32>
    %175 = vector.broadcast %173 : f32 to vector<16x16xf32>
    %176 = arith.mulf %175, %174 : vector<16x16xf32>
    %177 = arith.addf %172, %176 : vector<16x16xf32>
    %c24 = arith.constant 24 : index
    %178 = memref.load %arg4[%c24] : memref<98xf32, #tpu.memory_space<smem>>
    %c3_86 = arith.constant 3 : index
    %c3_87 = arith.constant 3 : index
    %179 = vector.load %arg7[%c3_86, %c3_87] : memref<22x22xf32, #tpu.memory_space<vmem>>, vector<16x16xf32>
    %180 = vector.broadcast %178 : f32 to vector<16x16xf32>
    %181 = arith.mulf %180, %179 : vector<16x16xf32>
    %182 = arith.addf %177, %181 : vector<16x16xf32>
    %c25 = arith.constant 25 : index
    %183 = memref.load %arg4[%c25] : memref<98xf32, #tpu.memory_space<smem>>
    %c3_88 = arith.constant 3 : index
    %c4_89 = arith.constant 4 : index
    %184 = vector.load %arg7[%c3_88, %c4_89] : memref<22x22xf32, #tpu.memory_space<vmem>>, vector<16x16xf32>
    %185 = vector.broadcast %183 : f32 to vector<16x16xf32>
    %186 = arith.mulf %185, %184 : vector<16x16xf32>
    %187 = arith.addf %182, %186 : vector<16x16xf32>
    %c26 = arith.constant 26 : index
    %188 = memref.load %arg4[%c26] : memref<98xf32, #tpu.memory_space<smem>>
    %c3_90 = arith.constant 3 : index
    %c5_91 = arith.constant 5 : index
    %189 = vector.load %arg7[%c3_90, %c5_91] : memref<22x22xf32, #tpu.memory_space<vmem>>, vector<16x16xf32>
    %190 = vector.broadcast %188 : f32 to vector<16x16xf32>
    %191 = arith.mulf %190, %189 : vector<16x16xf32>
    %192 = arith.addf %187, %191 : vector<16x16xf32>
    %c27 = arith.constant 27 : index
    %193 = memref.load %arg4[%c27] : memref<98xf32, #tpu.memory_space<smem>>
    %c3_92 = arith.constant 3 : index
    %c6_93 = arith.constant 6 : index
    %194 = vector.load %arg7[%c3_92, %c6_93] : memref<22x22xf32, #tpu.memory_space<vmem>>, vector<16x16xf32>
    %195 = vector.broadcast %193 : f32 to vector<16x16xf32>
    %196 = arith.mulf %195, %194 : vector<16x16xf32>
    %197 = arith.addf %192, %196 : vector<16x16xf32>
    %c28 = arith.constant 28 : index
    %198 = memref.load %arg4[%c28] : memref<98xf32, #tpu.memory_space<smem>>
    %c4_94 = arith.constant 4 : index
    %c0_95 = arith.constant 0 : index
    %199 = vector.load %arg7[%c4_94, %c0_95] : memref<22x22xf32, #tpu.memory_space<vmem>>, vector<16x16xf32>
    %200 = vector.broadcast %198 : f32 to vector<16x16xf32>
    %201 = arith.mulf %200, %199 : vector<16x16xf32>
    %202 = arith.addf %197, %201 : vector<16x16xf32>
    %c29 = arith.constant 29 : index
    %203 = memref.load %arg4[%c29] : memref<98xf32, #tpu.memory_space<smem>>
    %c4_96 = arith.constant 4 : index
    %c1_97 = arith.constant 1 : index
    %204 = vector.load %arg7[%c4_96, %c1_97] : memref<22x22xf32, #tpu.memory_space<vmem>>, vector<16x16xf32>
    %205 = vector.broadcast %203 : f32 to vector<16x16xf32>
    %206 = arith.mulf %205, %204 : vector<16x16xf32>
    %207 = arith.addf %202, %206 : vector<16x16xf32>
    %c30 = arith.constant 30 : index
    %208 = memref.load %arg4[%c30] : memref<98xf32, #tpu.memory_space<smem>>
    %c4_98 = arith.constant 4 : index
    %c2_99 = arith.constant 2 : index
    %209 = vector.load %arg7[%c4_98, %c2_99] : memref<22x22xf32, #tpu.memory_space<vmem>>, vector<16x16xf32>
    %210 = vector.broadcast %208 : f32 to vector<16x16xf32>
    %211 = arith.mulf %210, %209 : vector<16x16xf32>
    %212 = arith.addf %207, %211 : vector<16x16xf32>
    %c31 = arith.constant 31 : index
    %213 = memref.load %arg4[%c31] : memref<98xf32, #tpu.memory_space<smem>>
    %c4_100 = arith.constant 4 : index
    %c3_101 = arith.constant 3 : index
    %214 = vector.load %arg7[%c4_100, %c3_101] : memref<22x22xf32, #tpu.memory_space<vmem>>, vector<16x16xf32>
    %215 = vector.broadcast %213 : f32 to vector<16x16xf32>
    %216 = arith.mulf %215, %214 : vector<16x16xf32>
    %217 = arith.addf %212, %216 : vector<16x16xf32>
    %c32 = arith.constant 32 : index
    %218 = memref.load %arg4[%c32] : memref<98xf32, #tpu.memory_space<smem>>
    %c4_102 = arith.constant 4 : index
    %c4_103 = arith.constant 4 : index
    %219 = vector.load %arg7[%c4_102, %c4_103] : memref<22x22xf32, #tpu.memory_space<vmem>>, vector<16x16xf32>
    %220 = vector.broadcast %218 : f32 to vector<16x16xf32>
    %221 = arith.mulf %220, %219 : vector<16x16xf32>
    %222 = arith.addf %217, %221 : vector<16x16xf32>
    %c33 = arith.constant 33 : index
    %223 = memref.load %arg4[%c33] : memref<98xf32, #tpu.memory_space<smem>>
    %c4_104 = arith.constant 4 : index
    %c5_105 = arith.constant 5 : index
    %224 = vector.load %arg7[%c4_104, %c5_105] : memref<22x22xf32, #tpu.memory_space<vmem>>, vector<16x16xf32>
    %225 = vector.broadcast %223 : f32 to vector<16x16xf32>
    %226 = arith.mulf %225, %224 : vector<16x16xf32>
    %227 = arith.addf %222, %226 : vector<16x16xf32>
    %c34 = arith.constant 34 : index
    %228 = memref.load %arg4[%c34] : memref<98xf32, #tpu.memory_space<smem>>
    %c4_106 = arith.constant 4 : index
    %c6_107 = arith.constant 6 : index
    %229 = vector.load %arg7[%c4_106, %c6_107] : memref<22x22xf32, #tpu.memory_space<vmem>>, vector<16x16xf32>
    %230 = vector.broadcast %228 : f32 to vector<16x16xf32>
    %231 = arith.mulf %230, %229 : vector<16x16xf32>
    %232 = arith.addf %227, %231 : vector<16x16xf32>
    %c35 = arith.constant 35 : index
    %233 = memref.load %arg4[%c35] : memref<98xf32, #tpu.memory_space<smem>>
    %c5_108 = arith.constant 5 : index
    %c0_109 = arith.constant 0 : index
    %234 = vector.load %arg7[%c5_108, %c0_109] : memref<22x22xf32, #tpu.memory_space<vmem>>, vector<16x16xf32>
    %235 = vector.broadcast %233 : f32 to vector<16x16xf32>
    %236 = arith.mulf %235, %234 : vector<16x16xf32>
    %237 = arith.addf %232, %236 : vector<16x16xf32>
    %c36 = arith.constant 36 : index
    %238 = memref.load %arg4[%c36] : memref<98xf32, #tpu.memory_space<smem>>
    %c5_110 = arith.constant 5 : index
    %c1_111 = arith.constant 1 : index
    %239 = vector.load %arg7[%c5_110, %c1_111] : memref<22x22xf32, #tpu.memory_space<vmem>>, vector<16x16xf32>
    %240 = vector.broadcast %238 : f32 to vector<16x16xf32>
    %241 = arith.mulf %240, %239 : vector<16x16xf32>
    %242 = arith.addf %237, %241 : vector<16x16xf32>
    %c37 = arith.constant 37 : index
    %243 = memref.load %arg4[%c37] : memref<98xf32, #tpu.memory_space<smem>>
    %c5_112 = arith.constant 5 : index
    %c2_113 = arith.constant 2 : index
    %244 = vector.load %arg7[%c5_112, %c2_113] : memref<22x22xf32, #tpu.memory_space<vmem>>, vector<16x16xf32>
    %245 = vector.broadcast %243 : f32 to vector<16x16xf32>
    %246 = arith.mulf %245, %244 : vector<16x16xf32>
    %247 = arith.addf %242, %246 : vector<16x16xf32>
    %c38 = arith.constant 38 : index
    %248 = memref.load %arg4[%c38] : memref<98xf32, #tpu.memory_space<smem>>
    %c5_114 = arith.constant 5 : index
    %c3_115 = arith.constant 3 : index
    %249 = vector.load %arg7[%c5_114, %c3_115] : memref<22x22xf32, #tpu.memory_space<vmem>>, vector<16x16xf32>
    %250 = vector.broadcast %248 : f32 to vector<16x16xf32>
    %251 = arith.mulf %250, %249 : vector<16x16xf32>
    %252 = arith.addf %247, %251 : vector<16x16xf32>
    %c39 = arith.constant 39 : index
    %253 = memref.load %arg4[%c39] : memref<98xf32, #tpu.memory_space<smem>>
    %c5_116 = arith.constant 5 : index
    %c4_117 = arith.constant 4 : index
    %254 = vector.load %arg7[%c5_116, %c4_117] : memref<22x22xf32, #tpu.memory_space<vmem>>, vector<16x16xf32>
    %255 = vector.broadcast %253 : f32 to vector<16x16xf32>
    %256 = arith.mulf %255, %254 : vector<16x16xf32>
    %257 = arith.addf %252, %256 : vector<16x16xf32>
    %c40 = arith.constant 40 : index
    %258 = memref.load %arg4[%c40] : memref<98xf32, #tpu.memory_space<smem>>
    %c5_118 = arith.constant 5 : index
    %c5_119 = arith.constant 5 : index
    %259 = vector.load %arg7[%c5_118, %c5_119] : memref<22x22xf32, #tpu.memory_space<vmem>>, vector<16x16xf32>
    %260 = vector.broadcast %258 : f32 to vector<16x16xf32>
    %261 = arith.mulf %260, %259 : vector<16x16xf32>
    %262 = arith.addf %257, %261 : vector<16x16xf32>
    %c41 = arith.constant 41 : index
    %263 = memref.load %arg4[%c41] : memref<98xf32, #tpu.memory_space<smem>>
    %c5_120 = arith.constant 5 : index
    %c6_121 = arith.constant 6 : index
    %264 = vector.load %arg7[%c5_120, %c6_121] : memref<22x22xf32, #tpu.memory_space<vmem>>, vector<16x16xf32>
    %265 = vector.broadcast %263 : f32 to vector<16x16xf32>
    %266 = arith.mulf %265, %264 : vector<16x16xf32>
    %267 = arith.addf %262, %266 : vector<16x16xf32>
    %c42 = arith.constant 42 : index
    %268 = memref.load %arg4[%c42] : memref<98xf32, #tpu.memory_space<smem>>
    %c6_122 = arith.constant 6 : index
    %c0_123 = arith.constant 0 : index
    %269 = vector.load %arg7[%c6_122, %c0_123] : memref<22x22xf32, #tpu.memory_space<vmem>>, vector<16x16xf32>
    %270 = vector.broadcast %268 : f32 to vector<16x16xf32>
    %271 = arith.mulf %270, %269 : vector<16x16xf32>
    %272 = arith.addf %267, %271 : vector<16x16xf32>
    %c43 = arith.constant 43 : index
    %273 = memref.load %arg4[%c43] : memref<98xf32, #tpu.memory_space<smem>>
    %c6_124 = arith.constant 6 : index
    %c1_125 = arith.constant 1 : index
    %274 = vector.load %arg7[%c6_124, %c1_125] : memref<22x22xf32, #tpu.memory_space<vmem>>, vector<16x16xf32>
    %275 = vector.broadcast %273 : f32 to vector<16x16xf32>
    %276 = arith.mulf %275, %274 : vector<16x16xf32>
    %277 = arith.addf %272, %276 : vector<16x16xf32>
    %c44 = arith.constant 44 : index
    %278 = memref.load %arg4[%c44] : memref<98xf32, #tpu.memory_space<smem>>
    %c6_126 = arith.constant 6 : index
    %c2_127 = arith.constant 2 : index
    %279 = vector.load %arg7[%c6_126, %c2_127] : memref<22x22xf32, #tpu.memory_space<vmem>>, vector<16x16xf32>
    %280 = vector.broadcast %278 : f32 to vector<16x16xf32>
    %281 = arith.mulf %280, %279 : vector<16x16xf32>
    %282 = arith.addf %277, %281 : vector<16x16xf32>
    %c45 = arith.constant 45 : index
    %283 = memref.load %arg4[%c45] : memref<98xf32, #tpu.memory_space<smem>>
    %c6_128 = arith.constant 6 : index
    %c3_129 = arith.constant 3 : index
    %284 = vector.load %arg7[%c6_128, %c3_129] : memref<22x22xf32, #tpu.memory_space<vmem>>, vector<16x16xf32>
    %285 = vector.broadcast %283 : f32 to vector<16x16xf32>
    %286 = arith.mulf %285, %284 : vector<16x16xf32>
    %287 = arith.addf %282, %286 : vector<16x16xf32>
    %c46 = arith.constant 46 : index
    %288 = memref.load %arg4[%c46] : memref<98xf32, #tpu.memory_space<smem>>
    %c6_130 = arith.constant 6 : index
    %c4_131 = arith.constant 4 : index
    %289 = vector.load %arg7[%c6_130, %c4_131] : memref<22x22xf32, #tpu.memory_space<vmem>>, vector<16x16xf32>
    %290 = vector.broadcast %288 : f32 to vector<16x16xf32>
    %291 = arith.mulf %290, %289 : vector<16x16xf32>
    %292 = arith.addf %287, %291 : vector<16x16xf32>
    %c47 = arith.constant 47 : index
    %293 = memref.load %arg4[%c47] : memref<98xf32, #tpu.memory_space<smem>>
    %c6_132 = arith.constant 6 : index
    %c5_133 = arith.constant 5 : index
    %294 = vector.load %arg7[%c6_132, %c5_133] : memref<22x22xf32, #tpu.memory_space<vmem>>, vector<16x16xf32>
    %295 = vector.broadcast %293 : f32 to vector<16x16xf32>
    %296 = arith.mulf %295, %294 : vector<16x16xf32>
    %297 = arith.addf %292, %296 : vector<16x16xf32>
    %c48 = arith.constant 48 : index
    %298 = memref.load %arg4[%c48] : memref<98xf32, #tpu.memory_space<smem>>
    %c6_134 = arith.constant 6 : index
    %c6_135 = arith.constant 6 : index
    %299 = vector.load %arg7[%c6_134, %c6_135] : memref<22x22xf32, #tpu.memory_space<vmem>>, vector<16x16xf32>
    %300 = vector.broadcast %298 : f32 to vector<16x16xf32>
    %301 = arith.mulf %300, %299 : vector<16x16xf32>
    %302 = arith.addf %297, %301 : vector<16x16xf32>
    %c49 = arith.constant 49 : index
    %303 = memref.load %arg4[%c49] : memref<98xf32, #tpu.memory_space<smem>>
    %c0_136 = arith.constant 0 : index
    %c0_137 = arith.constant 0 : index
    %304 = vector.load %arg8[%c0_136, %c0_137] : memref<22x22xf32, #tpu.memory_space<vmem>>, vector<16x16xf32>
    %305 = vector.broadcast %303 : f32 to vector<16x16xf32>
    %306 = arith.mulf %305, %304 : vector<16x16xf32>
    %307 = arith.addf %302, %306 : vector<16x16xf32>
    %c50 = arith.constant 50 : index
    %308 = memref.load %arg4[%c50] : memref<98xf32, #tpu.memory_space<smem>>
    %c0_138 = arith.constant 0 : index
    %c1_139 = arith.constant 1 : index
    %309 = vector.load %arg8[%c0_138, %c1_139] : memref<22x22xf32, #tpu.memory_space<vmem>>, vector<16x16xf32>
    %310 = vector.broadcast %308 : f32 to vector<16x16xf32>
    %311 = arith.mulf %310, %309 : vector<16x16xf32>
    %312 = arith.addf %307, %311 : vector<16x16xf32>
    %c51 = arith.constant 51 : index
    %313 = memref.load %arg4[%c51] : memref<98xf32, #tpu.memory_space<smem>>
    %c0_140 = arith.constant 0 : index
    %c2_141 = arith.constant 2 : index
    %314 = vector.load %arg8[%c0_140, %c2_141] : memref<22x22xf32, #tpu.memory_space<vmem>>, vector<16x16xf32>
    %315 = vector.broadcast %313 : f32 to vector<16x16xf32>
    %316 = arith.mulf %315, %314 : vector<16x16xf32>
    %317 = arith.addf %312, %316 : vector<16x16xf32>
    %c52 = arith.constant 52 : index
    %318 = memref.load %arg4[%c52] : memref<98xf32, #tpu.memory_space<smem>>
    %c0_142 = arith.constant 0 : index
    %c3_143 = arith.constant 3 : index
    %319 = vector.load %arg8[%c0_142, %c3_143] : memref<22x22xf32, #tpu.memory_space<vmem>>, vector<16x16xf32>
    %320 = vector.broadcast %318 : f32 to vector<16x16xf32>
    %321 = arith.mulf %320, %319 : vector<16x16xf32>
    %322 = arith.addf %317, %321 : vector<16x16xf32>
    %c53 = arith.constant 53 : index
    %323 = memref.load %arg4[%c53] : memref<98xf32, #tpu.memory_space<smem>>
    %c0_144 = arith.constant 0 : index
    %c4_145 = arith.constant 4 : index
    %324 = vector.load %arg8[%c0_144, %c4_145] : memref<22x22xf32, #tpu.memory_space<vmem>>, vector<16x16xf32>
    %325 = vector.broadcast %323 : f32 to vector<16x16xf32>
    %326 = arith.mulf %325, %324 : vector<16x16xf32>
    %327 = arith.addf %322, %326 : vector<16x16xf32>
    %c54 = arith.constant 54 : index
    %328 = memref.load %arg4[%c54] : memref<98xf32, #tpu.memory_space<smem>>
    %c0_146 = arith.constant 0 : index
    %c5_147 = arith.constant 5 : index
    %329 = vector.load %arg8[%c0_146, %c5_147] : memref<22x22xf32, #tpu.memory_space<vmem>>, vector<16x16xf32>
    %330 = vector.broadcast %328 : f32 to vector<16x16xf32>
    %331 = arith.mulf %330, %329 : vector<16x16xf32>
    %332 = arith.addf %327, %331 : vector<16x16xf32>
    %c55 = arith.constant 55 : index
    %333 = memref.load %arg4[%c55] : memref<98xf32, #tpu.memory_space<smem>>
    %c0_148 = arith.constant 0 : index
    %c6_149 = arith.constant 6 : index
    %334 = vector.load %arg8[%c0_148, %c6_149] : memref<22x22xf32, #tpu.memory_space<vmem>>, vector<16x16xf32>
    %335 = vector.broadcast %333 : f32 to vector<16x16xf32>
    %336 = arith.mulf %335, %334 : vector<16x16xf32>
    %337 = arith.addf %332, %336 : vector<16x16xf32>
    %c56 = arith.constant 56 : index
    %338 = memref.load %arg4[%c56] : memref<98xf32, #tpu.memory_space<smem>>
    %c1_150 = arith.constant 1 : index
    %c0_151 = arith.constant 0 : index
    %339 = vector.load %arg8[%c1_150, %c0_151] : memref<22x22xf32, #tpu.memory_space<vmem>>, vector<16x16xf32>
    %340 = vector.broadcast %338 : f32 to vector<16x16xf32>
    %341 = arith.mulf %340, %339 : vector<16x16xf32>
    %342 = arith.addf %337, %341 : vector<16x16xf32>
    %c57 = arith.constant 57 : index
    %343 = memref.load %arg4[%c57] : memref<98xf32, #tpu.memory_space<smem>>
    %c1_152 = arith.constant 1 : index
    %c1_153 = arith.constant 1 : index
    %344 = vector.load %arg8[%c1_152, %c1_153] : memref<22x22xf32, #tpu.memory_space<vmem>>, vector<16x16xf32>
    %345 = vector.broadcast %343 : f32 to vector<16x16xf32>
    %346 = arith.mulf %345, %344 : vector<16x16xf32>
    %347 = arith.addf %342, %346 : vector<16x16xf32>
    %c58 = arith.constant 58 : index
    %348 = memref.load %arg4[%c58] : memref<98xf32, #tpu.memory_space<smem>>
    %c1_154 = arith.constant 1 : index
    %c2_155 = arith.constant 2 : index
    %349 = vector.load %arg8[%c1_154, %c2_155] : memref<22x22xf32, #tpu.memory_space<vmem>>, vector<16x16xf32>
    %350 = vector.broadcast %348 : f32 to vector<16x16xf32>
    %351 = arith.mulf %350, %349 : vector<16x16xf32>
    %352 = arith.addf %347, %351 : vector<16x16xf32>
    %c59 = arith.constant 59 : index
    %353 = memref.load %arg4[%c59] : memref<98xf32, #tpu.memory_space<smem>>
    %c1_156 = arith.constant 1 : index
    %c3_157 = arith.constant 3 : index
    %354 = vector.load %arg8[%c1_156, %c3_157] : memref<22x22xf32, #tpu.memory_space<vmem>>, vector<16x16xf32>
    %355 = vector.broadcast %353 : f32 to vector<16x16xf32>
    %356 = arith.mulf %355, %354 : vector<16x16xf32>
    %357 = arith.addf %352, %356 : vector<16x16xf32>
    %c60 = arith.constant 60 : index
    %358 = memref.load %arg4[%c60] : memref<98xf32, #tpu.memory_space<smem>>
    %c1_158 = arith.constant 1 : index
    %c4_159 = arith.constant 4 : index
    %359 = vector.load %arg8[%c1_158, %c4_159] : memref<22x22xf32, #tpu.memory_space<vmem>>, vector<16x16xf32>
    %360 = vector.broadcast %358 : f32 to vector<16x16xf32>
    %361 = arith.mulf %360, %359 : vector<16x16xf32>
    %362 = arith.addf %357, %361 : vector<16x16xf32>
    %c61 = arith.constant 61 : index
    %363 = memref.load %arg4[%c61] : memref<98xf32, #tpu.memory_space<smem>>
    %c1_160 = arith.constant 1 : index
    %c5_161 = arith.constant 5 : index
    %364 = vector.load %arg8[%c1_160, %c5_161] : memref<22x22xf32, #tpu.memory_space<vmem>>, vector<16x16xf32>
    %365 = vector.broadcast %363 : f32 to vector<16x16xf32>
    %366 = arith.mulf %365, %364 : vector<16x16xf32>
    %367 = arith.addf %362, %366 : vector<16x16xf32>
    %c62 = arith.constant 62 : index
    %368 = memref.load %arg4[%c62] : memref<98xf32, #tpu.memory_space<smem>>
    %c1_162 = arith.constant 1 : index
    %c6_163 = arith.constant 6 : index
    %369 = vector.load %arg8[%c1_162, %c6_163] : memref<22x22xf32, #tpu.memory_space<vmem>>, vector<16x16xf32>
    %370 = vector.broadcast %368 : f32 to vector<16x16xf32>
    %371 = arith.mulf %370, %369 : vector<16x16xf32>
    %372 = arith.addf %367, %371 : vector<16x16xf32>
    %c63 = arith.constant 63 : index
    %373 = memref.load %arg4[%c63] : memref<98xf32, #tpu.memory_space<smem>>
    %c2_164 = arith.constant 2 : index
    %c0_165 = arith.constant 0 : index
    %374 = vector.load %arg8[%c2_164, %c0_165] : memref<22x22xf32, #tpu.memory_space<vmem>>, vector<16x16xf32>
    %375 = vector.broadcast %373 : f32 to vector<16x16xf32>
    %376 = arith.mulf %375, %374 : vector<16x16xf32>
    %377 = arith.addf %372, %376 : vector<16x16xf32>
    %c64 = arith.constant 64 : index
    %378 = memref.load %arg4[%c64] : memref<98xf32, #tpu.memory_space<smem>>
    %c2_166 = arith.constant 2 : index
    %c1_167 = arith.constant 1 : index
    %379 = vector.load %arg8[%c2_166, %c1_167] : memref<22x22xf32, #tpu.memory_space<vmem>>, vector<16x16xf32>
    %380 = vector.broadcast %378 : f32 to vector<16x16xf32>
    %381 = arith.mulf %380, %379 : vector<16x16xf32>
    %382 = arith.addf %377, %381 : vector<16x16xf32>
    %c65 = arith.constant 65 : index
    %383 = memref.load %arg4[%c65] : memref<98xf32, #tpu.memory_space<smem>>
    %c2_168 = arith.constant 2 : index
    %c2_169 = arith.constant 2 : index
    %384 = vector.load %arg8[%c2_168, %c2_169] : memref<22x22xf32, #tpu.memory_space<vmem>>, vector<16x16xf32>
    %385 = vector.broadcast %383 : f32 to vector<16x16xf32>
    %386 = arith.mulf %385, %384 : vector<16x16xf32>
    %387 = arith.addf %382, %386 : vector<16x16xf32>
    %c66 = arith.constant 66 : index
    %388 = memref.load %arg4[%c66] : memref<98xf32, #tpu.memory_space<smem>>
    %c2_170 = arith.constant 2 : index
    %c3_171 = arith.constant 3 : index
    %389 = vector.load %arg8[%c2_170, %c3_171] : memref<22x22xf32, #tpu.memory_space<vmem>>, vector<16x16xf32>
    %390 = vector.broadcast %388 : f32 to vector<16x16xf32>
    %391 = arith.mulf %390, %389 : vector<16x16xf32>
    %392 = arith.addf %387, %391 : vector<16x16xf32>
    %c67 = arith.constant 67 : index
    %393 = memref.load %arg4[%c67] : memref<98xf32, #tpu.memory_space<smem>>
    %c2_172 = arith.constant 2 : index
    %c4_173 = arith.constant 4 : index
    %394 = vector.load %arg8[%c2_172, %c4_173] : memref<22x22xf32, #tpu.memory_space<vmem>>, vector<16x16xf32>
    %395 = vector.broadcast %393 : f32 to vector<16x16xf32>
    %396 = arith.mulf %395, %394 : vector<16x16xf32>
    %397 = arith.addf %392, %396 : vector<16x16xf32>
    %c68 = arith.constant 68 : index
    %398 = memref.load %arg4[%c68] : memref<98xf32, #tpu.memory_space<smem>>
    %c2_174 = arith.constant 2 : index
    %c5_175 = arith.constant 5 : index
    %399 = vector.load %arg8[%c2_174, %c5_175] : memref<22x22xf32, #tpu.memory_space<vmem>>, vector<16x16xf32>
    %400 = vector.broadcast %398 : f32 to vector<16x16xf32>
    %401 = arith.mulf %400, %399 : vector<16x16xf32>
    %402 = arith.addf %397, %401 : vector<16x16xf32>
    %c69 = arith.constant 69 : index
    %403 = memref.load %arg4[%c69] : memref<98xf32, #tpu.memory_space<smem>>
    %c2_176 = arith.constant 2 : index
    %c6_177 = arith.constant 6 : index
    %404 = vector.load %arg8[%c2_176, %c6_177] : memref<22x22xf32, #tpu.memory_space<vmem>>, vector<16x16xf32>
    %405 = vector.broadcast %403 : f32 to vector<16x16xf32>
    %406 = arith.mulf %405, %404 : vector<16x16xf32>
    %407 = arith.addf %402, %406 : vector<16x16xf32>
    %c70 = arith.constant 70 : index
    %408 = memref.load %arg4[%c70] : memref<98xf32, #tpu.memory_space<smem>>
    %c3_178 = arith.constant 3 : index
    %c0_179 = arith.constant 0 : index
    %409 = vector.load %arg8[%c3_178, %c0_179] : memref<22x22xf32, #tpu.memory_space<vmem>>, vector<16x16xf32>
    %410 = vector.broadcast %408 : f32 to vector<16x16xf32>
    %411 = arith.mulf %410, %409 : vector<16x16xf32>
    %412 = arith.addf %407, %411 : vector<16x16xf32>
    %c71 = arith.constant 71 : index
    %413 = memref.load %arg4[%c71] : memref<98xf32, #tpu.memory_space<smem>>
    %c3_180 = arith.constant 3 : index
    %c1_181 = arith.constant 1 : index
    %414 = vector.load %arg8[%c3_180, %c1_181] : memref<22x22xf32, #tpu.memory_space<vmem>>, vector<16x16xf32>
    %415 = vector.broadcast %413 : f32 to vector<16x16xf32>
    %416 = arith.mulf %415, %414 : vector<16x16xf32>
    %417 = arith.addf %412, %416 : vector<16x16xf32>
    %c72 = arith.constant 72 : index
    %418 = memref.load %arg4[%c72] : memref<98xf32, #tpu.memory_space<smem>>
    %c3_182 = arith.constant 3 : index
    %c2_183 = arith.constant 2 : index
    %419 = vector.load %arg8[%c3_182, %c2_183] : memref<22x22xf32, #tpu.memory_space<vmem>>, vector<16x16xf32>
    %420 = vector.broadcast %418 : f32 to vector<16x16xf32>
    %421 = arith.mulf %420, %419 : vector<16x16xf32>
    %422 = arith.addf %417, %421 : vector<16x16xf32>
    %c73 = arith.constant 73 : index
    %423 = memref.load %arg4[%c73] : memref<98xf32, #tpu.memory_space<smem>>
    %c3_184 = arith.constant 3 : index
    %c3_185 = arith.constant 3 : index
    %424 = vector.load %arg8[%c3_184, %c3_185] : memref<22x22xf32, #tpu.memory_space<vmem>>, vector<16x16xf32>
    %425 = vector.broadcast %423 : f32 to vector<16x16xf32>
    %426 = arith.mulf %425, %424 : vector<16x16xf32>
    %427 = arith.addf %422, %426 : vector<16x16xf32>
    %c74 = arith.constant 74 : index
    %428 = memref.load %arg4[%c74] : memref<98xf32, #tpu.memory_space<smem>>
    %c3_186 = arith.constant 3 : index
    %c4_187 = arith.constant 4 : index
    %429 = vector.load %arg8[%c3_186, %c4_187] : memref<22x22xf32, #tpu.memory_space<vmem>>, vector<16x16xf32>
    %430 = vector.broadcast %428 : f32 to vector<16x16xf32>
    %431 = arith.mulf %430, %429 : vector<16x16xf32>
    %432 = arith.addf %427, %431 : vector<16x16xf32>
    %c75 = arith.constant 75 : index
    %433 = memref.load %arg4[%c75] : memref<98xf32, #tpu.memory_space<smem>>
    %c3_188 = arith.constant 3 : index
    %c5_189 = arith.constant 5 : index
    %434 = vector.load %arg8[%c3_188, %c5_189] : memref<22x22xf32, #tpu.memory_space<vmem>>, vector<16x16xf32>
    %435 = vector.broadcast %433 : f32 to vector<16x16xf32>
    %436 = arith.mulf %435, %434 : vector<16x16xf32>
    %437 = arith.addf %432, %436 : vector<16x16xf32>
    %c76 = arith.constant 76 : index
    %438 = memref.load %arg4[%c76] : memref<98xf32, #tpu.memory_space<smem>>
    %c3_190 = arith.constant 3 : index
    %c6_191 = arith.constant 6 : index
    %439 = vector.load %arg8[%c3_190, %c6_191] : memref<22x22xf32, #tpu.memory_space<vmem>>, vector<16x16xf32>
    %440 = vector.broadcast %438 : f32 to vector<16x16xf32>
    %441 = arith.mulf %440, %439 : vector<16x16xf32>
    %442 = arith.addf %437, %441 : vector<16x16xf32>
    %c77 = arith.constant 77 : index
    %443 = memref.load %arg4[%c77] : memref<98xf32, #tpu.memory_space<smem>>
    %c4_192 = arith.constant 4 : index
    %c0_193 = arith.constant 0 : index
    %444 = vector.load %arg8[%c4_192, %c0_193] : memref<22x22xf32, #tpu.memory_space<vmem>>, vector<16x16xf32>
    %445 = vector.broadcast %443 : f32 to vector<16x16xf32>
    %446 = arith.mulf %445, %444 : vector<16x16xf32>
    %447 = arith.addf %442, %446 : vector<16x16xf32>
    %c78 = arith.constant 78 : index
    %448 = memref.load %arg4[%c78] : memref<98xf32, #tpu.memory_space<smem>>
    %c4_194 = arith.constant 4 : index
    %c1_195 = arith.constant 1 : index
    %449 = vector.load %arg8[%c4_194, %c1_195] : memref<22x22xf32, #tpu.memory_space<vmem>>, vector<16x16xf32>
    %450 = vector.broadcast %448 : f32 to vector<16x16xf32>
    %451 = arith.mulf %450, %449 : vector<16x16xf32>
    %452 = arith.addf %447, %451 : vector<16x16xf32>
    %c79 = arith.constant 79 : index
    %453 = memref.load %arg4[%c79] : memref<98xf32, #tpu.memory_space<smem>>
    %c4_196 = arith.constant 4 : index
    %c2_197 = arith.constant 2 : index
    %454 = vector.load %arg8[%c4_196, %c2_197] : memref<22x22xf32, #tpu.memory_space<vmem>>, vector<16x16xf32>
    %455 = vector.broadcast %453 : f32 to vector<16x16xf32>
    %456 = arith.mulf %455, %454 : vector<16x16xf32>
    %457 = arith.addf %452, %456 : vector<16x16xf32>
    %c80 = arith.constant 80 : index
    %458 = memref.load %arg4[%c80] : memref<98xf32, #tpu.memory_space<smem>>
    %c4_198 = arith.constant 4 : index
    %c3_199 = arith.constant 3 : index
    %459 = vector.load %arg8[%c4_198, %c3_199] : memref<22x22xf32, #tpu.memory_space<vmem>>, vector<16x16xf32>
    %460 = vector.broadcast %458 : f32 to vector<16x16xf32>
    %461 = arith.mulf %460, %459 : vector<16x16xf32>
    %462 = arith.addf %457, %461 : vector<16x16xf32>
    %c81 = arith.constant 81 : index
    %463 = memref.load %arg4[%c81] : memref<98xf32, #tpu.memory_space<smem>>
    %c4_200 = arith.constant 4 : index
    %c4_201 = arith.constant 4 : index
    %464 = vector.load %arg8[%c4_200, %c4_201] : memref<22x22xf32, #tpu.memory_space<vmem>>, vector<16x16xf32>
    %465 = vector.broadcast %463 : f32 to vector<16x16xf32>
    %466 = arith.mulf %465, %464 : vector<16x16xf32>
    %467 = arith.addf %462, %466 : vector<16x16xf32>
    %c82 = arith.constant 82 : index
    %468 = memref.load %arg4[%c82] : memref<98xf32, #tpu.memory_space<smem>>
    %c4_202 = arith.constant 4 : index
    %c5_203 = arith.constant 5 : index
    %469 = vector.load %arg8[%c4_202, %c5_203] : memref<22x22xf32, #tpu.memory_space<vmem>>, vector<16x16xf32>
    %470 = vector.broadcast %468 : f32 to vector<16x16xf32>
    %471 = arith.mulf %470, %469 : vector<16x16xf32>
    %472 = arith.addf %467, %471 : vector<16x16xf32>
    %c83 = arith.constant 83 : index
    %473 = memref.load %arg4[%c83] : memref<98xf32, #tpu.memory_space<smem>>
    %c4_204 = arith.constant 4 : index
    %c6_205 = arith.constant 6 : index
    %474 = vector.load %arg8[%c4_204, %c6_205] : memref<22x22xf32, #tpu.memory_space<vmem>>, vector<16x16xf32>
    %475 = vector.broadcast %473 : f32 to vector<16x16xf32>
    %476 = arith.mulf %475, %474 : vector<16x16xf32>
    %477 = arith.addf %472, %476 : vector<16x16xf32>
    %c84 = arith.constant 84 : index
    %478 = memref.load %arg4[%c84] : memref<98xf32, #tpu.memory_space<smem>>
    %c5_206 = arith.constant 5 : index
    %c0_207 = arith.constant 0 : index
    %479 = vector.load %arg8[%c5_206, %c0_207] : memref<22x22xf32, #tpu.memory_space<vmem>>, vector<16x16xf32>
    %480 = vector.broadcast %478 : f32 to vector<16x16xf32>
    %481 = arith.mulf %480, %479 : vector<16x16xf32>
    %482 = arith.addf %477, %481 : vector<16x16xf32>
    %c85 = arith.constant 85 : index
    %483 = memref.load %arg4[%c85] : memref<98xf32, #tpu.memory_space<smem>>
    %c5_208 = arith.constant 5 : index
    %c1_209 = arith.constant 1 : index
    %484 = vector.load %arg8[%c5_208, %c1_209] : memref<22x22xf32, #tpu.memory_space<vmem>>, vector<16x16xf32>
    %485 = vector.broadcast %483 : f32 to vector<16x16xf32>
    %486 = arith.mulf %485, %484 : vector<16x16xf32>
    %487 = arith.addf %482, %486 : vector<16x16xf32>
    %c86 = arith.constant 86 : index
    %488 = memref.load %arg4[%c86] : memref<98xf32, #tpu.memory_space<smem>>
    %c5_210 = arith.constant 5 : index
    %c2_211 = arith.constant 2 : index
    %489 = vector.load %arg8[%c5_210, %c2_211] : memref<22x22xf32, #tpu.memory_space<vmem>>, vector<16x16xf32>
    %490 = vector.broadcast %488 : f32 to vector<16x16xf32>
    %491 = arith.mulf %490, %489 : vector<16x16xf32>
    %492 = arith.addf %487, %491 : vector<16x16xf32>
    %c87 = arith.constant 87 : index
    %493 = memref.load %arg4[%c87] : memref<98xf32, #tpu.memory_space<smem>>
    %c5_212 = arith.constant 5 : index
    %c3_213 = arith.constant 3 : index
    %494 = vector.load %arg8[%c5_212, %c3_213] : memref<22x22xf32, #tpu.memory_space<vmem>>, vector<16x16xf32>
    %495 = vector.broadcast %493 : f32 to vector<16x16xf32>
    %496 = arith.mulf %495, %494 : vector<16x16xf32>
    %497 = arith.addf %492, %496 : vector<16x16xf32>
    %c88 = arith.constant 88 : index
    %498 = memref.load %arg4[%c88] : memref<98xf32, #tpu.memory_space<smem>>
    %c5_214 = arith.constant 5 : index
    %c4_215 = arith.constant 4 : index
    %499 = vector.load %arg8[%c5_214, %c4_215] : memref<22x22xf32, #tpu.memory_space<vmem>>, vector<16x16xf32>
    %500 = vector.broadcast %498 : f32 to vector<16x16xf32>
    %501 = arith.mulf %500, %499 : vector<16x16xf32>
    %502 = arith.addf %497, %501 : vector<16x16xf32>
    %c89 = arith.constant 89 : index
    %503 = memref.load %arg4[%c89] : memref<98xf32, #tpu.memory_space<smem>>
    %c5_216 = arith.constant 5 : index
    %c5_217 = arith.constant 5 : index
    %504 = vector.load %arg8[%c5_216, %c5_217] : memref<22x22xf32, #tpu.memory_space<vmem>>, vector<16x16xf32>
    %505 = vector.broadcast %503 : f32 to vector<16x16xf32>
    %506 = arith.mulf %505, %504 : vector<16x16xf32>
    %507 = arith.addf %502, %506 : vector<16x16xf32>
    %c90 = arith.constant 90 : index
    %508 = memref.load %arg4[%c90] : memref<98xf32, #tpu.memory_space<smem>>
    %c5_218 = arith.constant 5 : index
    %c6_219 = arith.constant 6 : index
    %509 = vector.load %arg8[%c5_218, %c6_219] : memref<22x22xf32, #tpu.memory_space<vmem>>, vector<16x16xf32>
    %510 = vector.broadcast %508 : f32 to vector<16x16xf32>
    %511 = arith.mulf %510, %509 : vector<16x16xf32>
    %512 = arith.addf %507, %511 : vector<16x16xf32>
    %c91 = arith.constant 91 : index
    %513 = memref.load %arg4[%c91] : memref<98xf32, #tpu.memory_space<smem>>
    %c6_220 = arith.constant 6 : index
    %c0_221 = arith.constant 0 : index
    %514 = vector.load %arg8[%c6_220, %c0_221] : memref<22x22xf32, #tpu.memory_space<vmem>>, vector<16x16xf32>
    %515 = vector.broadcast %513 : f32 to vector<16x16xf32>
    %516 = arith.mulf %515, %514 : vector<16x16xf32>
    %517 = arith.addf %512, %516 : vector<16x16xf32>
    %c92 = arith.constant 92 : index
    %518 = memref.load %arg4[%c92] : memref<98xf32, #tpu.memory_space<smem>>
    %c6_222 = arith.constant 6 : index
    %c1_223 = arith.constant 1 : index
    %519 = vector.load %arg8[%c6_222, %c1_223] : memref<22x22xf32, #tpu.memory_space<vmem>>, vector<16x16xf32>
    %520 = vector.broadcast %518 : f32 to vector<16x16xf32>
    %521 = arith.mulf %520, %519 : vector<16x16xf32>
    %522 = arith.addf %517, %521 : vector<16x16xf32>
    %c93 = arith.constant 93 : index
    %523 = memref.load %arg4[%c93] : memref<98xf32, #tpu.memory_space<smem>>
    %c6_224 = arith.constant 6 : index
    %c2_225 = arith.constant 2 : index
    %524 = vector.load %arg8[%c6_224, %c2_225] : memref<22x22xf32, #tpu.memory_space<vmem>>, vector<16x16xf32>
    %525 = vector.broadcast %523 : f32 to vector<16x16xf32>
    %526 = arith.mulf %525, %524 : vector<16x16xf32>
    %527 = arith.addf %522, %526 : vector<16x16xf32>
    %c94 = arith.constant 94 : index
    %528 = memref.load %arg4[%c94] : memref<98xf32, #tpu.memory_space<smem>>
    %c6_226 = arith.constant 6 : index
    %c3_227 = arith.constant 3 : index
    %529 = vector.load %arg8[%c6_226, %c3_227] : memref<22x22xf32, #tpu.memory_space<vmem>>, vector<16x16xf32>
    %530 = vector.broadcast %528 : f32 to vector<16x16xf32>
    %531 = arith.mulf %530, %529 : vector<16x16xf32>
    %532 = arith.addf %527, %531 : vector<16x16xf32>
    %c95 = arith.constant 95 : index
    %533 = memref.load %arg4[%c95] : memref<98xf32, #tpu.memory_space<smem>>
    %c6_228 = arith.constant 6 : index
    %c4_229 = arith.constant 4 : index
    %534 = vector.load %arg8[%c6_228, %c4_229] : memref<22x22xf32, #tpu.memory_space<vmem>>, vector<16x16xf32>
    %535 = vector.broadcast %533 : f32 to vector<16x16xf32>
    %536 = arith.mulf %535, %534 : vector<16x16xf32>
    %537 = arith.addf %532, %536 : vector<16x16xf32>
    %c96 = arith.constant 96 : index
    %538 = memref.load %arg4[%c96] : memref<98xf32, #tpu.memory_space<smem>>
    %c6_230 = arith.constant 6 : index
    %c5_231 = arith.constant 5 : index
    %539 = vector.load %arg8[%c6_230, %c5_231] : memref<22x22xf32, #tpu.memory_space<vmem>>, vector<16x16xf32>
    %540 = vector.broadcast %538 : f32 to vector<16x16xf32>
    %541 = arith.mulf %540, %539 : vector<16x16xf32>
    %542 = arith.addf %537, %541 : vector<16x16xf32>
    %c97 = arith.constant 97 : index
    %543 = memref.load %arg4[%c97] : memref<98xf32, #tpu.memory_space<smem>>
    %c6_232 = arith.constant 6 : index
    %c6_233 = arith.constant 6 : index
    %544 = vector.load %arg8[%c6_232, %c6_233] : memref<22x22xf32, #tpu.memory_space<vmem>>, vector<16x16xf32>
    %545 = vector.broadcast %543 : f32 to vector<16x16xf32>
    %546 = arith.mulf %545, %544 : vector<16x16xf32>
    %547 = arith.addf %542, %546 : vector<16x16xf32>
    %cst_234 = arith.constant 0.000000e+00 : f32
    %548 = vector.broadcast %cst_234 : f32 to vector<16x16xf32>
    %549 = arith.subf %548, %547 : vector<16x16xf32>
    %550 = math.exp %549 : vector<16x16xf32>
    %cst_235 = arith.constant 1.000000e+00 : f32
    %551 = vector.broadcast %cst_235 : f32 to vector<16x16xf32>
    %552 = arith.addf %551, %550 : vector<16x16xf32>
    %cst_236 = arith.constant 1.000000e+00 : f32
    %553 = vector.broadcast %cst_236 : f32 to vector<16x16xf32>
    %554 = arith.divf %553, %552 : vector<16x16xf32>
    %555 = vector.shape_cast %554 : vector<16x16xf32> to vector<1x16x16xf32>
    %556 = vector.broadcast %555 : vector<1x16x16xf32> to vector<32x16x16xf32>
    %557 = arith.mulf %43, %556 : vector<32x16x16xf32>
    %c0_237 = arith.constant 0 : index
    %c0_238 = arith.constant 0 : index
    %c0_239 = arith.constant 0 : index
    %c0_240 = arith.constant 0 : index
    %558 = vector.load %arg6[%c0_237, %c0_238, %c0_239, %c0_240] : memref<1x32x16x16xf32, #tpu.memory_space<vmem>>, vector<1x32x16x16xf32>
    %559 = vector.shape_cast %558 : vector<1x32x16x16xf32> to vector<32x16x16xf32>
    %560 = vector.shape_cast %557 : vector<32x16x16xf32> to vector<1x32x16x16xf32>
    tpu.vector_store %arg6[%c0_237, %c0_238, %c0_239, %c0_240], %560 {strides = array<i32>} : memref<1x32x16x16xf32, #tpu.memory_space<vmem>>, vector<1x32x16x16xf32>,
    return
  }
  func.func @transform_0(%arg0: i32) -> (i32, i32, i32, i32) {
    %c0_i32 = arith.constant 0 : i32
    %c0_i32_0 = arith.constant 0 : i32
    %c0_i32_1 = arith.constant 0 : i32
    %c0_i32_2 = arith.constant 0 : i32
    return %arg0, %c0_i32, %c0_i32_0, %c0_i32_1 : i32, i32, i32, i32
  }
  func.func @transform_1(%arg0: i32) -> (i32, i32, i32) {
    %c0_i32 = arith.constant 0 : i32
    %c0_i32_0 = arith.constant 0 : i32
    %c0_i32_1 = arith.constant 0 : i32
    %c0_i32_2 = arith.constant 0 : i32
    return %c0_i32, %c0_i32_0, %c0_i32_1 : i32, i32, i32
  }
  func.func @transform_2(%arg0: i32) -> (i32, i32, i32) {
    %c0_i32 = arith.constant 0 : i32
    %c0_i32_0 = arith.constant 0 : i32
    %c0_i32_1 = arith.constant 0 : i32
    %c0_i32_2 = arith.constant 0 : i32
    return %c0_i32, %c0_i32_0, %c0_i32_1 : i32, i32, i32
  }
  func.func @transform_3(%arg0: i32) -> i32 {
    %c0_i32 = arith.constant 0 : i32
    %c0_i32_0 = arith.constant 0 : i32
    return %c0_i32 : i32
  }
  func.func @transform_4(%arg0: i32) -> i32 {
    %c0_i32 = arith.constant 0 : i32
    %c0_i32_0 = arith.constant 0 : i32
    return %c0_i32 : i32
  }
  func.func @transform_5(%arg0: i32) -> (i32, i32, i32, i32) {
    %c0_i32 = arith.constant 0 : i32
    %c0_i32_0 = arith.constant 0 : i32
    %c0_i32_1 = arith.constant 0 : i32
    %c0_i32_2 = arith.constant 0 : i32
    return %arg0, %c0_i32, %c0_i32_0, %c0_i32_1 : i32, i32, i32, i32
  }
}

</mosaic_0001>

<llo_original>
// kernel: cbam_forward.1
$region0: #{cbam_forward.1}
  #allocation0 [shape = 'u32[]', space=smem, size = 0x4, offset = 0x4, fixed_abs, tag = 'smem constant byte address 0x4 - core index']
  #allocation1 [shape = 'u32[144,128]{1,0:T(1,128)}', space=vmem, size = 0x12000, scoped, tag = 'internal scratch']
  #allocation2 [shape = 'f32[22,22]{1,0:T(8,128)}', space=vmem, size = 0x3000, scoped, tag = 'scratch operand']
  #allocation3 [shape = 'f32[22,22]{1,0:T(8,128)}', space=vmem, size = 0x3000, scoped, tag = 'scratch operand']
  #allocation4 [shape = 'f32[1]{0:T(128)S(6)}', space=smem, size = 0x200, scoped, tag = 'scoped memory for cbam_forward.1']
  %s0 = inlined_call_operand.vmem [shape: f32[2,32,16,16], index: 0, kind: input, shape index: {}]
  %s1 = inlined_call_operand.vmem [shape: f32[32,1,2], index: 1, kind: input, shape index: {}]
  %s2 = inlined_call_operand.vmem [shape: f32[32,1,2], index: 2, kind: input, shape index: {}]
  %s3 = inlined_call_operand.vmem [shape: f32[98], index: 3, kind: input, shape index: {}]
  %s4 = inlined_call_operand.<no memory space> [shape: f32[1], index: 4, kind: input, shape index: {}]
  %s5 = inlined_call_operand.vmem [shape: f32[2,32,16,16], index: 5, kind: output, shape index: {}]
  %s6 = sld [smem:[#allocation0]]
  $region57: #{cbam_forward.1} parent=0
    _
  %s8 = ssub.s32 1, %s6
  %s9 = scalar_select 0, %s8, %s6
  %10 = sst [smem:[#allocation4]] %s4
  $region1: #{cbam_forward.1} parent=0
    #allocation5 [shape = 'u8[512]{0}', space=smem, size = 0x200, scoped, tag = 'input window, operand 3, single buffered']
    #allocation6 [shape = 's32[2]{0}', space=sflag, size = 0x8, scoped, tag = 'scoped memory for cbam_forward.1']
    %11 = vsyncpa [#allocation6], 0
    loop: start=0, step=1, limit=4
    $region2: #{cbam_forward.1} parent=1 // loop_pre_header
      _
    $region3: #{cbam_forward.1} parent=1 // loop_header
      %s13 = sphi 0, %s17
      %p14 = scmp.ge.s32.totalorder %s13, 4
      %s23 = sphi 0, %s25
      %s26 = sphi 0, %s23
      %s27 = sphi 0, %s26
      %s43 = sphi 0, %s27
      %s47 = sphi 0, %s47
      %s49 = sphi 0, %s47
      %s50 = sphi 0, %s49
      %s64 = sphi 0, %s50
      %s68 = sphi 0, %s68
      %s70 = sphi 0, %s68
      %s71 = sphi 0, %s70
      %s85 = sphi 0, %s71
      %s89 = sphi 0, %s89
      %s91 = sphi 0, %s89
      %s92 = sphi 0, %s91
      %s106 = sphi 0, %s92
      %s110 = sphi 0, %s110
      %s112 = sphi 0, %s110
      %s113 = sphi 0, %s112
      %s127 = sphi 0, %s113
      %s133 = sphi 0, %s135
      %s136 = sphi 0, %s133
      %s137 = sphi 0, %s136
      %s153 = sphi 0, %s137
    $region4: #{cbam_forward.1} parent=1 // loop_header_branch
      %16 = sbr.rel (%p14) target = $region8
    $region5: #{cbam_forward.1} parent=1 // loop_body
      %s18 = ssub.s32 %s13, 1
      %s19 = ssub.s32 %s13, 2
      %s20 = sadd.s32 %s13, 1
      %s21 = ssub.s32 %s13, %s20
      %p22 = scmp.eq.s32.totalorder %s21, 0
      %s24 = sadd.s32 %s23, 1
      %s25 = scalar_select %p22, %s23, %s24
      %p28 = pneg %p22
      %p29 = scmp.eq.s32.totalorder %s13, 1
      %p30 = por %p28, %p29
      %p31 = scmp.ne.s32.totalorder %s23, %s26
      %p32 = scmp.eq.s32.totalorder %s13, 0
      %p33 = por %p31, %p32
      %p34 = scmp.ne.s32.totalorder %s23, %s26
      %p35 = scmp.eq.s32.totalorder %s18, 1
      %p36 = por %p34, %p35
      %p37 = scmp.ne.s32.totalorder %s26, %s27
      %p38 = scmp.eq.s32.totalorder %s18, 0
      %p39 = por %p37, %p38
      %p40 = scmp.ne.s32.totalorder %s26, %s27
      %p41 = scmp.eq.s32.totalorder %s19, 1
      %p42 = por %p40, %p41
      %p44 = scmp.ne.s32.totalorder %s27, %s43
      %p45 = scmp.eq.s32.totalorder %s19, 0
      %p46 = por %p44, %p45
      %s48 = sadd.s32 %s47, 1
      %p51 = scmp.eq.s32.totalorder %s13, 1
      %p52 = scmp.ne.s32.totalorder %s47, %s49
      %p53 = scmp.eq.s32.totalorder %s13, 0
      %p54 = por %p52, %p53
      %p55 = scmp.ne.s32.totalorder %s47, %s49
      %p56 = scmp.eq.s32.totalorder %s18, 1
      %p57 = por %p55, %p56
      %p58 = scmp.ne.s32.totalorder %s49, %s50
      %p59 = scmp.eq.s32.totalorder %s18, 0
      %p60 = por %p58, %p59
      %p61 = scmp.ne.s32.totalorder %s49, %s50
      %p62 = scmp.eq.s32.totalorder %s19, 1
      %p63 = por %p61, %p62
      %p65 = scmp.ne.s32.totalorder %s50, %s64
      %p66 = scmp.eq.s32.totalorder %s19, 0
      %p67 = por %p65, %p66
      %s69 = sadd.s32 %s68, 1
      %p72 = scmp.eq.s32.totalorder %s13, 1
      %p73 = scmp.ne.s32.totalorder %s68, %s70
      %p74 = scmp.eq.s32.totalorder %s13, 0
      %p75 = por %p73, %p74
      %p76 = scmp.ne.s32.totalorder %s68, %s70
      %p77 = scmp.eq.s32.totalorder %s18, 1
      %p78 = por %p76, %p77
      %p79 = scmp.ne.s32.totalorder %s70, %s71
      %p80 = scmp.eq.s32.totalorder %s18, 0
      %p81 = por %p79, %p80
      %p82 = scmp.ne.s32.totalorder %s70, %s71
      %p83 = scmp.eq.s32.totalorder %s19, 1
      %p84 = por %p82, %p83
      %p86 = scmp.ne.s32.totalorder %s71, %s85
      %p87 = scmp.eq.s32.totalorder %s19, 0
      %p88 = por %p86, %p87
      %s90 = sadd.s32 %s89, 1
      %p93 = scmp.eq.s32.totalorder %s13, 1
      %p94 = scmp.ne.s32.totalorder %s89, %s91
      %p95 = scmp.eq.s32.totalorder %s13, 0
      %p96 = por %p94, %p95
      %p97 = scmp.ne.s32.totalorder %s89, %s91
      %p98 = scmp.eq.s32.totalorder %s18, 1
      %p99 = por %p97, %p98
      %p100 = scmp.ne.s32.totalorder %s91, %s92
      %p101 = scmp.eq.s32.totalorder %s18, 0
      %p102 = por %p100, %p101
      %p103 = scmp.ne.s32.totalorder %s91, %s92
      %p104 = scmp.eq.s32.totalorder %s19, 1
      %p105 = por %p103, %p104
      %p107 = scmp.ne.s32.totalorder %s92, %s106
      %p108 = scmp.eq.s32.totalorder %s19, 0
      %p109 = por %p107, %p108
      %s111 = sadd.s32 %s110, 1
      %p114 = scmp.eq.s32.totalorder %s13, 1
      %p115 = scmp.ne.s32.totalorder %s110, %s112
      %p116 = scmp.eq.s32.totalorder %s13, 0
      %p117 = por %p115, %p116
      %p118 = scmp.ne.s32.totalorder %s110, %s112
      %p119 = scmp.eq.s32.totalorder %s18, 1
      %p120 = por %p118, %p119
      %p121 = scmp.ne.s32.totalorder %s112, %s113
      %p122 = scmp.eq.s32.totalorder %s18, 0
      %p123 = por %p121, %p122
      %p124 = scmp.ne.s32.totalorder %s112, %s113
      %p125 = scmp.eq.s32.totalorder %s19, 1
      %p126 = por %p124, %p125
      %p128 = scmp.ne.s32.totalorder %s113, %s127
      %p129 = scmp.eq.s32.totalorder %s19, 0
      %p130 = por %p128, %p129
      %s131 = ssub.s32 %s13, %s20
      %p132 = scmp.eq.s32.totalorder %s131, 0
      %s134 = sadd.s32 %s133, 1
      %s135 = scalar_select %p132, %s133, %s134
      %p138 = pneg %p132
      %p139 = scmp.eq.s32.totalorder %s13, 1
      %p140 = por %p138, %p139
      %p141 = scmp.ne.s32.totalorder %s133, %s136
      %p142 = scmp.eq.s32.totalorder %s13, 0
      %p143 = por %p141, %p142
      %p144 = scmp.ne.s32.totalorder %s133, %s136
      %p145 = scmp.eq.s32.totalorder %s18, 1
      %p146 = por %p144, %p145
      %p147 = scmp.ne.s32.totalorder %s136, %s137
      %p148 = scmp.eq.s32.totalorder %s18, 0
      %p149 = por %p147, %p148
      %p150 = scmp.ne.s32.totalorder %s136, %s137
      %p151 = scmp.eq.s32.totalorder %s19, 1
      %p152 = por %p150, %p151
      %p154 = scmp.ne.s32.totalorder %s137, %s153
      %p155 = scmp.eq.s32.totalorder %s19, 0
      %p156 = por %p154, %p155
      %p157 = scmp.le.s32.totalorder 1, %s13
      %p158 = scmp.lt.s32.totalorder %s13, 3
      %p159 = pnand %p157, %p158
      %p160 = pneg %p159
      // Predicated region
      $region9: #{cbam_forward.1} parent=5 // pred_check
        _
      $region10: #{cbam_forward.1} parent=5 // pred_check_branch
        %162 = sbr.rel (%p159) target = $region12
      $region11: #{cbam_forward.1} parent=5 // pred_region
        %s163 = ssub.s32 %s13, 1
        // Predicated region
        $region13: #{cbam_forward.1} parent=11 // pred_check
          %p164 = pneg %p60
        $region14: #{cbam_forward.1} parent=11 // pred_check_branch
          %166 = sbr.rel (%p164) target = $region16
        $region15: #{cbam_forward.1} parent=11 // pred_region
          _
        $region16: #{cbam_forward.1} parent=11 // pred_fallthru
          _
        // Predicated region
        $region17: #{cbam_forward.1} parent=11 // pred_check
          %p167 = pneg %p81
        $region18: #{cbam_forward.1} parent=11 // pred_check_branch
          %169 = sbr.rel (%p167) target = $region20
        $region19: #{cbam_forward.1} parent=11 // pred_region
          _
        $region20: #{cbam_forward.1} parent=11 // pred_fallthru
          _
        // Predicated region
        $region21: #{cbam_forward.1} parent=11 // pred_check
          %p170 = pneg %p102
        $region22: #{cbam_forward.1} parent=11 // pred_check_branch
          %172 = sbr.rel (%p170) target = $region24
        $region23: #{cbam_forward.1} parent=11 // pred_region
          %s174 = ssub.s32 16, 16
          %175 = vsyncadd [#allocation6], %s174
          %s177 = sshll.u32 %s3, 4
          %s178 = int_to_ptr.vmem [resolvable:$true] %s177
          %180 = dma.vmem_to_smem %s178, 16, [#allocation5], [#allocation6]
        $region24: #{cbam_forward.1} parent=11 // pred_fallthru
          _
        // Predicated region
        $region25: #{cbam_forward.1} parent=11 // pred_check
          %p181 = pneg %p123
        $region26: #{cbam_forward.1} parent=11 // pred_check_branch
          %183 = sbr.rel (%p181) target = $region28
        $region27: #{cbam_forward.1} parent=11 // pred_region
          _
        $region28: #{cbam_forward.1} parent=11 // pred_fallthru
          _
      $region12: #{cbam_forward.1} parent=5 // pred_fallthru
        _
      %p184 = scmp.lt.s32.totalorder %s13, 2
      // Predicated region
      $region29: #{cbam_forward.1} parent=5 // pred_check
        %p185 = pneg %p184
      $region30: #{cbam_forward.1} parent=5 // pred_check_branch
        %187 = sbr.rel (%p185) target = $region32
      $region31: #{cbam_forward.1} parent=5 // pred_region
        // Predicated region
        $region33: #{cbam_forward.1} parent=31 // pred_check
          %p188 = pneg %p33
        $region34: #{cbam_forward.1} parent=31 // pred_check_branch
          %190 = sbr.rel (%p188) target = $region36
        $region35: #{cbam_forward.1} parent=31 // pred_region
          %p191 = scmp.lt.s32.totalorder %s13, 1
          %s192 = scalar_select %p191, %s13, 1
          %s193 = smul.addr %s192, 64
          %s194 = smul.addr %s193, 8
          %s195 = scalar_lea.vmem %s0, %s194
        $region36: #{cbam_forward.1} parent=31 // pred_fallthru
          _
      $region32: #{cbam_forward.1} parent=5 // pred_fallthru
        _
      %p196 = scmp.le.s32.totalorder 1, %s13
      %p197 = scmp.lt.s32.totalorder %s13, 3
      %p198 = pnand %p196, %p197
      %p199 = pneg %p198
      // Predicated region
      $region37: #{cbam_forward.1} parent=5 // pred_check
        _
      $region38: #{cbam_forward.1} parent=5 // pred_check_branch
        %201 = sbr.rel (%p198) target = $region40
      $region39: #{cbam_forward.1} parent=5 // pred_region
        %s202 = ssub.s32 %s13, 1
        // Predicated region
        $region41: #{cbam_forward.1} parent=39 // pred_check
          %p203 = pneg %p102
        $region42: #{cbam_forward.1} parent=39 // pred_check_branch
          %205 = sbr.rel (%p203) target = $region44
        $region43: #{cbam_forward.1} parent=39 // pred_region
          %206 = dma.done [#allocation6], 16
        $region44: #{cbam_forward.1} parent=39 // pred_fallthru
          _
        %207 = sfence
        %p208 = scmp.lt.s32.totalorder %s18, 1
        %s209 = scalar_select %p208, %s18, 1
        %s210 = smul.addr %s209, 64
        %s211 = smul.addr %s210, 8
        %s212 = scalar_lea.vmem %s0, %s211
        %p213 = pneg %p39
        %p214 = pneg %p36
        %p215 = pneg %p60
        %p216 = pneg %p57
        %p217 = pneg %p81
        %p218 = pneg %p78
        %p219 = pneg %p102
        %p220 = pneg %p99
        %p221 = pneg %p123
        %p222 = pneg %p120
        %p223 = pneg %p149
        %p224 = pneg %p146
        %p225 = scmp.lt.s32.totalorder %s18, 1
        %s226 = scalar_select %p225, %s18, 1
        %s227 = smul.addr %s226, 64
        %s228 = smul.addr %s227, 8
        %s229 = scalar_lea.vmem %s5, %s228
        %p230 = scmp.lt.s32.totalorder %s18, 1
        %s231 = scalar_select %p230, %s18, 1
        %s232 = smul.addr %s231, 64
        %s233 = smul.addr %s232, 8
        %s234 = scalar_lea.vmem %s0, %s233
        %p235 = scmp.lt.s32.totalorder %s18, 1
        %s236 = scalar_select %p235, %s18, 1
        %s237 = smul.addr %s236, 64
        %s238 = smul.addr %s237, 8
        %s239 = scalar_lea.vmem %s5, %s238
        %v240 = vld [vmem:[%s234] sm:$0xff]
        %v241 = vld [vmem:[%s234 + $0x8] sm:$0xff]
        %v242 = vld [vmem:[%s234 + $0x10] sm:$0xff]
        %v243 = vld [vmem:[%s234 + $0x18] sm:$0xff]
        %v244 = vld [vmem:[%s234 + $0x20] sm:$0xff]
        %v245 = vld [vmem:[%s234 + $0x28] sm:$0xff]
        %v246 = vld [vmem:[%s234 + $0x30] sm:$0xff]
        %v247 = vld [vmem:[%s234 + $0x38] sm:$0xff]
        %v248 = vld [vmem:[%s234 + $0x40] sm:$0xff]
        %v249 = vld [vmem:[%s234 + $0x48] sm:$0xff]
        %v250 = vld [vmem:[%s234 + $0x50] sm:$0xff]
        %v251 = vld [vmem:[%s234 + $0x58] sm:$0xff]
        %v252 = vld [vmem:[%s234 + $0x60] sm:$0xff]
        %v253 = vld [vmem:[%s234 + $0x68] sm:$0xff]
        %v254 = vld [vmem:[%s234 + $0x70] sm:$0xff]
        %v255 = vld [vmem:[%s234 + $0x78] sm:$0xff]
        %v256 = vld [vmem:[%s234 + $0x80] sm:$0xff]
        %v257 = vld [vmem:[%s234 + $0x88] sm:$0xff]
        %v258 = vld [vmem:[%s234 + $0x90] sm:$0xff]
        %v259 = vld [vmem:[%s234 + $0x98] sm:$0xff]
        %v260 = vld [vmem:[%s234 + $0xa0] sm:$0xff]
        %v261 = vld [vmem:[%s234 + $0xa8] sm:$0xff]
        %v262 = vld [vmem:[%s234 + $0xb0] sm:$0xff]
        %v263 = vld [vmem:[%s234 + $0xb8] sm:$0xff]
        %v264 = vld [vmem:[%s234 + $0xc0] sm:$0xff]
        %v265 = vld [vmem:[%s234 + $0xc8] sm:$0xff]
        %v266 = vld [vmem:[%s234 + $0xd0] sm:$0xff]
        %v267 = vld [vmem:[%s234 + $0xd8] sm:$0xff]
        %v268 = vld [vmem:[%s234 + $0xe0] sm:$0xff]
        %v269 = vld [vmem:[%s234 + $0xe8] sm:$0xff]
        %v270 = vld [vmem:[%s234 + $0xf0] sm:$0xff]
        %v271 = vld [vmem:[%s234 + $0xf8] sm:$0xff]
        %v272 = vld [vmem:[%s234 + $0x100] sm:$0xff]
        %v273 = vld [vmem:[%s234 + $0x108] sm:$0xff]
        %v274 = vld [vmem:[%s234 + $0x110] sm:$0xff]
        %v275 = vld [vmem:[%s234 + $0x118] sm:$0xff]
        %v276 = vld [vmem:[%s234 + $0x120] sm:$0xff]
        %v277 = vld [vmem:[%s234 + $0x128] sm:$0xff]
        %v278 = vld [vmem:[%s234 + $0x130] sm:$0xff]
        %v279 = vld [vmem:[%s234 + $0x138] sm:$0xff]
        %v280 = vld [vmem:[%s234 + $0x140] sm:$0xff]
        %v281 = vld [vmem:[%s234 + $0x148] sm:$0xff]
        %v282 = vld [vmem:[%s234 + $0x150] sm:$0xff]
        %v283 = vld [vmem:[%s234 + $0x158] sm:$0xff]
        %v284 = vld [vmem:[%s234 + $0x160] sm:$0xff]
        %v285 = vld [vmem:[%s234 + $0x168] sm:$0xff]
        %v286 = vld [vmem:[%s234 + $0x170] sm:$0xff]
        %v287 = vld [vmem:[%s234 + $0x178] sm:$0xff]
        %v288 = vld [vmem:[%s234 + $0x180] sm:$0xff]
        %v289 = vld [vmem:[%s234 + $0x188] sm:$0xff]
        %v290 = vld [vmem:[%s234 + $0x190] sm:$0xff]
        %v291 = vld [vmem:[%s234 + $0x198] sm:$0xff]
        %v292 = vld [vmem:[%s234 + $0x1a0] sm:$0xff]
        %v293 = vld [vmem:[%s234 + $0x1a8] sm:$0xff]
        %v294 = vld [vmem:[%s234 + $0x1b0] sm:$0xff]
        %v295 = vld [vmem:[%s234 + $0x1b8] sm:$0xff]
        %v296 = vld [vmem:[%s234 + $0x1c0] sm:$0xff]
        %v297 = vld [vmem:[%s234 + $0x1c8] sm:$0xff]
        %v298 = vld [vmem:[%s234 + $0x1d0] sm:$0xff]
        %v299 = vld [vmem:[%s234 + $0x1d8] sm:$0xff]
        %v300 = vld [vmem:[%s234 + $0x1e0] sm:$0xff]
        %v301 = vld [vmem:[%s234 + $0x1e8] sm:$0xff]
        %v302 = vld [vmem:[%s234 + $0x1f0] sm:$0xff]
        %v303 = vld [vmem:[%s234 + $0x1f8] sm:$0xff]
        %vm304 = vcmask 130048
        %v305 = vsel %vm304, %v240, 0.0
        %306 = vadd.xlane.f32.xlu0 %v305
        %v307 = vpop.xlane.xlu0 %306
        %v308 = vsel %vm304, %v241, 0.0
        %309 = vadd.xlane.f32.xlu0 %v308
        %v310 = vpop.xlane.xlu0 %309
        %v311 = vsel %vm304, %v242, 0.0
        %312 = vadd.xlane.f32.xlu0 %v311
        %v313 = vpop.xlane.xlu0 %312
        %v314 = vsel %vm304, %v243, 0.0
        %315 = vadd.xlane.f32.xlu0 %v314
        %v316 = vpop.xlane.xlu0 %315
        %v317 = vsel %vm304, %v244, 0.0
        %318 = vadd.xlane.f32.xlu0 %v317
        %v319 = vpop.xlane.xlu0 %318
        %v320 = vsel %vm304, %v245, 0.0
        %321 = vadd.xlane.f32.xlu0 %v320
        %v322 = vpop.xlane.xlu0 %321
        %v323 = vsel %vm304, %v246, 0.0
        %324 = vadd.xlane.f32.xlu0 %v323
        %v325 = vpop.xlane.xlu0 %324
        %v326 = vsel %vm304, %v247, 0.0
        %327 = vadd.xlane.f32.xlu0 %v326
        %v328 = vpop.xlane.xlu0 %327
        %v329 = vsel %vm304, %v248, 0.0
        %330 = vadd.xlane.f32.xlu0 %v329
        %v331 = vpop.xlane.xlu0 %330
        %v332 = vsel %vm304, %v249, 0.0
        %333 = vadd.xlane.f32.xlu0 %v332
        %v334 = vpop.xlane.xlu0 %333
        %v335 = vsel %vm304, %v250, 0.0
        %336 = vadd.xlane.f32.xlu0 %v335
        %v337 = vpop.xlane.xlu0 %336
        %v338 = vsel %vm304, %v251, 0.0
        %339 = vadd.xlane.f32.xlu0 %v338
        %v340 = vpop.xlane.xlu0 %339
        %v341 = vsel %vm304, %v252, 0.0
        %342 = vadd.xlane.f32.xlu0 %v341
        %v343 = vpop.xlane.xlu0 %342
        %v344 = vsel %vm304, %v253, 0.0
        %345 = vadd.xlane.f32.xlu0 %v344
        %v346 = vpop.xlane.xlu0 %345
        %v347 = vsel %vm304, %v254, 0.0
        %348 = vadd.xlane.f32.xlu0 %v347
        %v349 = vpop.xlane.xlu0 %348
        %v350 = vsel %vm304, %v255, 0.0
        %351 = vadd.xlane.f32.xlu0 %v350
        %v352 = vpop.xlane.xlu0 %351
        %v353 = vsel %vm304, %v256, 0.0
        %354 = vadd.xlane.f32.xlu0 %v353
        %v355 = vpop.xlane.xlu0 %354
        %v356 = vsel %vm304, %v257, 0.0
        %357 = vadd.xlane.f32.xlu0 %v356
        %v358 = vpop.xlane.xlu0 %357
        %v359 = vsel %vm304, %v258, 0.0
        %360 = vadd.xlane.f32.xlu0 %v359
        %v361 = vpop.xlane.xlu0 %360
        %v362 = vsel %vm304, %v259, 0.0
        %363 = vadd.xlane.f32.xlu0 %v362
        %v364 = vpop.xlane.xlu0 %363
        %v365 = vsel %vm304, %v260, 0.0
        %366 = vadd.xlane.f32.xlu0 %v365
        %v367 = vpop.xlane.xlu0 %366
        %v368 = vsel %vm304, %v261, 0.0
        %369 = vadd.xlane.f32.xlu0 %v368
        %v370 = vpop.xlane.xlu0 %369
        %v371 = vsel %vm304, %v262, 0.0
        %372 = vadd.xlane.f32.xlu0 %v371
        %v373 = vpop.xlane.xlu0 %372
        %v374 = vsel %vm304, %v263, 0.0
        %375 = vadd.xlane.f32.xlu0 %v374
        %v376 = vpop.xlane.xlu0 %375
        %v377 = vsel %vm304, %v264, 0.0
        %378 = vadd.xlane.f32.xlu0 %v377
        %v379 = vpop.xlane.xlu0 %378
        %v380 = vsel %vm304, %v265, 0.0
        %381 = vadd.xlane.f32.xlu0 %v380
        %v382 = vpop.xlane.xlu0 %381
        %v383 = vsel %vm304, %v266, 0.0
        %384 = vadd.xlane.f32.xlu0 %v383
        %v385 = vpop.xlane.xlu0 %384
        %v386 = vsel %vm304, %v267, 0.0
        %387 = vadd.xlane.f32.xlu0 %v386
        %v388 = vpop.xlane.xlu0 %387
        %v389 = vsel %vm304, %v268, 0.0
        %390 = vadd.xlane.f32.xlu0 %v389
        %v391 = vpop.xlane.xlu0 %390
        %v392 = vsel %vm304, %v269, 0.0
        %393 = vadd.xlane.f32.xlu0 %v392
        %v394 = vpop.xlane.xlu0 %393
        %v395 = vsel %vm304, %v270, 0.0
        %396 = vadd.xlane.f32.xlu0 %v395
        %v397 = vpop.xlane.xlu0 %396
        %v398 = vsel %vm304, %v271, 0.0
        %399 = vadd.xlane.f32.xlu0 %v398
        %v400 = vpop.xlane.xlu0 %399
        %v401 = vsel %vm304, %v272, 0.0
        %402 = vadd.xlane.f32.xlu0 %v401
        %v403 = vpop.xlane.xlu0 %402
        %v404 = vsel %vm304, %v273, 0.0
        %405 = vadd.xlane.f32.xlu0 %v404
        %v406 = vpop.xlane.xlu0 %405
        %v407 = vsel %vm304, %v274, 0.0
        %408 = vadd.xlane.f32.xlu0 %v407
        %v409 = vpop.xlane.xlu0 %408
        %v410 = vsel %vm304, %v275, 0.0
        %411 = vadd.xlane.f32.xlu0 %v410
        %v412 = vpop.xlane.xlu0 %411
        %v413 = vsel %vm304, %v276, 0.0
        %414 = vadd.xlane.f32.xlu0 %v413
        %v415 = vpop.xlane.xlu0 %414
        %v416 = vsel %vm304, %v277, 0.0
        %417 = vadd.xlane.f32.xlu0 %v416
        %v418 = vpop.xlane.xlu0 %417
        %v419 = vsel %vm304, %v278, 0.0
        %420 = vadd.xlane.f32.xlu0 %v419
        %v421 = vpop.xlane.xlu0 %420
        %v422 = vsel %vm304, %v279, 0.0
        %423 = vadd.xlane.f32.xlu0 %v422
        %v424 = vpop.xlane.xlu0 %423
        %v425 = vsel %vm304, %v280, 0.0
        %426 = vadd.xlane.f32.xlu0 %v425
        %v427 = vpop.xlane.xlu0 %426
        %v428 = vsel %vm304, %v281, 0.0
        %429 = vadd.xlane.f32.xlu0 %v428
        %v430 = vpop.xlane.xlu0 %429
        %v431 = vsel %vm304, %v282, 0.0
        %432 = vadd.xlane.f32.xlu0 %v431
        %v433 = vpop.xlane.xlu0 %432
        %v434 = vsel %vm304, %v283, 0.0
        %435 = vadd.xlane.f32.xlu0 %v434
        %v436 = vpop.xlane.xlu0 %435
        %v437 = vsel %vm304, %v284, 0.0
        %438 = vadd.xlane.f32.xlu0 %v437
        %v439 = vpop.xlane.xlu0 %438
        %v440 = vsel %vm304, %v285, 0.0
        %441 = vadd.xlane.f32.xlu0 %v440
        %v442 = vpop.xlane.xlu0 %441
        %v443 = vsel %vm304, %v286, 0.0
        %444 = vadd.xlane.f32.xlu0 %v443
        %v445 = vpop.xlane.xlu0 %444
        %v446 = vsel %vm304, %v287, 0.0
        %447 = vadd.xlane.f32.xlu0 %v446
        %v448 = vpop.xlane.xlu0 %447
        %v449 = vsel %vm304, %v288, 0.0
        %450 = vadd.xlane.f32.xlu0 %v449
        %v451 = vpop.xlane.xlu0 %450
        %v452 = vsel %vm304, %v289, 0.0
        %453 = vadd.xlane.f32.xlu0 %v452
        %v454 = vpop.xlane.xlu0 %453
        %v455 = vsel %vm304, %v290, 0.0
        %456 = vadd.xlane.f32.xlu0 %v455
        %v457 = vpop.xlane.xlu0 %456
        %v458 = vsel %vm304, %v291, 0.0
        %459 = vadd.xlane.f32.xlu0 %v458
        %v460 = vpop.xlane.xlu0 %459
        %v461 = vsel %vm304, %v292, 0.0
        %462 = vadd.xlane.f32.xlu0 %v461
        %v463 = vpop.xlane.xlu0 %462
        %v464 = vsel %vm304, %v293, 0.0
        %465 = vadd.xlane.f32.xlu0 %v464
        %v466 = vpop.xlane.xlu0 %465
        %v467 = vsel %vm304, %v294, 0.0
        %468 = vadd.xlane.f32.xlu0 %v467
        %v469 = vpop.xlane.xlu0 %468
        %v470 = vsel %vm304, %v295, 0.0
        %471 = vadd.xlane.f32.xlu0 %v470
        %v472 = vpop.xlane.xlu0 %471
        %v473 = vsel %vm304, %v296, 0.0
        %474 = vadd.xlane.f32.xlu0 %v473
        %v475 = vpop.xlane.xlu0 %474
        %v476 = vsel %vm304, %v297, 0.0
        %477 = vadd.xlane.f32.xlu0 %v476
        %v478 = vpop.xlane.xlu0 %477
        %v479 = vsel %vm304, %v298, 0.0
        %480 = vadd.xlane.f32.xlu0 %v479
        %v481 = vpop.xlane.xlu0 %480
        %v482 = vsel %vm304, %v299, 0.0
        %483 = vadd.xlane.f32.xlu0 %v482
        %v484 = vpop.xlane.xlu0 %483
        %v485 = vsel %vm304, %v300, 0.0
        %486 = vadd.xlane.f32.xlu0 %v485
        %v487 = vpop.xlane.xlu0 %486
        %v488 = vsel %vm304, %v301, 0.0
        %489 = vadd.xlane.f32.xlu0 %v488
        %v490 = vpop.xlane.xlu0 %489
        %v491 = vsel %vm304, %v302, 0.0
        %492 = vadd.xlane.f32.xlu0 %v491
        %v493 = vpop.xlane.xlu0 %492
        %v494 = vsel %vm304, %v303, 0.0
        %495 = vadd.xlane.f32.xlu0 %v494
        %v496 = vpop.xlane.xlu0 %495
        %v497 = vadd.f32 %v307, %v310
        %v498 = vrot.slane %v497, 4
        %v499 = vadd.f32 %v497, %v498
        %v500 = vrot.slane %v499, 2
        %v501 = vadd.f32 %v499, %v500
        %v502 = vrot.slane %v501, 1
        %v503 = vadd.f32 %v501, %v502
        %v504 = vadd.f32 %v313, %v316
        %v505 = vrot.slane %v504, 4
        %v506 = vadd.f32 %v504, %v505
        %v507 = vrot.slane %v506, 2
        %v508 = vadd.f32 %v506, %v507
        %v509 = vrot.slane %v508, 1
        %v510 = vadd.f32 %v508, %v509
        %v511 = vadd.f32 %v319, %v322
        %v512 = vrot.slane %v511, 4
        %v513 = vadd.f32 %v511, %v512
        %v514 = vrot.slane %v513, 2
        %v515 = vadd.f32 %v513, %v514
        %v516 = vrot.slane %v515, 1
        %v517 = vadd.f32 %v515, %v516
        %v518 = vadd.f32 %v325, %v328
        %v519 = vrot.slane %v518, 4
        %v520 = vadd.f32 %v518, %v519
        %v521 = vrot.slane %v520, 2
        %v522 = vadd.f32 %v520, %v521
        %v523 = vrot.slane %v522, 1
        %v524 = vadd.f32 %v522, %v523
        %v525 = vadd.f32 %v331, %v334
        %v526 = vrot.slane %v525, 4
        %v527 = vadd.f32 %v525, %v526
        %v528 = vrot.slane %v527, 2
        %v529 = vadd.f32 %v527, %v528
        %v530 = vrot.slane %v529, 1
        %v531 = vadd.f32 %v529, %v530
        %v532 = vadd.f32 %v337, %v340
        %v533 = vrot.slane %v532, 4
        %v534 = vadd.f32 %v532, %v533
        %v535 = vrot.slane %v534, 2
        %v536 = vadd.f32 %v534, %v535
        %v537 = vrot.slane %v536, 1
        %v538 = vadd.f32 %v536, %v537
        %v539 = vadd.f32 %v343, %v346
        %v540 = vrot.slane %v539, 4
        %v541 = vadd.f32 %v539, %v540
        %v542 = vrot.slane %v541, 2
        %v543 = vadd.f32 %v541, %v542
        %v544 = vrot.slane %v543, 1
        %v545 = vadd.f32 %v543, %v544
        %v546 = vadd.f32 %v349, %v352
        %v547 = vrot.slane %v546, 4
        %v548 = vadd.f32 %v546, %v547
        %v549 = vrot.slane %v548, 2
        %v550 = vadd.f32 %v548, %v549
        %v551 = vrot.slane %v550, 1
        %v552 = vadd.f32 %v550, %v551
        %v553 = vadd.f32 %v355, %v358
        %v554 = vrot.slane %v553, 4
        %v555 = vadd.f32 %v553, %v554
        %v556 = vrot.slane %v555, 2
        %v557 = vadd.f32 %v555, %v556
        %v558 = vrot.slane %v557, 1
        %v559 = vadd.f32 %v557, %v558
        %v560 = vadd.f32 %v361, %v364
        %v561 = vrot.slane %v560, 4
        %v562 = vadd.f32 %v560, %v561
        %v563 = vrot.slane %v562, 2
        %v564 = vadd.f32 %v562, %v563
        %v565 = vrot.slane %v564, 1
        %v566 = vadd.f32 %v564, %v565
        %v567 = vadd.f32 %v367, %v370
        %v568 = vrot.slane %v567, 4
        %v569 = vadd.f32 %v567, %v568
        %v570 = vrot.slane %v569, 2
        %v571 = vadd.f32 %v569, %v570
        %v572 = vrot.slane %v571, 1
        %v573 = vadd.f32 %v571, %v572
        %v574 = vadd.f32 %v373, %v376
        %v575 = vrot.slane %v574, 4
        %v576 = vadd.f32 %v574, %v575
        %v577 = vrot.slane %v576, 2
        %v578 = vadd.f32 %v576, %v577
        %v579 = vrot.slane %v578, 1
        %v580 = vadd.f32 %v578, %v579
        %v581 = vadd.f32 %v379, %v382
        %v582 = vrot.slane %v581, 4
        %v583 = vadd.f32 %v581, %v582
        %v584 = vrot.slane %v583, 2
        %v585 = vadd.f32 %v583, %v584
        %v586 = vrot.slane %v585, 1
        %v587 = vadd.f32 %v585, %v586
        %v588 = vadd.f32 %v385, %v388
        %v589 = vrot.slane %v588, 4
        %v590 = vadd.f32 %v588, %v589
        %v591 = vrot.slane %v590, 2
        %v592 = vadd.f32 %v590, %v591
        %v593 = vrot.slane %v592, 1
        %v594 = vadd.f32 %v592, %v593
        %v595 = vadd.f32 %v391, %v394
        %v596 = vrot.slane %v595, 4
        %v597 = vadd.f32 %v595, %v596
        %v598 = vrot.slane %v597, 2
        %v599 = vadd.f32 %v597, %v598
        %v600 = vrot.slane %v599, 1
        %v601 = vadd.f32 %v599, %v600
        %v602 = vadd.f32 %v397, %v400
        %v603 = vrot.slane %v602, 4
        %v604 = vadd.f32 %v602, %v603
        %v605 = vrot.slane %v604, 2
        %v606 = vadd.f32 %v604, %v605
        %v607 = vrot.slane %v606, 1
        %v608 = vadd.f32 %v606, %v607
        %v609 = vadd.f32 %v403, %v406
        %v610 = vrot.slane %v609, 4
        %v611 = vadd.f32 %v609, %v610
        %v612 = vrot.slane %v611, 2
        %v613 = vadd.f32 %v611, %v612
        %v614 = vrot.slane %v613, 1
        %v615 = vadd.f32 %v613, %v614
        %v616 = vadd.f32 %v409, %v412
        %v617 = vrot.slane %v616, 4
        %v618 = vadd.f32 %v616, %v617
        %v619 = vrot.slane %v618, 2
        %v620 = vadd.f32 %v618, %v619
        %v621 = vrot.slane %v620, 1
        %v622 = vadd.f32 %v620, %v621
        %v623 = vadd.f32 %v415, %v418
        %v624 = vrot.slane %v623, 4
        %v625 = vadd.f32 %v623, %v624
        %v626 = vrot.slane %v625, 2
        %v627 = vadd.f32 %v625, %v626
        %v628 = vrot.slane %v627, 1
        %v629 = vadd.f32 %v627, %v628
        %v630 = vadd.f32 %v421, %v424
        %v631 = vrot.slane %v630, 4
        %v632 = vadd.f32 %v630, %v631
        %v633 = vrot.slane %v632, 2
        %v634 = vadd.f32 %v632, %v633
        %v635 = vrot.slane %v634, 1
        %v636 = vadd.f32 %v634, %v635
        %v637 = vadd.f32 %v427, %v430
        %v638 = vrot.slane %v637, 4
        %v639 = vadd.f32 %v637, %v638
        %v640 = vrot.slane %v639, 2
        %v641 = vadd.f32 %v639, %v640
        %v642 = vrot.slane %v641, 1
        %v643 = vadd.f32 %v641, %v642
        %v644 = vadd.f32 %v433, %v436
        %v645 = vrot.slane %v644, 4
        %v646 = vadd.f32 %v644, %v645
        %v647 = vrot.slane %v646, 2
        %v648 = vadd.f32 %v646, %v647
        %v649 = vrot.slane %v648, 1
        %v650 = vadd.f32 %v648, %v649
        %v651 = vadd.f32 %v439, %v442
        %v652 = vrot.slane %v651, 4
        %v653 = vadd.f32 %v651, %v652
        %v654 = vrot.slane %v653, 2
        %v655 = vadd.f32 %v653, %v654
        %v656 = vrot.slane %v655, 1
        %v657 = vadd.f32 %v655, %v656
        %v658 = vadd.f32 %v445, %v448
        %v659 = vrot.slane %v658, 4
        %v660 = vadd.f32 %v658, %v659
        %v661 = vrot.slane %v660, 2
        %v662 = vadd.f32 %v660, %v661
        %v663 = vrot.slane %v662, 1
        %v664 = vadd.f32 %v662, %v663
        %v665 = vadd.f32 %v451, %v454
        %v666 = vrot.slane %v665, 4
        %v667 = vadd.f32 %v665, %v666
        %v668 = vrot.slane %v667, 2
        %v669 = vadd.f32 %v667, %v668
        %v670 = vrot.slane %v669, 1
        %v671 = vadd.f32 %v669, %v670
        %v672 = vadd.f32 %v457, %v460
        %v673 = vrot.slane %v672, 4
        %v674 = vadd.f32 %v672, %v673
        %v675 = vrot.slane %v674, 2
        %v676 = vadd.f32 %v674, %v675
        %v677 = vrot.slane %v676, 1
        %v678 = vadd.f32 %v676, %v677
        %v679 = vadd.f32 %v463, %v466
        %v680 = vrot.slane %v679, 4
        %v681 = vadd.f32 %v679, %v680
        %v682 = vrot.slane %v681, 2
        %v683 = vadd.f32 %v681, %v682
        %v684 = vrot.slane %v683, 1
        %v685 = vadd.f32 %v683, %v684
        %v686 = vadd.f32 %v469, %v472
        %v687 = vrot.slane %v686, 4
        %v688 = vadd.f32 %v686, %v687
        %v689 = vrot.slane %v688, 2
        %v690 = vadd.f32 %v688, %v689
        %v691 = vrot.slane %v690, 1
        %v692 = vadd.f32 %v690, %v691
        %v693 = vadd.f32 %v475, %v478
        %v694 = vrot.slane %v693, 4
        %v695 = vadd.f32 %v693, %v694
        %v696 = vrot.slane %v695, 2
        %v697 = vadd.f32 %v695, %v696
        %v698 = vrot.slane %v697, 1
        %v699 = vadd.f32 %v697, %v698
        %v700 = vadd.f32 %v481, %v484
        %v701 = vrot.slane %v700, 4
        %v702 = vadd.f32 %v700, %v701
        %v703 = vrot.slane %v702, 2
        %v704 = vadd.f32 %v702, %v703
        %v705 = vrot.slane %v704, 1
        %v706 = vadd.f32 %v704, %v705
        %v707 = vadd.f32 %v487, %v490
        %v708 = vrot.slane %v707, 4
        %v709 = vadd.f32 %v707, %v708
        %v710 = vrot.slane %v709, 2
        %v711 = vadd.f32 %v709, %v710
        %v712 = vrot.slane %v711, 1
        %v713 = vadd.f32 %v711, %v712
        %v714 = vadd.f32 %v493, %v496
        %v715 = vrot.slane %v714, 4
        %v716 = vadd.f32 %v714, %v715
        %v717 = vrot.slane %v716, 2
        %v718 = vadd.f32 %v716, %v717
        %v719 = vrot.slane %v718, 1
        %v720 = vadd.f32 %v718, %v719
        %v721 = vmul.f32 %v503, 0.00390625
        %v722 = vmul.f32 %v510, 0.00390625
        %v723 = vmul.f32 %v517, 0.00390625
        %v724 = vmul.f32 %v524, 0.00390625
        %v725 = vmul.f32 %v531, 0.00390625
        %v726 = vmul.f32 %v538, 0.00390625
        %v727 = vmul.f32 %v545, 0.00390625
        %v728 = vmul.f32 %v552, 0.00390625
        %v729 = vmul.f32 %v559, 0.00390625
        %v730 = vmul.f32 %v566, 0.00390625
        %v731 = vmul.f32 %v573, 0.00390625
        %v732 = vmul.f32 %v580, 0.00390625
        %v733 = vmul.f32 %v587, 0.00390625
        %v734 = vmul.f32 %v594, 0.00390625
        %v735 = vmul.f32 %v601, 0.00390625
        %v736 = vmul.f32 %v608, 0.00390625
        %v737 = vmul.f32 %v615, 0.00390625
        %v738 = vmul.f32 %v622, 0.00390625
        %v739 = vmul.f32 %v629, 0.00390625
        %v740 = vmul.f32 %v636, 0.00390625
        %v741 = vmul.f32 %v643, 0.00390625
        %v742 = vmul.f32 %v650, 0.00390625
        %v743 = vmul.f32 %v657, 0.00390625
        %v744 = vmul.f32 %v664, 0.00390625
        %v745 = vmul.f32 %v671, 0.00390625
        %v746 = vmul.f32 %v678, 0.00390625
        %v747 = vmul.f32 %v685, 0.00390625
        %v748 = vmul.f32 %v692, 0.00390625
        %v749 = vmul.f32 %v699, 0.00390625
        %v750 = vmul.f32 %v706, 0.00390625
        %v751 = vmul.f32 %v713, 0.00390625
        %v752 = vmul.f32 %v720, 0.00390625
        %v753 = vsel %vm304, %v240, -inf
        %754 = vmax.xlane.f32.xlu0 %v753
        %v755 = vpop.xlane.xlu0 %754
        %v756 = vsel %vm304, %v241, -inf
        %757 = vmax.xlane.f32.xlu0 %v756
        %v758 = vpop.xlane.xlu0 %757
        %v759 = vsel %vm304, %v242, -inf
        %760 = vmax.xlane.f32.xlu0 %v759
        %v761 = vpop.xlane.xlu0 %760
        %v762 = vsel %vm304, %v243, -inf
        %763 = vmax.xlane.f32.xlu0 %v762
        %v764 = vpop.xlane.xlu0 %763
        %v765 = vsel %vm304, %v244, -inf
        %766 = vmax.xlane.f32.xlu0 %v765
        %v767 = vpop.xlane.xlu0 %766
        %v768 = vsel %vm304, %v245, -inf
        %769 = vmax.xlane.f32.xlu0 %v768
        %v770 = vpop.xlane.xlu0 %769
        %v771 = vsel %vm304, %v246, -inf
        %772 = vmax.xlane.f32.xlu0 %v771
        %v773 = vpop.xlane.xlu0 %772
        %v774 = vsel %vm304, %v247, -inf
        %775 = vmax.xlane.f32.xlu0 %v774
        %v776 = vpop.xlane.xlu0 %775
        %v777 = vsel %vm304, %v248, -inf
        %778 = vmax.xlane.f32.xlu0 %v777
        %v779 = vpop.xlane.xlu0 %778
        %v780 = vsel %vm304, %v249, -inf
        %781 = vmax.xlane.f32.xlu0 %v780
        %v782 = vpop.xlane.xlu0 %781
        %v783 = vsel %vm304, %v250, -inf
        %784 = vmax.xlane.f32.xlu0 %v783
        %v785 = vpop.xlane.xlu0 %784
        %v786 = vsel %vm304, %v251, -inf
        %787 = vmax.xlane.f32.xlu0 %v786
        %v788 = vpop.xlane.xlu0 %787
        %v789 = vsel %vm304, %v252, -inf
        %790 = vmax.xlane.f32.xlu0 %v789
        %v791 = vpop.xlane.xlu0 %790
        %v792 = vsel %vm304, %v253, -inf
        %793 = vmax.xlane.f32.xlu0 %v792
        %v794 = vpop.xlane.xlu0 %793
        %v795 = vsel %vm304, %v254, -inf
        %796 = vmax.xlane.f32.xlu0 %v795
        %v797 = vpop.xlane.xlu0 %796
        %v798 = vsel %vm304, %v255, -inf
        %799 = vmax.xlane.f32.xlu0 %v798
        %v800 = vpop.xlane.xlu0 %799
        %v801 = vsel %vm304, %v256, -inf
        %802 = vmax.xlane.f32.xlu0 %v801
        %v803 = vpop.xlane.xlu0 %802
        %v804 = vsel %vm304, %v257, -inf
        %805 = vmax.xlane.f32.xlu0 %v804
        %v806 = vpop.xlane.xlu0 %805
        %v807 = vsel %vm304, %v258, -inf
        %808 = vmax.xlane.f32.xlu0 %v807
        %v809 = vpop.xlane.xlu0 %808
        %v810 = vsel %vm304, %v259, -inf
        %811 = vmax.xlane.f32.xlu0 %v810
        %v812 = vpop.xlane.xlu0 %811
        %v813 = vsel %vm304, %v260, -inf
        %814 = vmax.xlane.f32.xlu0 %v813
        %v815 = vpop.xlane.xlu0 %814
        %v816 = vsel %vm304, %v261, -inf
        %817 = vmax.xlane.f32.xlu0 %v816
        %v818 = vpop.xlane.xlu0 %817
        %v819 = vsel %vm304, %v262, -inf
        %820 = vmax.xlane.f32.xlu0 %v819
        %v821 = vpop.xlane.xlu0 %820
        %v822 = vsel %vm304, %v263, -inf
        %823 = vmax.xlane.f32.xlu0 %v822
        %v824 = vpop.xlane.xlu0 %823
        %v825 = vsel %vm304, %v264, -inf
        %826 = vmax.xlane.f32.xlu0 %v825
        %v827 = vpop.xlane.xlu0 %826
        %v828 = vsel %vm304, %v265, -inf
        %829 = vmax.xlane.f32.xlu0 %v828
        %v830 = vpop.xlane.xlu0 %829
        %v831 = vsel %vm304, %v266, -inf
        %832 = vmax.xlane.f32.xlu0 %v831
        %v833 = vpop.xlane.xlu0 %832
        %v834 = vsel %vm304, %v267, -inf
        %835 = vmax.xlane.f32.xlu0 %v834
        %v836 = vpop.xlane.xlu0 %835
        %v837 = vsel %vm304, %v268, -inf
        %838 = vmax.xlane.f32.xlu0 %v837
        %v839 = vpop.xlane.xlu0 %838
        %v840 = vsel %vm304, %v269, -inf
        %841 = vmax.xlane.f32.xlu0 %v840
        %v842 = vpop.xlane.xlu0 %841
        %v843 = vsel %vm304, %v270, -inf
        %844 = vmax.xlane.f32.xlu0 %v843
        %v845 = vpop.xlane.xlu0 %844
        %v846 = vsel %vm304, %v271, -inf
        %847 = vmax.xlane.f32.xlu0 %v846
        %v848 = vpop.xlane.xlu0 %847
        %v849 = vsel %vm304, %v272, -inf
        %850 = vmax.xlane.f32.xlu0 %v849
        %v851 = vpop.xlane.xlu0 %850
        %v852 = vsel %vm304, %v273, -inf
        %853 = vmax.xlane.f32.xlu0 %v852
        %v854 = vpop.xlane.xlu0 %853
        %v855 = vsel %vm304, %v274, -inf
        %856 = vmax.xlane.f32.xlu0 %v855
        %v857 = vpop.xlane.xlu0 %856
        %v858 = vsel %vm304, %v275, -inf
        %859 = vmax.xlane.f32.xlu0 %v858
        %v860 = vpop.xlane.xlu0 %859
        %v861 = vsel %vm304, %v276, -inf
        %862 = vmax.xlane.f32.xlu0 %v861
        %v863 = vpop.xlane.xlu0 %862
        %v864 = vsel %vm304, %v277, -inf
        %865 = vmax.xlane.f32.xlu0 %v864
        %v866 = vpop.xlane.xlu0 %865
        %v867 = vsel %vm304, %v278, -inf
        %868 = vmax.xlane.f32.xlu0 %v867
        %v869 = vpop.xlane.xlu0 %868
        %v870 = vsel %vm304, %v279, -inf
        %871 = vmax.xlane.f32.xlu0 %v870
        %v872 = vpop.xlane.xlu0 %871
        %v873 = vsel %vm304, %v280, -inf
        %874 = vmax.xlane.f32.xlu0 %v873
        %v875 = vpop.xlane.xlu0 %874
        %v876 = vsel %vm304, %v281, -inf
        %877 = vmax.xlane.f32.xlu0 %v876
        %v878 = vpop.xlane.xlu0 %877
        %v879 = vsel %vm304, %v282, -inf
        %880 = vmax.xlane.f32.xlu0 %v879
        %v881 = vpop.xlane.xlu0 %880
        %v882 = vsel %vm304, %v283, -inf
        %883 = vmax.xlane.f32.xlu0 %v882
        %v884 = vpop.xlane.xlu0 %883
        %v885 = vsel %vm304, %v284, -inf
        %886 = vmax.xlane.f32.xlu0 %v885
        %v887 = vpop.xlane.xlu0 %886
        %v888 = vsel %vm304, %v285, -inf
        %889 = vmax.xlane.f32.xlu0 %v888
        %v890 = vpop.xlane.xlu0 %889
        %v891 = vsel %vm304, %v286, -inf
        %892 = vmax.xlane.f32.xlu0 %v891
        %v893 = vpop.xlane.xlu0 %892
        %v894 = vsel %vm304, %v287, -inf
        %895 = vmax.xlane.f32.xlu0 %v894
        %v896 = vpop.xlane.xlu0 %895
        %v897 = vsel %vm304, %v288, -inf
        %898 = vmax.xlane.f32.xlu0 %v897
        %v899 = vpop.xlane.xlu0 %898
        %v900 = vsel %vm304, %v289, -inf
        %901 = vmax.xlane.f32.xlu0 %v900
        %v902 = vpop.xlane.xlu0 %901
        %v903 = vsel %vm304, %v290, -inf
        %904 = vmax.xlane.f32.xlu0 %v903
        %v905 = vpop.xlane.xlu0 %904
        %v906 = vsel %vm304, %v291, -inf
        %907 = vmax.xlane.f32.xlu0 %v906
        %v908 = vpop.xlane.xlu0 %907
        %v909 = vsel %vm304, %v292, -inf
        %910 = vmax.xlane.f32.xlu0 %v909
        %v911 = vpop.xlane.xlu0 %910
        %v912 = vsel %vm304, %v293, -inf
        %913 = vmax.xlane.f32.xlu0 %v912
        %v914 = vpop.xlane.xlu0 %913
        %v915 = vsel %vm304, %v294, -inf
        %916 = vmax.xlane.f32.xlu0 %v915
        %v917 = vpop.xlane.xlu0 %916
        %v918 = vsel %vm304, %v295, -inf
        %919 = vmax.xlane.f32.xlu0 %v918
        %v920 = vpop.xlane.xlu0 %919
        %v921 = vsel %vm304, %v296, -inf
        %922 = vmax.xlane.f32.xlu0 %v921
        %v923 = vpop.xlane.xlu0 %922
        %v924 = vsel %vm304, %v297, -inf
        %925 = vmax.xlane.f32.xlu0 %v924
        %v926 = vpop.xlane.xlu0 %925
        %v927 = vsel %vm304, %v298, -inf
        %928 = vmax.xlane.f32.xlu0 %v927
        %v929 = vpop.xlane.xlu0 %928
        %v930 = vsel %vm304, %v299, -inf
        %931 = vmax.xlane.f32.xlu0 %v930
        %v932 = vpop.xlane.xlu0 %931
        %v933 = vsel %vm304, %v300, -inf
        %934 = vmax.xlane.f32.xlu0 %v933
        %v935 = vpop.xlane.xlu0 %934
        %v936 = vsel %vm304, %v301, -inf
        %937 = vmax.xlane.f32.xlu0 %v936
        %v938 = vpop.xlane.xlu0 %937
        %v939 = vsel %vm304, %v302, -inf
        %940 = vmax.xlane.f32.xlu0 %v939
        %v941 = vpop.xlane.xlu0 %940
        %v942 = vsel %vm304, %v303, -inf
        %943 = vmax.xlane.f32.xlu0 %v942
        %v944 = vpop.xlane.xlu0 %943
        %v945 = vmax.f32 %v755, %v758
        %v946 = vrot.slane %v945, 4
        %v947 = vmax.f32 %v945, %v946
        %v948 = vrot.slane %v947, 2
        %v949 = vmax.f32 %v947, %v948
        %v950 = vrot.slane %v949, 1
        %v951 = vmax.f32 %v949, %v950
        %v952 = vmax.f32 %v761, %v764
        %v953 = vrot.slane %v952, 4
        %v954 = vmax.f32 %v952, %v953
        %v955 = vrot.slane %v954, 2
        %v956 = vmax.f32 %v954, %v955
        %v957 = vrot.slane %v956, 1
        %v958 = vmax.f32 %v956, %v957
        %v959 = vmax.f32 %v767, %v770
        %v960 = vrot.slane %v959, 4
        %v961 = vmax.f32 %v959, %v960
        %v962 = vrot.slane %v961, 2
        %v963 = vmax.f32 %v961, %v962
        %v964 = vrot.slane %v963, 1
        %v965 = vmax.f32 %v963, %v964
        %v966 = vmax.f32 %v773, %v776
        %v967 = vrot.slane %v966, 4
        %v968 = vmax.f32 %v966, %v967
        %v969 = vrot.slane %v968, 2
        %v970 = vmax.f32 %v968, %v969
        %v971 = vrot.slane %v970, 1
        %v972 = vmax.f32 %v970, %v971
        %v973 = vmax.f32 %v779, %v782
        %v974 = vrot.slane %v973, 4
        %v975 = vmax.f32 %v973, %v974
        %v976 = vrot.slane %v975, 2
        %v977 = vmax.f32 %v975, %v976
        %v978 = vrot.slane %v977, 1
        %v979 = vmax.f32 %v977, %v978
        %v980 = vmax.f32 %v785, %v788
        %v981 = vrot.slane %v980, 4
        %v982 = vmax.f32 %v980, %v981
        %v983 = vrot.slane %v982, 2
        %v984 = vmax.f32 %v982, %v983
        %v985 = vrot.slane %v984, 1
        %v986 = vmax.f32 %v984, %v985
        %v987 = vmax.f32 %v791, %v794
        %v988 = vrot.slane %v987, 4
        %v989 = vmax.f32 %v987, %v988
        %v990 = vrot.slane %v989, 2
        %v991 = vmax.f32 %v989, %v990
        %v992 = vrot.slane %v991, 1
        %v993 = vmax.f32 %v991, %v992
        %v994 = vmax.f32 %v797, %v800
        %v995 = vrot.slane %v994, 4
        %v996 = vmax.f32 %v994, %v995
        %v997 = vrot.slane %v996, 2
        %v998 = vmax.f32 %v996, %v997
        %v999 = vrot.slane %v998, 1
        %v1000 = vmax.f32 %v998, %v999
        %v1001 = vmax.f32 %v803, %v806
        %v1002 = vrot.slane %v1001, 4
        %v1003 = vmax.f32 %v1001, %v1002
        %v1004 = vrot.slane %v1003, 2
        %v1005 = vmax.f32 %v1003, %v1004
        %v1006 = vrot.slane %v1005, 1
        %v1007 = vmax.f32 %v1005, %v1006
        %v1008 = vmax.f32 %v809, %v812
        %v1009 = vrot.slane %v1008, 4
        %v1010 = vmax.f32 %v1008, %v1009
        %v1011 = vrot.slane %v1010, 2
        %v1012 = vmax.f32 %v1010, %v1011
        %v1013 = vrot.slane %v1012, 1
        %v1014 = vmax.f32 %v1012, %v1013
        %v1015 = vmax.f32 %v815, %v818
        %v1016 = vrot.slane %v1015, 4
        %v1017 = vmax.f32 %v1015, %v1016
        %v1018 = vrot.slane %v1017, 2
        %v1019 = vmax.f32 %v1017, %v1018
        %v1020 = vrot.slane %v1019, 1
        %v1021 = vmax.f32 %v1019, %v1020
        %v1022 = vmax.f32 %v821, %v824
        %v1023 = vrot.slane %v1022, 4
        %v1024 = vmax.f32 %v1022, %v1023
        %v1025 = vrot.slane %v1024, 2
        %v1026 = vmax.f32 %v1024, %v1025
        %v1027 = vrot.slane %v1026, 1
        %v1028 = vmax.f32 %v1026, %v1027
        %v1029 = vmax.f32 %v827, %v830
        %v1030 = vrot.slane %v1029, 4
        %v1031 = vmax.f32 %v1029, %v1030
        %v1032 = vrot.slane %v1031, 2
        %v1033 = vmax.f32 %v1031, %v1032
        %v1034 = vrot.slane %v1033, 1
        %v1035 = vmax.f32 %v1033, %v1034
        %v1036 = vmax.f32 %v833, %v836
        %v1037 = vrot.slane %v1036, 4
        %v1038 = vmax.f32 %v1036, %v1037
        %v1039 = vrot.slane %v1038, 2
        %v1040 = vmax.f32 %v1038, %v1039
        %v1041 = vrot.slane %v1040, 1
        %v1042 = vmax.f32 %v1040, %v1041
        %v1043 = vmax.f32 %v839, %v842
        %v1044 = vrot.slane %v1043, 4
        %v1045 = vmax.f32 %v1043, %v1044
        %v1046 = vrot.slane %v1045, 2
        %v1047 = vmax.f32 %v1045, %v1046
        %v1048 = vrot.slane %v1047, 1
        %v1049 = vmax.f32 %v1047, %v1048
        %v1050 = vmax.f32 %v845, %v848
        %v1051 = vrot.slane %v1050, 4
        %v1052 = vmax.f32 %v1050, %v1051
        %v1053 = vrot.slane %v1052, 2
        %v1054 = vmax.f32 %v1052, %v1053
        %v1055 = vrot.slane %v1054, 1
        %v1056 = vmax.f32 %v1054, %v1055
        %v1057 = vmax.f32 %v851, %v854
        %v1058 = vrot.slane %v1057, 4
        %v1059 = vmax.f32 %v1057, %v1058
        %v1060 = vrot.slane %v1059, 2
        %v1061 = vmax.f32 %v1059, %v1060
        %v1062 = vrot.slane %v1061, 1
        %v1063 = vmax.f32 %v1061, %v1062
        %v1064 = vmax.f32 %v857, %v860
        %v1065 = vrot.slane %v1064, 4
        %v1066 = vmax.f32 %v1064, %v1065
        %v1067 = vrot.slane %v1066, 2
        %v1068 = vmax.f32 %v1066, %v1067
        %v1069 = vrot.slane %v1068, 1
        %v1070 = vmax.f32 %v1068, %v1069
        %v1071 = vmax.f32 %v863, %v866
        %v1072 = vrot.slane %v1071, 4
        %v1073 = vmax.f32 %v1071, %v1072
        %v1074 = vrot.slane %v1073, 2
        %v1075 = vmax.f32 %v1073, %v1074
        %v1076 = vrot.slane %v1075, 1
        %v1077 = vmax.f32 %v1075, %v1076
        %v1078 = vmax.f32 %v869, %v872
        %v1079 = vrot.slane %v1078, 4
        %v1080 = vmax.f32 %v1078, %v1079
        %v1081 = vrot.slane %v1080, 2
        %v1082 = vmax.f32 %v1080, %v1081
        %v1083 = vrot.slane %v1082, 1
        %v1084 = vmax.f32 %v1082, %v1083
        %v1085 = vmax.f32 %v875, %v878
        %v1086 = vrot.slane %v1085, 4
        %v1087 = vmax.f32 %v1085, %v1086
        %v1088 = vrot.slane %v1087, 2
        %v1089 = vmax.f32 %v1087, %v1088
        %v1090 = vrot.slane %v1089, 1
        %v1091 = vmax.f32 %v1089, %v1090
        %v1092 = vmax.f32 %v881, %v884
        %v1093 = vrot.slane %v1092, 4
        %v1094 = vmax.f32 %v1092, %v1093
        %v1095 = vrot.slane %v1094, 2
        %v1096 = vmax.f32 %v1094, %v1095
        %v1097 = vrot.slane %v1096, 1
        %v1098 = vmax.f32 %v1096, %v1097
        %v1099 = vmax.f32 %v887, %v890
        %v1100 = vrot.slane %v1099, 4
        %v1101 = vmax.f32 %v1099, %v1100
        %v1102 = vrot.slane %v1101, 2
        %v1103 = vmax.f32 %v1101, %v1102
        %v1104 = vrot.slane %v1103, 1
        %v1105 = vmax.f32 %v1103, %v1104
        %v1106 = vmax.f32 %v893, %v896
        %v1107 = vrot.slane %v1106, 4
        %v1108 = vmax.f32 %v1106, %v1107
        %v1109 = vrot.slane %v1108, 2
        %v1110 = vmax.f32 %v1108, %v1109
        %v1111 = vrot.slane %v1110, 1
        %v1112 = vmax.f32 %v1110, %v1111
        %v1113 = vmax.f32 %v899, %v902
        %v1114 = vrot.slane %v1113, 4
        %v1115 = vmax.f32 %v1113, %v1114
        %v1116 = vrot.slane %v1115, 2
        %v1117 = vmax.f32 %v1115, %v1116
        %v1118 = vrot.slane %v1117, 1
        %v1119 = vmax.f32 %v1117, %v1118
        %v1120 = vmax.f32 %v905, %v908
        %v1121 = vrot.slane %v1120, 4
        %v1122 = vmax.f32 %v1120, %v1121
        %v1123 = vrot.slane %v1122, 2
        %v1124 = vmax.f32 %v1122, %v1123
        %v1125 = vrot.slane %v1124, 1
        %v1126 = vmax.f32 %v1124, %v1125
        %v1127 = vmax.f32 %v911, %v914
        %v1128 = vrot.slane %v1127, 4
        %v1129 = vmax.f32 %v1127, %v1128
        %v1130 = vrot.slane %v1129, 2
        %v1131 = vmax.f32 %v1129, %v1130
        %v1132 = vrot.slane %v1131, 1
        %v1133 = vmax.f32 %v1131, %v1132
        %v1134 = vmax.f32 %v917, %v920
        %v1135 = vrot.slane %v1134, 4
        %v1136 = vmax.f32 %v1134, %v1135
        %v1137 = vrot.slane %v1136, 2
        %v1138 = vmax.f32 %v1136, %v1137
        %v1139 = vrot.slane %v1138, 1
        %v1140 = vmax.f32 %v1138, %v1139
        %v1141 = vmax.f32 %v923, %v926
        %v1142 = vrot.slane %v1141, 4
        %v1143 = vmax.f32 %v1141, %v1142
        %v1144 = vrot.slane %v1143, 2
        %v1145 = vmax.f32 %v1143, %v1144
        %v1146 = vrot.slane %v1145, 1
        %v1147 = vmax.f32 %v1145, %v1146
        %v1148 = vmax.f32 %v929, %v932
        %v1149 = vrot.slane %v1148, 4
        %v1150 = vmax.f32 %v1148, %v1149
        %v1151 = vrot.slane %v1150, 2
        %v1152 = vmax.f32 %v1150, %v1151
        %v1153 = vrot.slane %v1152, 1
        %v1154 = vmax.f32 %v1152, %v1153
        %v1155 = vmax.f32 %v935, %v938
        %v1156 = vrot.slane %v1155, 4
        %v1157 = vmax.f32 %v1155, %v1156
        %v1158 = vrot.slane %v1157, 2
        %v1159 = vmax.f32 %v1157, %v1158
        %v1160 = vrot.slane %v1159, 1
        %v1161 = vmax.f32 %v1159, %v1160
        %v1162 = vmax.f32 %v941, %v944
        %v1163 = vrot.slane %v1162, 4
        %v1164 = vmax.f32 %v1162, %v1163
        %v1165 = vrot.slane %v1164, 2
        %v1166 = vmax.f32 %v1164, %v1165
        %v1167 = vrot.slane %v1166, 1
        %v1168 = vmax.f32 %v1166, %v1167
        %v1169 = vld [vmem:[%s1] sm:$0x1]
        %v1170 = vld [vmem:[%s1 + $0x1] sm:$0x1]
        %v1171 = vld [vmem:[%s1 + $0x2] sm:$0x1]
        %v1172 = vld [vmem:[%s1 + $0x3] sm:$0x1]
        %v1173 = vld [vmem:[%s1 + $0x4] sm:$0x1]
        %v1174 = vld [vmem:[%s1 + $0x5] sm:$0x1]
        %v1175 = vld [vmem:[%s1 + $0x6] sm:$0x1]
        %v1176 = vld [vmem:[%s1 + $0x7] sm:$0x1]
        %v1177 = vld [vmem:[%s1 + $0x8] sm:$0x1]
        %v1178 = vld [vmem:[%s1 + $0x9] sm:$0x1]
        %v1179 = vld [vmem:[%s1 + $0xa] sm:$0x1]
        %v1180 = vld [vmem:[%s1 + $0xb] sm:$0x1]
        %v1181 = vld [vmem:[%s1 + $0xc] sm:$0x1]
        %v1182 = vld [vmem:[%s1 + $0xd] sm:$0x1]
        %v1183 = vld [vmem:[%s1 + $0xe] sm:$0x1]
        %v1184 = vld [vmem:[%s1 + $0xf] sm:$0x1]
        %v1185 = vld [vmem:[%s1 + $0x10] sm:$0x1]
        %v1186 = vld [vmem:[%s1 + $0x11] sm:$0x1]
        %v1187 = vld [vmem:[%s1 + $0x12] sm:$0x1]
        %v1188 = vld [vmem:[%s1 + $0x13] sm:$0x1]
        %v1189 = vld [vmem:[%s1 + $0x14] sm:$0x1]
        %v1190 = vld [vmem:[%s1 + $0x15] sm:$0x1]
        %v1191 = vld [vmem:[%s1 + $0x16] sm:$0x1]
        %v1192 = vld [vmem:[%s1 + $0x17] sm:$0x1]
        %v1193 = vld [vmem:[%s1 + $0x18] sm:$0x1]
        %v1194 = vld [vmem:[%s1 + $0x19] sm:$0x1]
        %v1195 = vld [vmem:[%s1 + $0x1a] sm:$0x1]
        %v1196 = vld [vmem:[%s1 + $0x1b] sm:$0x1]
        %v1197 = vld [vmem:[%s1 + $0x1c] sm:$0x1]
        %v1198 = vld [vmem:[%s1 + $0x1d] sm:$0x1]
        %v1199 = vld [vmem:[%s1 + $0x1e] sm:$0x1]
        %v1200 = vld [vmem:[%s1 + $0x1f] sm:$0x1]
        %v1201 = vld [vmem:[%s2] sm:$0x1]
        %v1202 = vld [vmem:[%s2 + $0x1] sm:$0x1]
        %v1203 = vld [vmem:[%s2 + $0x2] sm:$0x1]
        %v1204 = vld [vmem:[%s2 + $0x3] sm:$0x1]
        %v1205 = vld [vmem:[%s2 + $0x4] sm:$0x1]
        %v1206 = vld [vmem:[%s2 + $0x5] sm:$0x1]
        %v1207 = vld [vmem:[%s2 + $0x6] sm:$0x1]
        %v1208 = vld [vmem:[%s2 + $0x7] sm:$0x1]
        %v1209 = vld [vmem:[%s2 + $0x8] sm:$0x1]
        %v1210 = vld [vmem:[%s2 + $0x9] sm:$0x1]
        %v1211 = vld [vmem:[%s2 + $0xa] sm:$0x1]
        %v1212 = vld [vmem:[%s2 + $0xb] sm:$0x1]
        %v1213 = vld [vmem:[%s2 + $0xc] sm:$0x1]
        %v1214 = vld [vmem:[%s2 + $0xd] sm:$0x1]
        %v1215 = vld [vmem:[%s2 + $0xe] sm:$0x1]
        %v1216 = vld [vmem:[%s2 + $0xf] sm:$0x1]
        %v1217 = vld [vmem:[%s2 + $0x10] sm:$0x1]
        %v1218 = vld [vmem:[%s2 + $0x11] sm:$0x1]
        %v1219 = vld [vmem:[%s2 + $0x12] sm:$0x1]
        %v1220 = vld [vmem:[%s2 + $0x13] sm:$0x1]
        %v1221 = vld [vmem:[%s2 + $0x14] sm:$0x1]
        %v1222 = vld [vmem:[%s2 + $0x15] sm:$0x1]
        %v1223 = vld [vmem:[%s2 + $0x16] sm:$0x1]
        %v1224 = vld [vmem:[%s2 + $0x17] sm:$0x1]
        %v1225 = vld [vmem:[%s2 + $0x18] sm:$0x1]
        %v1226 = vld [vmem:[%s2 + $0x19] sm:$0x1]
        %v1227 = vld [vmem:[%s2 + $0x1a] sm:$0x1]
        %v1228 = vld [vmem:[%s2 + $0x1b] sm:$0x1]
        %v1229 = vld [vmem:[%s2 + $0x1c] sm:$0x1]
        %v1230 = vld [vmem:[%s2 + $0x1d] sm:$0x1]
        %v1231 = vld [vmem:[%s2 + $0x1e] sm:$0x1]
        %v1232 = vld [vmem:[%s2 + $0x1f] sm:$0x1]
        %v1233 = vmul.f32 %v1169, %v721
        %v1234 = vmul.f32 %v1170, %v722
        %v1235 = vmul.f32 %v1171, %v723
        %v1236 = vmul.f32 %v1172, %v724
        %v1237 = vmul.f32 %v1173, %v725
        %v1238 = vmul.f32 %v1174, %v726
        %v1239 = vmul.f32 %v1175, %v727
        %v1240 = vmul.f32 %v1176, %v728
        %v1241 = vmul.f32 %v1177, %v729
        %v1242 = vmul.f32 %v1178, %v730
        %v1243 = vmul.f32 %v1179, %v731
        %v1244 = vmul.f32 %v1180, %v732
        %v1245 = vmul.f32 %v1181, %v733
        %v1246 = vmul.f32 %v1182, %v734
        %v1247 = vmul.f32 %v1183, %v735
        %v1248 = vmul.f32 %v1184, %v736
        %v1249 = vmul.f32 %v1185, %v737
        %v1250 = vmul.f32 %v1186, %v738
        %v1251 = vmul.f32 %v1187, %v739
        %v1252 = vmul.f32 %v1188, %v740
        %v1253 = vmul.f32 %v1189, %v741
        %v1254 = vmul.f32 %v1190, %v742
        %v1255 = vmul.f32 %v1191, %v743
        %v1256 = vmul.f32 %v1192, %v744
        %v1257 = vmul.f32 %v1193, %v745
        %v1258 = vmul.f32 %v1194, %v746
        %v1259 = vmul.f32 %v1195, %v747
        %v1260 = vmul.f32 %v1196, %v748
        %v1261 = vmul.f32 %v1197, %v749
        %v1262 = vmul.f32 %v1198, %v750
        %v1263 = vmul.f32 %v1199, %v751
        %v1264 = vmul.f32 %v1200, %v752
        %vm1265 = vcmask 8192
        %v1266 = vsel %vm1265, %v1233, 0.0
        %v1267 = vsel %vm1265, %v1234, 0.0
        %v1268 = vadd.f32 %v1266, %v1267
        %v1269 = vsel %vm1265, %v1235, 0.0
        %v1270 = vadd.f32 %v1268, %v1269
        %v1271 = vsel %vm1265, %v1236, 0.0
        %v1272 = vadd.f32 %v1270, %v1271
        %v1273 = vsel %vm1265, %v1237, 0.0
        %v1274 = vadd.f32 %v1272, %v1273
        %v1275 = vsel %vm1265, %v1238, 0.0
        %v1276 = vadd.f32 %v1274, %v1275
        %v1277 = vsel %vm1265, %v1239, 0.0
        %v1278 = vadd.f32 %v1276, %v1277
        %v1279 = vsel %vm1265, %v1240, 0.0
        %v1280 = vadd.f32 %v1278, %v1279
        %v1281 = vsel %vm1265, %v1241, 0.0
        %v1282 = vadd.f32 %v1280, %v1281
        %v1283 = vsel %vm1265, %v1242, 0.0
        %v1284 = vadd.f32 %v1282, %v1283
        %v1285 = vsel %vm1265, %v1243, 0.0
        %v1286 = vadd.f32 %v1284, %v1285
        %v1287 = vsel %vm1265, %v1244, 0.0
        %v1288 = vadd.f32 %v1286, %v1287
        %v1289 = vsel %vm1265, %v1245, 0.0
        %v1290 = vadd.f32 %v1288, %v1289
        %v1291 = vsel %vm1265, %v1246, 0.0
        %v1292 = vadd.f32 %v1290, %v1291
        %v1293 = vsel %vm1265, %v1247, 0.0
        %v1294 = vadd.f32 %v1292, %v1293
        %v1295 = vsel %vm1265, %v1248, 0.0
        %v1296 = vadd.f32 %v1294, %v1295
        %v1297 = vsel %vm1265, %v1249, 0.0
        %v1298 = vadd.f32 %v1296, %v1297
        %v1299 = vsel %vm1265, %v1250, 0.0
        %v1300 = vadd.f32 %v1298, %v1299
        %v1301 = vsel %vm1265, %v1251, 0.0
        %v1302 = vadd.f32 %v1300, %v1301
        %v1303 = vsel %vm1265, %v1252, 0.0
        %v1304 = vadd.f32 %v1302, %v1303
        %v1305 = vsel %vm1265, %v1253, 0.0
        %v1306 = vadd.f32 %v1304, %v1305
        %v1307 = vsel %vm1265, %v1254, 0.0
        %v1308 = vadd.f32 %v1306, %v1307
        %v1309 = vsel %vm1265, %v1255, 0.0
        %v1310 = vadd.f32 %v1308, %v1309
        %v1311 = vsel %vm1265, %v1256, 0.0
        %v1312 = vadd.f32 %v1310, %v1311
        %v1313 = vsel %vm1265, %v1257, 0.0
        %v1314 = vadd.f32 %v1312, %v1313
        %v1315 = vsel %vm1265, %v1258, 0.0
        %v1316 = vadd.f32 %v1314, %v1315
        %v1317 = vsel %vm1265, %v1259, 0.0
        %v1318 = vadd.f32 %v1316, %v1317
        %v1319 = vsel %vm1265, %v1260, 0.0
        %v1320 = vadd.f32 %v1318, %v1319
        %v1321 = vsel %vm1265, %v1261, 0.0
        %v1322 = vadd.f32 %v1320, %v1321
        %v1323 = vsel %vm1265, %v1262, 0.0
        %v1324 = vadd.f32 %v1322, %v1323
        %v1325 = vsel %vm1265, %v1263, 0.0
        %v1326 = vadd.f32 %v1324, %v1325
        %v1327 = vsel %vm1265, %v1264, 0.0
        %v1328 = vadd.f32 %v1326, %v1327
        %v1329 = vmax.f32 %v1328, 0.0
        %v1330 = vmul.f32 %v1201, %v1329
        %v1331 = vmul.f32 %v1202, %v1329
        %v1332 = vmul.f32 %v1203, %v1329
        %v1333 = vmul.f32 %v1204, %v1329
        %v1334 = vmul.f32 %v1205, %v1329
        %v1335 = vmul.f32 %v1206, %v1329
        %v1336 = vmul.f32 %v1207, %v1329
        %v1337 = vmul.f32 %v1208, %v1329
        %v1338 = vmul.f32 %v1209, %v1329
        %v1339 = vmul.f32 %v1210, %v1329
        %v1340 = vmul.f32 %v1211, %v1329
        %v1341 = vmul.f32 %v1212, %v1329
        %v1342 = vmul.f32 %v1213, %v1329
        %v1343 = vmul.f32 %v1214, %v1329
        %v1344 = vmul.f32 %v1215, %v1329
        %v1345 = vmul.f32 %v1216, %v1329
        %v1346 = vmul.f32 %v1217, %v1329
        %v1347 = vmul.f32 %v1218, %v1329
        %v1348 = vmul.f32 %v1219, %v1329
        %v1349 = vmul.f32 %v1220, %v1329
        %v1350 = vmul.f32 %v1221, %v1329
        %v1351 = vmul.f32 %v1222, %v1329
        %v1352 = vmul.f32 %v1223, %v1329
        %v1353 = vmul.f32 %v1224, %v1329
        %v1354 = vmul.f32 %v1225, %v1329
        %v1355 = vmul.f32 %v1226, %v1329
        %v1356 = vmul.f32 %v1227, %v1329
        %v1357 = vmul.f32 %v1228, %v1329
        %v1358 = vmul.f32 %v1229, %v1329
        %v1359 = vmul.f32 %v1230, %v1329
        %v1360 = vmul.f32 %v1231, %v1329
        %v1361 = vmul.f32 %v1232, %v1329
        %v1362 = vsel %vm1265, %v1330, 0.0
        %1363 = vadd.xlane.f32.xlu0 %v1362
        %v1364 = vpop.xlane.xlu0 %1363
        %v1365 = vsel %vm1265, %v1331, 0.0
        %1366 = vadd.xlane.f32.xlu0 %v1365
        %v1367 = vpop.xlane.xlu0 %1366
        %v1368 = vsel %vm1265, %v1332, 0.0
        %1369 = vadd.xlane.f32.xlu0 %v1368
        %v1370 = vpop.xlane.xlu0 %1369
        %v1371 = vsel %vm1265, %v1333, 0.0
        %1372 = vadd.xlane.f32.xlu0 %v1371
        %v1373 = vpop.xlane.xlu0 %1372
        %v1374 = vsel %vm1265, %v1334, 0.0
        %1375 = vadd.xlane.f32.xlu0 %v1374
        %v1376 = vpop.xlane.xlu0 %1375
        %v1377 = vsel %vm1265, %v1335, 0.0
        %1378 = vadd.xlane.f32.xlu0 %v1377
        %v1379 = vpop.xlane.xlu0 %1378
        %v1380 = vsel %vm1265, %v1336, 0.0
        %1381 = vadd.xlane.f32.xlu0 %v1380
        %v1382 = vpop.xlane.xlu0 %1381
        %v1383 = vsel %vm1265, %v1337, 0.0
        %1384 = vadd.xlane.f32.xlu0 %v1383
        %v1385 = vpop.xlane.xlu0 %1384
        %v1386 = vsel %vm1265, %v1338, 0.0
        %1387 = vadd.xlane.f32.xlu0 %v1386
        %v1388 = vpop.xlane.xlu0 %1387
        %v1389 = vsel %vm1265, %v1339, 0.0
        %1390 = vadd.xlane.f32.xlu0 %v1389
        %v1391 = vpop.xlane.xlu0 %1390
        %v1392 = vsel %vm1265, %v1340, 0.0
        %1393 = vadd.xlane.f32.xlu0 %v1392
        %v1394 = vpop.xlane.xlu0 %1393
        %v1395 = vsel %vm1265, %v1341, 0.0
        %1396 = vadd.xlane.f32.xlu0 %v1395
        %v1397 = vpop.xlane.xlu0 %1396
        %v1398 = vsel %vm1265, %v1342, 0.0
        %1399 = vadd.xlane.f32.xlu0 %v1398
        %v1400 = vpop.xlane.xlu0 %1399
        %v1401 = vsel %vm1265, %v1343, 0.0
        %1402 = vadd.xlane.f32.xlu0 %v1401
        %v1403 = vpop.xlane.xlu0 %1402
        %v1404 = vsel %vm1265, %v1344, 0.0
        %1405 = vadd.xlane.f32.xlu0 %v1404
        %v1406 = vpop.xlane.xlu0 %1405
        %v1407 = vsel %vm1265, %v1345, 0.0
        %1408 = vadd.xlane.f32.xlu0 %v1407
        %v1409 = vpop.xlane.xlu0 %1408
        %v1410 = vsel %vm1265, %v1346, 0.0
        %1411 = vadd.xlane.f32.xlu0 %v1410
        %v1412 = vpop.xlane.xlu0 %1411
        %v1413 = vsel %vm1265, %v1347, 0.0
        %1414 = vadd.xlane.f32.xlu0 %v1413
        %v1415 = vpop.xlane.xlu0 %1414
        %v1416 = vsel %vm1265, %v1348, 0.0
        %1417 = vadd.xlane.f32.xlu0 %v1416
        %v1418 = vpop.xlane.xlu0 %1417
        %v1419 = vsel %vm1265, %v1349, 0.0
        %1420 = vadd.xlane.f32.xlu0 %v1419
        %v1421 = vpop.xlane.xlu0 %1420
        %v1422 = vsel %vm1265, %v1350, 0.0
        %1423 = vadd.xlane.f32.xlu0 %v1422
        %v1424 = vpop.xlane.xlu0 %1423
        %v1425 = vsel %vm1265, %v1351, 0.0
        %1426 = vadd.xlane.f32.xlu0 %v1425
        %v1427 = vpop.xlane.xlu0 %1426
        %v1428 = vsel %vm1265, %v1352, 0.0
        %1429 = vadd.xlane.f32.xlu0 %v1428
        %v1430 = vpop.xlane.xlu0 %1429
        %v1431 = vsel %vm1265, %v1353, 0.0
        %1432 = vadd.xlane.f32.xlu0 %v1431
        %v1433 = vpop.xlane.xlu0 %1432
        %v1434 = vsel %vm1265, %v1354, 0.0
        %1435 = vadd.xlane.f32.xlu0 %v1434
        %v1436 = vpop.xlane.xlu0 %1435
        %v1437 = vsel %vm1265, %v1355, 0.0
        %1438 = vadd.xlane.f32.xlu0 %v1437
        %v1439 = vpop.xlane.xlu0 %1438
        %v1440 = vsel %vm1265, %v1356, 0.0
        %1441 = vadd.xlane.f32.xlu0 %v1440
        %v1442 = vpop.xlane.xlu0 %1441
        %v1443 = vsel %vm1265, %v1357, 0.0
        %1444 = vadd.xlane.f32.xlu0 %v1443
        %v1445 = vpop.xlane.xlu0 %1444
        %v1446 = vsel %vm1265, %v1358, 0.0
        %1447 = vadd.xlane.f32.xlu0 %v1446
        %v1448 = vpop.xlane.xlu0 %1447
        %v1449 = vsel %vm1265, %v1359, 0.0
        %1450 = vadd.xlane.f32.xlu0 %v1449
        %v1451 = vpop.xlane.xlu0 %1450
        %v1452 = vsel %vm1265, %v1360, 0.0
        %1453 = vadd.xlane.f32.xlu0 %v1452
        %v1454 = vpop.xlane.xlu0 %1453
        %v1455 = vsel %vm1265, %v1361, 0.0
        %1456 = vadd.xlane.f32.xlu0 %v1455
        %v1457 = vpop.xlane.xlu0 %1456
        %v1458 = vmul.f32 %v1169, %v951
        %v1459 = vmul.f32 %v1170, %v958
        %v1460 = vmul.f32 %v1171, %v965
        %v1461 = vmul.f32 %v1172, %v972
        %v1462 = vmul.f32 %v1173, %v979
        %v1463 = vmul.f32 %v1174, %v986
        %v1464 = vmul.f32 %v1175, %v993
        %v1465 = vmul.f32 %v1176, %v1000
        %v1466 = vmul.f32 %v1177, %v1007
        %v1467 = vmul.f32 %v1178, %v1014
        %v1468 = vmul.f32 %v1179, %v1021
        %v1469 = vmul.f32 %v1180, %v1028
        %v1470 = vmul.f32 %v1181, %v1035
        %v1471 = vmul.f32 %v1182, %v1042
        %v1472 = vmul.f32 %v1183, %v1049
        %v1473 = vmul.f32 %v1184, %v1056
        %v1474 = vmul.f32 %v1185, %v1063
        %v1475 = vmul.f32 %v1186, %v1070
        %v1476 = vmul.f32 %v1187, %v1077
        %v1477 = vmul.f32 %v1188, %v1084
        %v1478 = vmul.f32 %v1189, %v1091
        %v1479 = vmul.f32 %v1190, %v1098
        %v1480 = vmul.f32 %v1191, %v1105
        %v1481 = vmul.f32 %v1192, %v1112
        %v1482 = vmul.f32 %v1193, %v1119
        %v1483 = vmul.f32 %v1194, %v1126
        %v1484 = vmul.f32 %v1195, %v1133
        %v1485 = vmul.f32 %v1196, %v1140
        %v1486 = vmul.f32 %v1197, %v1147
        %v1487 = vmul.f32 %v1198, %v1154
        %v1488 = vmul.f32 %v1199, %v1161
        %v1489 = vmul.f32 %v1200, %v1168
        %v1490 = vsel %vm1265, %v1458, 0.0
        %v1491 = vsel %vm1265, %v1459, 0.0
        %v1492 = vadd.f32 %v1490, %v1491
        %v1493 = vsel %vm1265, %v1460, 0.0
        %v1494 = vadd.f32 %v1492, %v1493
        %v1495 = vsel %vm1265, %v1461, 0.0
        %v1496 = vadd.f32 %v1494, %v1495
        %v1497 = vsel %vm1265, %v1462, 0.0
        %v1498 = vadd.f32 %v1496, %v1497
        %v1499 = vsel %vm1265, %v1463, 0.0
        %v1500 = vadd.f32 %v1498, %v1499
        %v1501 = vsel %vm1265, %v1464, 0.0
        %v1502 = vadd.f32 %v1500, %v1501
        %v1503 = vsel %vm1265, %v1465, 0.0
        %v1504 = vadd.f32 %v1502, %v1503
        %v1505 = vsel %vm1265, %v1466, 0.0
        %v1506 = vadd.f32 %v1504, %v1505
        %v1507 = vsel %vm1265, %v1467, 0.0
        %v1508 = vadd.f32 %v1506, %v1507
        %v1509 = vsel %vm1265, %v1468, 0.0
        %v1510 = vadd.f32 %v1508, %v1509
        %v1511 = vsel %vm1265, %v1469, 0.0
        %v1512 = vadd.f32 %v1510, %v1511
        %v1513 = vsel %vm1265, %v1470, 0.0
        %v1514 = vadd.f32 %v1512, %v1513
        %v1515 = vsel %vm1265, %v1471, 0.0
        %v1516 = vadd.f32 %v1514, %v1515
        %v1517 = vsel %vm1265, %v1472, 0.0
        %v1518 = vadd.f32 %v1516, %v1517
        %v1519 = vsel %vm1265, %v1473, 0.0
        %v1520 = vadd.f32 %v1518, %v1519
        %v1521 = vsel %vm1265, %v1474, 0.0
        %v1522 = vadd.f32 %v1520, %v1521
        %v1523 = vsel %vm1265, %v1475, 0.0
        %v1524 = vadd.f32 %v1522, %v1523
        %v1525 = vsel %vm1265, %v1476, 0.0
        %v1526 = vadd.f32 %v1524, %v1525
        %v1527 = vsel %vm1265, %v1477, 0.0
        %v1528 = vadd.f32 %v1526, %v1527
        %v1529 = vsel %vm1265, %v1478, 0.0
        %v1530 = vadd.f32 %v1528, %v1529
        %v1531 = vsel %vm1265, %v1479, 0.0
        %v1532 = vadd.f32 %v1530, %v1531
        %v1533 = vsel %vm1265, %v1480, 0.0
        %v1534 = vadd.f32 %v1532, %v1533
        %v1535 = vsel %vm1265, %v1481, 0.0
        %v1536 = vadd.f32 %v1534, %v1535
        %v1537 = vsel %vm1265, %v1482, 0.0
        %v1538 = vadd.f32 %v1536, %v1537
        %v1539 = vsel %vm1265, %v1483, 0.0
        %v1540 = vadd.f32 %v1538, %v1539
        %v1541 = vsel %vm1265, %v1484, 0.0
        %v1542 = vadd.f32 %v1540, %v1541
        %v1543 = vsel %vm1265, %v1485, 0.0
        %v1544 = vadd.f32 %v1542, %v1543
        %v1545 = vsel %vm1265, %v1486, 0.0
        %v1546 = vadd.f32 %v1544, %v1545
        %v1547 = vsel %vm1265, %v1487, 0.0
        %v1548 = vadd.f32 %v1546, %v1547
        %v1549 = vsel %vm1265, %v1488, 0.0
        %v1550 = vadd.f32 %v1548, %v1549
        %v1551 = vsel %vm1265, %v1489, 0.0
        %v1552 = vadd.f32 %v1550, %v1551
        %v1553 = vmax.f32 %v1552, 0.0
        %v1554 = vmul.f32 %v1201, %v1553
        %v1555 = vmul.f32 %v1202, %v1553
        %v1556 = vmul.f32 %v1203, %v1553
        %v1557 = vmul.f32 %v1204, %v1553
        %v1558 = vmul.f32 %v1205, %v1553
        %v1559 = vmul.f32 %v1206, %v1553
        %v1560 = vmul.f32 %v1207, %v1553
        %v1561 = vmul.f32 %v1208, %v1553
        %v1562 = vmul.f32 %v1209, %v1553
        %v1563 = vmul.f32 %v1210, %v1553
        %v1564 = vmul.f32 %v1211, %v1553
        %v1565 = vmul.f32 %v1212, %v1553
        %v1566 = vmul.f32 %v1213, %v1553
        %v1567 = vmul.f32 %v1214, %v1553
        %v1568 = vmul.f32 %v1215, %v1553
        %v1569 = vmul.f32 %v1216, %v1553
        %v1570 = vmul.f32 %v1217, %v1553
        %v1571 = vmul.f32 %v1218, %v1553
        %v1572 = vmul.f32 %v1219, %v1553
        %v1573 = vmul.f32 %v1220, %v1553
        %v1574 = vmul.f32 %v1221, %v1553
        %v1575 = vmul.f32 %v1222, %v1553
        %v1576 = vmul.f32 %v1223, %v1553
        %v1577 = vmul.f32 %v1224, %v1553
        %v1578 = vmul.f32 %v1225, %v1553
        %v1579 = vmul.f32 %v1226, %v1553
        %v1580 = vmul.f32 %v1227, %v1553
        %v1581 = vmul.f32 %v1228, %v1553
        %v1582 = vmul.f32 %v1229, %v1553
        %v1583 = vmul.f32 %v1230, %v1553
        %v1584 = vmul.f32 %v1231, %v1553
        %v1585 = vmul.f32 %v1232, %v1553
        %v1586 = vsel %vm1265, %v1554, 0.0
        %1587 = vadd.xlane.f32.xlu0 %v1586
        %v1588 = vpop.xlane.xlu0 %1587
        %v1589 = vsel %vm1265, %v1555, 0.0
        %1590 = vadd.xlane.f32.xlu0 %v1589
        %v1591 = vpop.xlane.xlu0 %1590
        %v1592 = vsel %vm1265, %v1556, 0.0
        %1593 = vadd.xlane.f32.xlu0 %v1592
        %v1594 = vpop.xlane.xlu0 %1593
        %v1595 = vsel %vm1265, %v1557, 0.0
        %1596 = vadd.xlane.f32.xlu0 %v1595
        %v1597 = vpop.xlane.xlu0 %1596
        %v1598 = vsel %vm1265, %v1558, 0.0
        %1599 = vadd.xlane.f32.xlu0 %v1598
        %v1600 = vpop.xlane.xlu0 %1599
        %v1601 = vsel %vm1265, %v1559, 0.0
        %1602 = vadd.xlane.f32.xlu0 %v1601
        %v1603 = vpop.xlane.xlu0 %1602
        %v1604 = vsel %vm1265, %v1560, 0.0
        %1605 = vadd.xlane.f32.xlu0 %v1604
        %v1606 = vpop.xlane.xlu0 %1605
        %v1607 = vsel %vm1265, %v1561, 0.0
        %1608 = vadd.xlane.f32.xlu0 %v1607
        %v1609 = vpop.xlane.xlu0 %1608
        %v1610 = vsel %vm1265, %v1562, 0.0
        %1611 = vadd.xlane.f32.xlu0 %v1610
        %v1612 = vpop.xlane.xlu0 %1611
        %v1613 = vsel %vm1265, %v1563, 0.0
        %1614 = vadd.xlane.f32.xlu0 %v1613
        %v1615 = vpop.xlane.xlu0 %1614
        %v1616 = vsel %vm1265, %v1564, 0.0
        %1617 = vadd.xlane.f32.xlu0 %v1616
        %v1618 = vpop.xlane.xlu0 %1617
        %v1619 = vsel %vm1265, %v1565, 0.0
        %1620 = vadd.xlane.f32.xlu0 %v1619
        %v1621 = vpop.xlane.xlu0 %1620
        %v1622 = vsel %vm1265, %v1566, 0.0
        %1623 = vadd.xlane.f32.xlu0 %v1622
        %v1624 = vpop.xlane.xlu0 %1623
        %v1625 = vsel %vm1265, %v1567, 0.0
        %1626 = vadd.xlane.f32.xlu0 %v1625
        %v1627 = vpop.xlane.xlu0 %1626
        %v1628 = vsel %vm1265, %v1568, 0.0
        %1629 = vadd.xlane.f32.xlu0 %v1628
        %v1630 = vpop.xlane.xlu0 %1629
        %v1631 = vsel %vm1265, %v1569, 0.0
        %1632 = vadd.xlane.f32.xlu0 %v1631
        %v1633 = vpop.xlane.xlu0 %1632
        %v1634 = vsel %vm1265, %v1570, 0.0
        %1635 = vadd.xlane.f32.xlu0 %v1634
        %v1636 = vpop.xlane.xlu0 %1635
        %v1637 = vsel %vm1265, %v1571, 0.0
        %1638 = vadd.xlane.f32.xlu0 %v1637
        %v1639 = vpop.xlane.xlu0 %1638
        %v1640 = vsel %vm1265, %v1572, 0.0
        %1641 = vadd.xlane.f32.xlu0 %v1640
        %v1642 = vpop.xlane.xlu0 %1641
        %v1643 = vsel %vm1265, %v1573, 0.0
        %1644 = vadd.xlane.f32.xlu0 %v1643
        %v1645 = vpop.xlane.xlu0 %1644
        %v1646 = vsel %vm1265, %v1574, 0.0
        %1647 = vadd.xlane.f32.xlu0 %v1646
        %v1648 = vpop.xlane.xlu0 %1647
        %v1649 = vsel %vm1265, %v1575, 0.0
        %1650 = vadd.xlane.f32.xlu0 %v1649
        %v1651 = vpop.xlane.xlu0 %1650
        %v1652 = vsel %vm1265, %v1576, 0.0
        %1653 = vadd.xlane.f32.xlu0 %v1652
        %v1654 = vpop.xlane.xlu0 %1653
        %v1655 = vsel %vm1265, %v1577, 0.0
        %1656 = vadd.xlane.f32.xlu0 %v1655
        %v1657 = vpop.xlane.xlu0 %1656
        %v1658 = vsel %vm1265, %v1578, 0.0
        %1659 = vadd.xlane.f32.xlu0 %v1658
        %v1660 = vpop.xlane.xlu0 %1659
        %v1661 = vsel %vm1265, %v1579, 0.0
        %1662 = vadd.xlane.f32.xlu0 %v1661
        %v1663 = vpop.xlane.xlu0 %1662
        %v1664 = vsel %vm1265, %v1580, 0.0
        %1665 = vadd.xlane.f32.xlu0 %v1664
        %v1666 = vpop.xlane.xlu0 %1665
        %v1667 = vsel %vm1265, %v1581, 0.0
        %1668 = vadd.xlane.f32.xlu0 %v1667
        %v1669 = vpop.xlane.xlu0 %1668
        %v1670 = vsel %vm1265, %v1582, 0.0
        %1671 = vadd.xlane.f32.xlu0 %v1670
        %v1672 = vpop.xlane.xlu0 %1671
        %v1673 = vsel %vm1265, %v1583, 0.0
        %1674 = vadd.xlane.f32.xlu0 %v1673
        %v1675 = vpop.xlane.xlu0 %1674
        %v1676 = vsel %vm1265, %v1584, 0.0
        %1677 = vadd.xlane.f32.xlu0 %v1676
        %v1678 = vpop.xlane.xlu0 %1677
        %v1679 = vsel %vm1265, %v1585, 0.0
        %1680 = vadd.xlane.f32.xlu0 %v1679
        %v1681 = vpop.xlane.xlu0 %1680
        %v1682 = vadd.f32 %v1364, %v1588
        %v1683 = vadd.f32 %v1367, %v1591
        %v1684 = vadd.f32 %v1370, %v1594
        %v1685 = vadd.f32 %v1373, %v1597
        %v1686 = vadd.f32 %v1376, %v1600
        %v1687 = vadd.f32 %v1379, %v1603
        %v1688 = vadd.f32 %v1382, %v1606
        %v1689 = vadd.f32 %v1385, %v1609
        %v1690 = vadd.f32 %v1388, %v1612
        %v1691 = vadd.f32 %v1391, %v1615
        %v1692 = vadd.f32 %v1394, %v1618
        %v1693 = vadd.f32 %v1397, %v1621
        %v1694 = vadd.f32 %v1400, %v1624
        %v1695 = vadd.f32 %v1403, %v1627
        %v1696 = vadd.f32 %v1406, %v1630
        %v1697 = vadd.f32 %v1409, %v1633
        %v1698 = vadd.f32 %v1412, %v1636
        %v1699 = vadd.f32 %v1415, %v1639
        %v1700 = vadd.f32 %v1418, %v1642
        %v1701 = vadd.f32 %v1421, %v1645
        %v1702 = vadd.f32 %v1424, %v1648
        %v1703 = vadd.f32 %v1427, %v1651
        %v1704 = vadd.f32 %v1430, %v1654
        %v1705 = vadd.f32 %v1433, %v1657
        %v1706 = vadd.f32 %v1436, %v1660
        %v1707 = vadd.f32 %v1439, %v1663
        %v1708 = vadd.f32 %v1442, %v1666
        %v1709 = vadd.f32 %v1445, %v1669
        %v1710 = vadd.f32 %v1448, %v1672
        %v1711 = vadd.f32 %v1451, %v1675
        %v1712 = vadd.f32 %v1454, %v1678
        %v1713 = vadd.f32 %v1457, %v1681
        %v1714 = vsub.f32 0.0, %v1682
        %v1715 = vsub.f32 0.0, %v1683
        %v1716 = vsub.f32 0.0, %v1684
        %v1717 = vsub.f32 0.0, %v1685
        %v1718 = vsub.f32 0.0, %v1686
        %v1719 = vsub.f32 0.0, %v1687
        %v1720 = vsub.f32 0.0, %v1688
        %v1721 = vsub.f32 0.0, %v1689
        %v1722 = vsub.f32 0.0, %v1690
        %v1723 = vsub.f32 0.0, %v1691
        %v1724 = vsub.f32 0.0, %v1692
        %v1725 = vsub.f32 0.0, %v1693
        %v1726 = vsub.f32 0.0, %v1694
        %v1727 = vsub.f32 0.0, %v1695
        %v1728 = vsub.f32 0.0, %v1696
        %v1729 = vsub.f32 0.0, %v1697
        %v1730 = vsub.f32 0.0, %v1698
        %v1731 = vsub.f32 0.0, %v1699
        %v1732 = vsub.f32 0.0, %v1700
        %v1733 = vsub.f32 0.0, %v1701
        %v1734 = vsub.f32 0.0, %v1702
        %v1735 = vsub.f32 0.0, %v1703
        %v1736 = vsub.f32 0.0, %v1704
        %v1737 = vsub.f32 0.0, %v1705
        %v1738 = vsub.f32 0.0, %v1706
        %v1739 = vsub.f32 0.0, %v1707
        %v1740 = vsub.f32 0.0, %v1708
        %v1741 = vsub.f32 0.0, %v1709
        %v1742 = vsub.f32 0.0, %v1710
        %v1743 = vsub.f32 0.0, %v1711
        %v1744 = vsub.f32 0.0, %v1712
        %v1745 = vsub.f32 0.0, %v1713
        %v1746 = vmul.f32 %v1714, 1.442695
        %v1747 = vpow.pop %v1746
        %v1748 = vmul.f32 %v1715, 1.442695
        %v1749 = vpow.pop %v1748
        %v1750 = vmul.f32 %v1716, 1.442695
        %v1751 = vpow.pop %v1750
        %v1752 = vmul.f32 %v1717, 1.442695
        %v1753 = vpow.pop %v1752
        %v1754 = vmul.f32 %v1718, 1.442695
        %v1755 = vpow.pop %v1754
        %v1756 = vmul.f32 %v1719, 1.442695
        %v1757 = vpow.pop %v1756
        %v1758 = vmul.f32 %v1720, 1.442695
        %v1759 = vpow.pop %v1758
        %v1760 = vmul.f32 %v1721, 1.442695
        %v1761 = vpow.pop %v1760
        %v1762 = vmul.f32 %v1722, 1.442695
        %v1763 = vpow.pop %v1762
        %v1764 = vmul.f32 %v1723, 1.442695
        %v1765 = vpow.pop %v1764
        %v1766 = vmul.f32 %v1724, 1.442695
        %v1767 = vpow.pop %v1766
        %v1768 = vmul.f32 %v1725, 1.442695
        %v1769 = vpow.pop %v1768
        %v1770 = vmul.f32 %v1726, 1.442695
        %v1771 = vpow.pop %v1770
        %v1772 = vmul.f32 %v1727, 1.442695
        %v1773 = vpow.pop %v1772
        %v1774 = vmul.f32 %v1728, 1.442695
        %v1775 = vpow.pop %v1774
        %v1776 = vmul.f32 %v1729, 1.442695
        %v1777 = vpow.pop %v1776
        %v1778 = vmul.f32 %v1730, 1.442695
        %v1779 = vpow.pop %v1778
        %v1780 = vmul.f32 %v1731, 1.442695
        %v1781 = vpow.pop %v1780
        %v1782 = vmul.f32 %v1732, 1.442695
        %v1783 = vpow.pop %v1782
        %v1784 = vmul.f32 %v1733, 1.442695
        %v1785 = vpow.pop %v1784
        %v1786 = vmul.f32 %v1734, 1.442695
        %v1787 = vpow.pop %v1786
        %v1788 = vmul.f32 %v1735, 1.442695
        %v1789 = vpow.pop %v1788
        %v1790 = vmul.f32 %v1736, 1.442695
        %v1791 = vpow.pop %v1790
        %v1792 = vmul.f32 %v1737, 1.442695
        %v1793 = vpow.pop %v1792
        %v1794 = vmul.f32 %v1738, 1.442695
        %v1795 = vpow.pop %v1794
        %v1796 = vmul.f32 %v1739, 1.442695
        %v1797 = vpow.pop %v1796
        %v1798 = vmul.f32 %v1740, 1.442695
        %v1799 = vpow.pop %v1798
        %v1800 = vmul.f32 %v1741, 1.442695
        %v1801 = vpow.pop %v1800
        %v1802 = vmul.f32 %v1742, 1.442695
        %v1803 = vpow.pop %v1802
        %v1804 = vmul.f32 %v1743, 1.442695
        %v1805 = vpow.pop %v1804
        %v1806 = vmul.f32 %v1744, 1.442695
        %v1807 = vpow.pop %v1806
        %v1808 = vmul.f32 %v1745, 1.442695
        %v1809 = vpow.pop %v1808
        %v1810 = vadd.f32 %v1747, 1.0
        %v1811 = vadd.f32 %v1749, 1.0
        %v1812 = vadd.f32 %v1751, 1.0
        %v1813 = vadd.f32 %v1753, 1.0
        %v1814 = vadd.f32 %v1755, 1.0
        %v1815 = vadd.f32 %v1757, 1.0
        %v1816 = vadd.f32 %v1759, 1.0
        %v1817 = vadd.f32 %v1761, 1.0
        %v1818 = vadd.f32 %v1763, 1.0
        %v1819 = vadd.f32 %v1765, 1.0
        %v1820 = vadd.f32 %v1767, 1.0
        %v1821 = vadd.f32 %v1769, 1.0
        %v1822 = vadd.f32 %v1771, 1.0
        %v1823 = vadd.f32 %v1773, 1.0
        %v1824 = vadd.f32 %v1775, 1.0
        %v1825 = vadd.f32 %v1777, 1.0
        %v1826 = vadd.f32 %v1779, 1.0
        %v1827 = vadd.f32 %v1781, 1.0
        %v1828 = vadd.f32 %v1783, 1.0
        %v1829 = vadd.f32 %v1785, 1.0
        %v1830 = vadd.f32 %v1787, 1.0
        %v1831 = vadd.f32 %v1789, 1.0
        %v1832 = vadd.f32 %v1791, 1.0
        %v1833 = vadd.f32 %v1793, 1.0
        %v1834 = vadd.f32 %v1795, 1.0
        %v1835 = vadd.f32 %v1797, 1.0
        %v1836 = vadd.f32 %v1799, 1.0
        %v1837 = vadd.f32 %v1801, 1.0
        %v1838 = vadd.f32 %v1803, 1.0
        %v1839 = vadd.f32 %v1805, 1.0
        %v1840 = vadd.f32 %v1807, 1.0
        %v1841 = vadd.f32 %v1809, 1.0
        %v1842 = vrcp.pop %v1810
        %v1843 = vmul.f32 1.0, %v1842
        %v1844 = vrcp.pop %v1811
        %v1845 = vmul.f32 1.0, %v1844
        %v1846 = vrcp.pop %v1812
        %v1847 = vmul.f32 1.0, %v1846
        %v1848 = vrcp.pop %v1813
        %v1849 = vmul.f32 1.0, %v1848
        %v1850 = vrcp.pop %v1814
        %v1851 = vmul.f32 1.0, %v1850
        %v1852 = vrcp.pop %v1815
        %v1853 = vmul.f32 1.0, %v1852
        %v1854 = vrcp.pop %v1816
        %v1855 = vmul.f32 1.0, %v1854
        %v1856 = vrcp.pop %v1817
        %v1857 = vmul.f32 1.0, %v1856
        %v1858 = vrcp.pop %v1818
        %v1859 = vmul.f32 1.0, %v1858
        %v1860 = vrcp.pop %v1819
        %v1861 = vmul.f32 1.0, %v1860
        %v1862 = vrcp.pop %v1820
        %v1863 = vmul.f32 1.0, %v1862
        %v1864 = vrcp.pop %v1821
        %v1865 = vmul.f32 1.0, %v1864
        %v1866 = vrcp.pop %v1822
        %v1867 = vmul.f32 1.0, %v1866
        %v1868 = vrcp.pop %v1823
        %v1869 = vmul.f32 1.0, %v1868
        %v1870 = vrcp.pop %v1824
        %v1871 = vmul.f32 1.0, %v1870
        %v1872 = vrcp.pop %v1825
        %v1873 = vmul.f32 1.0, %v1872
        %v1874 = vrcp.pop %v1826
        %v1875 = vmul.f32 1.0, %v1874
        %v1876 = vrcp.pop %v1827
        %v1877 = vmul.f32 1.0, %v1876
        %v1878 = vrcp.pop %v1828
        %v1879 = vmul.f32 1.0, %v1878
        %v1880 = vrcp.pop %v1829
        %v1881 = vmul.f32 1.0, %v1880
        %v1882 = vrcp.pop %v1830
        %v1883 = vmul.f32 1.0, %v1882
        %v1884 = vrcp.pop %v1831
        %v1885 = vmul.f32 1.0, %v1884
        %v1886 = vrcp.pop %v1832
        %v1887 = vmul.f32 1.0, %v1886
        %v1888 = vrcp.pop %v1833
        %v1889 = vmul.f32 1.0, %v1888
        %v1890 = vrcp.pop %v1834
        %v1891 = vmul.f32 1.0, %v1890
        %v1892 = vrcp.pop %v1835
        %v1893 = vmul.f32 1.0, %v1892
        %v1894 = vrcp.pop %v1836
        %v1895 = vmul.f32 1.0, %v1894
        %v1896 = vrcp.pop %v1837
        %v1897 = vmul.f32 1.0, %v1896
        %v1898 = vrcp.pop %v1838
        %v1899 = vmul.f32 1.0, %v1898
        %v1900 = vrcp.pop %v1839
        %v1901 = vmul.f32 1.0, %v1900
        %v1902 = vrcp.pop %v1840
        %v1903 = vmul.f32 1.0, %v1902
        %v1904 = vrcp.pop %v1841
        %v1905 = vmul.f32 1.0, %v1904
        %v1906 = vlaneseq
        %v1907 = vshrl.u32 %v1906, 7
        %v1908 = vsub.s32 0, %v1907
        %v1909 = vrot.slane %v1843, %v1908
        %v1910 = vlaneseq
        %v1911 = vshrl.u32 %v1910, 7
        %v1912 = vsub.s32 0, %v1911
        %v1913 = vrot.slane %v1845, %v1912
        %v1914 = vlaneseq
        %v1915 = vshrl.u32 %v1914, 7
        %v1916 = vsub.s32 0, %v1915
        %v1917 = vrot.slane %v1847, %v1916
        %v1918 = vlaneseq
        %v1919 = vshrl.u32 %v1918, 7
        %v1920 = vsub.s32 0, %v1919
        %v1921 = vrot.slane %v1849, %v1920
        %v1922 = vlaneseq
        %v1923 = vshrl.u32 %v1922, 7
        %v1924 = vsub.s32 0, %v1923
        %v1925 = vrot.slane %v1851, %v1924
        %v1926 = vlaneseq
        %v1927 = vshrl.u32 %v1926, 7
        %v1928 = vsub.s32 0, %v1927
        %v1929 = vrot.slane %v1853, %v1928
        %v1930 = vlaneseq
        %v1931 = vshrl.u32 %v1930, 7
        %v1932 = vsub.s32 0, %v1931
        %v1933 = vrot.slane %v1855, %v1932
        %v1934 = vlaneseq
        %v1935 = vshrl.u32 %v1934, 7
        %v1936 = vsub.s32 0, %v1935
        %v1937 = vrot.slane %v1857, %v1936
        %v1938 = vlaneseq
        %v1939 = vshrl.u32 %v1938, 7
        %v1940 = vsub.s32 0, %v1939
        %v1941 = vrot.slane %v1859, %v1940
        %v1942 = vlaneseq
        %v1943 = vshrl.u32 %v1942, 7
        %v1944 = vsub.s32 0, %v1943
        %v1945 = vrot.slane %v1861, %v1944
        %v1946 = vlaneseq
        %v1947 = vshrl.u32 %v1946, 7
        %v1948 = vsub.s32 0, %v1947
        %v1949 = vrot.slane %v1863, %v1948
        %v1950 = vlaneseq
        %v1951 = vshrl.u32 %v1950, 7
        %v1952 = vsub.s32 0, %v1951
        %v1953 = vrot.slane %v1865, %v1952
        %v1954 = vlaneseq
        %v1955 = vshrl.u32 %v1954, 7
        %v1956 = vsub.s32 0, %v1955
        %v1957 = vrot.slane %v1867, %v1956
        %v1958 = vlaneseq
        %v1959 = vshrl.u32 %v1958, 7
        %v1960 = vsub.s32 0, %v1959
        %v1961 = vrot.slane %v1869, %v1960
        %v1962 = vlaneseq
        %v1963 = vshrl.u32 %v1962, 7
        %v1964 = vsub.s32 0, %v1963
        %v1965 = vrot.slane %v1871, %v1964
        %v1966 = vlaneseq
        %v1967 = vshrl.u32 %v1966, 7
        %v1968 = vsub.s32 0, %v1967
        %v1969 = vrot.slane %v1873, %v1968
        %v1970 = vlaneseq
        %v1971 = vshrl.u32 %v1970, 7
        %v1972 = vsub.s32 0, %v1971
        %v1973 = vrot.slane %v1875, %v1972
        %v1974 = vlaneseq
        %v1975 = vshrl.u32 %v1974, 7
        %v1976 = vsub.s32 0, %v1975
        %v1977 = vrot.slane %v1877, %v1976
        %v1978 = vlaneseq
        %v1979 = vshrl.u32 %v1978, 7
        %v1980 = vsub.s32 0, %v1979
        %v1981 = vrot.slane %v1879, %v1980
        %v1982 = vlaneseq
        %v1983 = vshrl.u32 %v1982, 7
        %v1984 = vsub.s32 0, %v1983
        %v1985 = vrot.slane %v1881, %v1984
        %v1986 = vlaneseq
        %v1987 = vshrl.u32 %v1986, 7
        %v1988 = vsub.s32 0, %v1987
        %v1989 = vrot.slane %v1883, %v1988
        %v1990 = vlaneseq
        %v1991 = vshrl.u32 %v1990, 7
        %v1992 = vsub.s32 0, %v1991
        %v1993 = vrot.slane %v1885, %v1992
        %v1994 = vlaneseq
        %v1995 = vshrl.u32 %v1994, 7
        %v1996 = vsub.s32 0, %v1995
        %v1997 = vrot.slane %v1887, %v1996
        %v1998 = vlaneseq
        %v1999 = vshrl.u32 %v1998, 7
        %v2000 = vsub.s32 0, %v1999
        %v2001 = vrot.slane %v1889, %v2000
        %v2002 = vlaneseq
        %v2003 = vshrl.u32 %v2002, 7
        %v2004 = vsub.s32 0, %v2003
        %v2005 = vrot.slane %v1891, %v2004
        %v2006 = vlaneseq
        %v2007 = vshrl.u32 %v2006, 7
        %v2008 = vsub.s32 0, %v2007
        %v2009 = vrot.slane %v1893, %v2008
        %v2010 = vlaneseq
        %v2011 = vshrl.u32 %v2010, 7
        %v2012 = vsub.s32 0, %v2011
        %v2013 = vrot.slane %v1895, %v2012
        %v2014 = vlaneseq
        %v2015 = vshrl.u32 %v2014, 7
        %v2016 = vsub.s32 0, %v2015
        %v2017 = vrot.slane %v1897, %v2016
        %v2018 = vlaneseq
        %v2019 = vshrl.u32 %v2018, 7
        %v2020 = vsub.s32 0, %v2019
        %v2021 = vrot.slane %v1899, %v2020
        %v2022 = vlaneseq
        %v2023 = vshrl.u32 %v2022, 7
        %v2024 = vsub.s32 0, %v2023
        %v2025 = vrot.slane %v1901, %v2024
        %v2026 = vlaneseq
        %v2027 = vshrl.u32 %v2026, 7
        %v2028 = vsub.s32 0, %v2027
        %v2029 = vrot.slane %v1903, %v2028
        %v2030 = vlaneseq
        %v2031 = vshrl.u32 %v2030, 7
        %v2032 = vsub.s32 0, %v2031
        %v2033 = vrot.slane %v1905, %v2032
        %v2034 = vmul.f32 %v240, %v1909
        %v2035 = vmul.f32 %v241, %v1909
        %v2036 = vmul.f32 %v242, %v1913
        %v2037 = vmul.f32 %v243, %v1913
        %v2038 = vmul.f32 %v244, %v1917
        %v2039 = vmul.f32 %v245, %v1917
        %v2040 = vmul.f32 %v246, %v1921
        %v2041 = vmul.f32 %v247, %v1921
        %v2042 = vmul.f32 %v248, %v1925
        %v2043 = vmul.f32 %v249, %v1925
        %v2044 = vmul.f32 %v250, %v1929
        %v2045 = vmul.f32 %v251, %v1929
        %v2046 = vmul.f32 %v252, %v1933
        %v2047 = vmul.f32 %v253, %v1933
        %v2048 = vmul.f32 %v254, %v1937
        %v2049 = vmul.f32 %v255, %v1937
        %v2050 = vmul.f32 %v256, %v1941
        %v2051 = vmul.f32 %v257, %v1941
        %v2052 = vmul.f32 %v258, %v1945
        %v2053 = vmul.f32 %v259, %v1945
        %v2054 = vmul.f32 %v260, %v1949
        %v2055 = vmul.f32 %v261, %v1949
        %v2056 = vmul.f32 %v262, %v1953
        %v2057 = vmul.f32 %v263, %v1953
        %v2058 = vmul.f32 %v264, %v1957
        %v2059 = vmul.f32 %v265, %v1957
        %v2060 = vmul.f32 %v266, %v1961
        %v2061 = vmul.f32 %v267, %v1961
        %v2062 = vmul.f32 %v268, %v1965
        %v2063 = vmul.f32 %v269, %v1965
        %v2064 = vmul.f32 %v270, %v1969
        %v2065 = vmul.f32 %v271, %v1969
        %v2066 = vmul.f32 %v272, %v1973
        %v2067 = vmul.f32 %v273, %v1973
        %v2068 = vmul.f32 %v274, %v1977
        %v2069 = vmul.f32 %v275, %v1977
        %v2070 = vmul.f32 %v276, %v1981
        %v2071 = vmul.f32 %v277, %v1981
        %v2072 = vmul.f32 %v278, %v1985
        %v2073 = vmul.f32 %v279, %v1985
        %v2074 = vmul.f32 %v280, %v1989
        %v2075 = vmul.f32 %v281, %v1989
        %v2076 = vmul.f32 %v282, %v1993
        %v2077 = vmul.f32 %v283, %v1993
        %v2078 = vmul.f32 %v284, %v1997
        %v2079 = vmul.f32 %v285, %v1997
        %v2080 = vmul.f32 %v286, %v2001
        %v2081 = vmul.f32 %v287, %v2001
        %v2082 = vmul.f32 %v288, %v2005
        %v2083 = vmul.f32 %v289, %v2005
        %v2084 = vmul.f32 %v290, %v2009
        %v2085 = vmul.f32 %v291, %v2009
        %v2086 = vmul.f32 %v292, %v2013
        %v2087 = vmul.f32 %v293, %v2013
        %v2088 = vmul.f32 %v294, %v2017
        %v2089 = vmul.f32 %v295, %v2017
        %v2090 = vmul.f32 %v296, %v2021
        %v2091 = vmul.f32 %v297, %v2021
        %v2092 = vmul.f32 %v298, %v2025
        %v2093 = vmul.f32 %v299, %v2025
        %v2094 = vmul.f32 %v300, %v2029
        %v2095 = vmul.f32 %v301, %v2029
        %v2096 = vmul.f32 %v302, %v2033
        %v2097 = vmul.f32 %v303, %v2033
        %v2098 = vsel %vm304, %v2034, 0.0
        %v2099 = vsel %vm304, %v2036, 0.0
        %v2100 = vadd.f32 %v2098, %v2099
        %v2101 = vsel %vm304, %v2038, 0.0
        %v2102 = vadd.f32 %v2100, %v2101
        %v2103 = vsel %vm304, %v2040, 0.0
        %v2104 = vadd.f32 %v2102, %v2103
        %v2105 = vsel %vm304, %v2042, 0.0
        %v2106 = vadd.f32 %v2104, %v2105
        %v2107 = vsel %vm304, %v2044, 0.0
        %v2108 = vadd.f32 %v2106, %v2107
        %v2109 = vsel %vm304, %v2046, 0.0
        %v2110 = vadd.f32 %v2108, %v2109
        %v2111 = vsel %vm304, %v2048, 0.0
        %v2112 = vadd.f32 %v2110, %v2111
        %v2113 = vsel %vm304, %v2050, 0.0
        %v2114 = vadd.f32 %v2112, %v2113
        %v2115 = vsel %vm304, %v2052, 0.0
        %v2116 = vadd.f32 %v2114, %v2115
        %v2117 = vsel %vm304, %v2054, 0.0
        %v2118 = vadd.f32 %v2116, %v2117
        %v2119 = vsel %vm304, %v2056, 0.0
        %v2120 = vadd.f32 %v2118, %v2119
        %v2121 = vsel %vm304, %v2058, 0.0
        %v2122 = vadd.f32 %v2120, %v2121
        %v2123 = vsel %vm304, %v2060, 0.0
        %v2124 = vadd.f32 %v2122, %v2123
        %v2125 = vsel %vm304, %v2062, 0.0
        %v2126 = vadd.f32 %v2124, %v2125
        %v2127 = vsel %vm304, %v2064, 0.0
        %v2128 = vadd.f32 %v2126, %v2127
        %v2129 = vsel %vm304, %v2066, 0.0
        %v2130 = vadd.f32 %v2128, %v2129
        %v2131 = vsel %vm304, %v2068, 0.0
        %v2132 = vadd.f32 %v2130, %v2131
        %v2133 = vsel %vm304, %v2070, 0.0
        %v2134 = vadd.f32 %v2132, %v2133
        %v2135 = vsel %vm304, %v2072, 0.0
        %v2136 = vadd.f32 %v2134, %v2135
        %v2137 = vsel %vm304, %v2074, 0.0
        %v2138 = vadd.f32 %v2136, %v2137
        %v2139 = vsel %vm304, %v2076, 0.0
        %v2140 = vadd.f32 %v2138, %v2139
        %v2141 = vsel %vm304, %v2078, 0.0
        %v2142 = vadd.f32 %v2140, %v2141
        %v2143 = vsel %vm304, %v2080, 0.0
        %v2144 = vadd.f32 %v2142, %v2143
        %v2145 = vsel %vm304, %v2082, 0.0
        %v2146 = vadd.f32 %v2144, %v2145
        %v2147 = vsel %vm304, %v2084, 0.0
        %v2148 = vadd.f32 %v2146, %v2147
        %v2149 = vsel %vm304, %v2086, 0.0
        %v2150 = vadd.f32 %v2148, %v2149
        %v2151 = vsel %vm304, %v2088, 0.0
        %v2152 = vadd.f32 %v2150, %v2151
        %v2153 = vsel %vm304, %v2090, 0.0
        %v2154 = vadd.f32 %v2152, %v2153
        %v2155 = vsel %vm304, %v2092, 0.0
        %v2156 = vadd.f32 %v2154, %v2155
        %v2157 = vsel %vm304, %v2094, 0.0
        %v2158 = vadd.f32 %v2156, %v2157
        %v2159 = vsel %vm304, %v2096, 0.0
        %v2160 = vadd.f32 %v2158, %v2159
        %v2161 = vsel %vm304, %v2035, 0.0
        %v2162 = vsel %vm304, %v2037, 0.0
        %v2163 = vadd.f32 %v2161, %v2162
        %v2164 = vsel %vm304, %v2039, 0.0
        %v2165 = vadd.f32 %v2163, %v2164
        %v2166 = vsel %vm304, %v2041, 0.0
        %v2167 = vadd.f32 %v2165, %v2166
        %v2168 = vsel %vm304, %v2043, 0.0
        %v2169 = vadd.f32 %v2167, %v2168
        %v2170 = vsel %vm304, %v2045, 0.0
        %v2171 = vadd.f32 %v2169, %v2170
        %v2172 = vsel %vm304, %v2047, 0.0
        %v2173 = vadd.f32 %v2171, %v2172
        %v2174 = vsel %vm304, %v2049, 0.0
        %v2175 = vadd.f32 %v2173, %v2174
        %v2176 = vsel %vm304, %v2051, 0.0
        %v2177 = vadd.f32 %v2175, %v2176
        %v2178 = vsel %vm304, %v2053, 0.0
        %v2179 = vadd.f32 %v2177, %v2178
        %v2180 = vsel %vm304, %v2055, 0.0
        %v2181 = vadd.f32 %v2179, %v2180
        %v2182 = vsel %vm304, %v2057, 0.0
        %v2183 = vadd.f32 %v2181, %v2182
        %v2184 = vsel %vm304, %v2059, 0.0
        %v2185 = vadd.f32 %v2183, %v2184
        %v2186 = vsel %vm304, %v2061, 0.0
        %v2187 = vadd.f32 %v2185, %v2186
        %v2188 = vsel %vm304, %v2063, 0.0
        %v2189 = vadd.f32 %v2187, %v2188
        %v2190 = vsel %vm304, %v2065, 0.0
        %v2191 = vadd.f32 %v2189, %v2190
        %v2192 = vsel %vm304, %v2067, 0.0
        %v2193 = vadd.f32 %v2191, %v2192
        %v2194 = vsel %vm304, %v2069, 0.0
        %v2195 = vadd.f32 %v2193, %v2194
        %v2196 = vsel %vm304, %v2071, 0.0
        %v2197 = vadd.f32 %v2195, %v2196
        %v2198 = vsel %vm304, %v2073, 0.0
        %v2199 = vadd.f32 %v2197, %v2198
        %v2200 = vsel %vm304, %v2075, 0.0
        %v2201 = vadd.f32 %v2199, %v2200
        %v2202 = vsel %vm304, %v2077, 0.0
        %v2203 = vadd.f32 %v2201, %v2202
        %v2204 = vsel %vm304, %v2079, 0.0
        %v2205 = vadd.f32 %v2203, %v2204
        %v2206 = vsel %vm304, %v2081, 0.0
        %v2207 = vadd.f32 %v2205, %v2206
        %v2208 = vsel %vm304, %v2083, 0.0
        %v2209 = vadd.f32 %v2207, %v2208
        %v2210 = vsel %vm304, %v2085, 0.0
        %v2211 = vadd.f32 %v2209, %v2210
        %v2212 = vsel %vm304, %v2087, 0.0
        %v2213 = vadd.f32 %v2211, %v2212
        %v2214 = vsel %vm304, %v2089, 0.0
        %v2215 = vadd.f32 %v2213, %v2214
        %v2216 = vsel %vm304, %v2091, 0.0
        %v2217 = vadd.f32 %v2215, %v2216
        %v2218 = vsel %vm304, %v2093, 0.0
        %v2219 = vadd.f32 %v2217, %v2218
        %v2220 = vsel %vm304, %v2095, 0.0
        %v2221 = vadd.f32 %v2219, %v2220
        %v2222 = vsel %vm304, %v2097, 0.0
        %v2223 = vadd.f32 %v2221, %v2222
        %v2224 = vmul.f32 %v2160, 0.03125
        %v2225 = vmul.f32 %v2223, 0.03125
        %v2226 = vsel %vm304, %v2034, -inf
        %v2227 = vsel %vm304, %v2036, -inf
        %v2228 = vsel %vm304, %v2038, -inf
        %v2229 = vmax.f32 %v2226, %v2228
        %v2230 = vsel %vm304, %v2040, -inf
        %v2231 = vmax.f32 %v2227, %v2230
        %v2232 = vsel %vm304, %v2042, -inf
        %v2233 = vmax.f32 %v2229, %v2232
        %v2234 = vsel %vm304, %v2044, -inf
        %v2235 = vmax.f32 %v2231, %v2234
        %v2236 = vsel %vm304, %v2046, -inf
        %v2237 = vmax.f32 %v2233, %v2236
        %v2238 = vsel %vm304, %v2048, -inf
        %v2239 = vmax.f32 %v2235, %v2238
        %v2240 = vsel %vm304, %v2050, -inf
        %v2241 = vmax.f32 %v2237, %v2240
        %v2242 = vsel %vm304, %v2052, -inf
        %v2243 = vmax.f32 %v2239, %v2242
        %v2244 = vsel %vm304, %v2054, -inf
        %v2245 = vmax.f32 %v2241, %v2244
        %v2246 = vsel %vm304, %v2056, -inf
        %v2247 = vmax.f32 %v2243, %v2246
        %v2248 = vsel %vm304, %v2058, -inf
        %v2249 = vmax.f32 %v2245, %v2248
        %v2250 = vsel %vm304, %v2060, -inf
        %v2251 = vmax.f32 %v2247, %v2250
        %v2252 = vsel %vm304, %v2062, -inf
        %v2253 = vmax.f32 %v2249, %v2252
        %v2254 = vsel %vm304, %v2064, -inf
        %v2255 = vmax.f32 %v2251, %v2254
        %v2256 = vsel %vm304, %v2066, -inf
        %v2257 = vmax.f32 %v2253, %v2256
        %v2258 = vsel %vm304, %v2068, -inf
        %v2259 = vmax.f32 %v2255, %v2258
        %v2260 = vsel %vm304, %v2070, -inf
        %v2261 = vmax.f32 %v2257, %v2260
        %v2262 = vsel %vm304, %v2072, -inf
        %v2263 = vmax.f32 %v2259, %v2262
        %v2264 = vsel %vm304, %v2074, -inf
        %v2265 = vmax.f32 %v2261, %v2264
        %v2266 = vsel %vm304, %v2076, -inf
        %v2267 = vmax.f32 %v2263, %v2266
        %v2268 = vsel %vm304, %v2078, -inf
        %v2269 = vmax.f32 %v2265, %v2268
        %v2270 = vsel %vm304, %v2080, -inf
        %v2271 = vmax.f32 %v2267, %v2270
        %v2272 = vsel %vm304, %v2082, -inf
        %v2273 = vmax.f32 %v2269, %v2272
        %v2274 = vsel %vm304, %v2084, -inf
        %v2275 = vmax.f32 %v2271, %v2274
        %v2276 = vsel %vm304, %v2086, -inf
        %v2277 = vmax.f32 %v2273, %v2276
        %v2278 = vsel %vm304, %v2088, -inf
        %v2279 = vmax.f32 %v2275, %v2278
        %v2280 = vsel %vm304, %v2090, -inf
        %v2281 = vmax.f32 %v2277, %v2280
        %v2282 = vsel %vm304, %v2092, -inf
        %v2283 = vmax.f32 %v2279, %v2282
        %v2284 = vsel %vm304, %v2094, -inf
        %v2285 = vmax.f32 %v2281, %v2284
        %v2286 = vsel %vm304, %v2096, -inf
        %v2287 = vmax.f32 %v2283, %v2286
        %v2288 = vmax.f32 %v2285, %v2287
        %v2289 = vsel %vm304, %v2035, -inf
        %v2290 = vsel %vm304, %v2037, -inf
        %v2291 = vsel %vm304, %v2039, -inf
        %v2292 = vmax.f32 %v2289, %v2291
        %v2293 = vsel %vm304, %v2041, -inf
        %v2294 = vmax.f32 %v2290, %v2293
        %v2295 = vsel %vm304, %v2043, -inf
        %v2296 = vmax.f32 %v2292, %v2295
        %v2297 = vsel %vm304, %v2045, -inf
        %v2298 = vmax.f32 %v2294, %v2297
        %v2299 = vsel %vm304, %v2047, -inf
        %v2300 = vmax.f32 %v2296, %v2299
        %v2301 = vsel %vm304, %v2049, -inf
        %v2302 = vmax.f32 %v2298, %v2301
        %v2303 = vsel %vm304, %v2051, -inf
        %v2304 = vmax.f32 %v2300, %v2303
        %v2305 = vsel %vm304, %v2053, -inf
        %v2306 = vmax.f32 %v2302, %v2305
        %v2307 = vsel %vm304, %v2055, -inf
        %v2308 = vmax.f32 %v2304, %v2307
        %v2309 = vsel %vm304, %v2057, -inf
        %v2310 = vmax.f32 %v2306, %v2309
        %v2311 = vsel %vm304, %v2059, -inf
        %v2312 = vmax.f32 %v2308, %v2311
        %v2313 = vsel %vm304, %v2061, -inf
        %v2314 = vmax.f32 %v2310, %v2313
        %v2315 = vsel %vm304, %v2063, -inf
        %v2316 = vmax.f32 %v2312, %v2315
        %v2317 = vsel %vm304, %v2065, -inf
        %v2318 = vmax.f32 %v2314, %v2317
        %v2319 = vsel %vm304, %v2067, -inf
        %v2320 = vmax.f32 %v2316, %v2319
        %v2321 = vsel %vm304, %v2069, -inf
        %v2322 = vmax.f32 %v2318, %v2321
        %v2323 = vsel %vm304, %v2071, -inf
        %v2324 = vmax.f32 %v2320, %v2323
        %v2325 = vsel %vm304, %v2073, -inf
        %v2326 = vmax.f32 %v2322, %v2325
        %v2327 = vsel %vm304, %v2075, -inf
        %v2328 = vmax.f32 %v2324, %v2327
        %v2329 = vsel %vm304, %v2077, -inf
        %v2330 = vmax.f32 %v2326, %v2329
        %v2331 = vsel %vm304, %v2079, -inf
        %v2332 = vmax.f32 %v2328, %v2331
        %v2333 = vsel %vm304, %v2081, -inf
        %v2334 = vmax.f32 %v2330, %v2333
        %v2335 = vsel %vm304, %v2083, -inf
        %v2336 = vmax.f32 %v2332, %v2335
        %v2337 = vsel %vm304, %v2085, -inf
        %v2338 = vmax.f32 %v2334, %v2337
        %v2339 = vsel %vm304, %v2087, -inf
        %v2340 = vmax.f32 %v2336, %v2339
        %v2341 = vsel %vm304, %v2089, -inf
        %v2342 = vmax.f32 %v2338, %v2341
        %v2343 = vsel %vm304, %v2091, -inf
        %v2344 = vmax.f32 %v2340, %v2343
        %v2345 = vsel %vm304, %v2093, -inf
        %v2346 = vmax.f32 %v2342, %v2345
        %v2347 = vsel %vm304, %v2095, -inf
        %v2348 = vmax.f32 %v2344, %v2347
        %v2349 = vsel %vm304, %v2097, -inf
        %v2350 = vmax.f32 %v2346, %v2349
        %v2351 = vmax.f32 %v2348, %v2350
        %vm2352 = vcmask 179200
        %2353 = vst.msk [vmem:[#allocation2] sm:$0xff] %vm2352, 0.0
        %2354 = vst.msk [vmem:[#allocation2 + $0x8] sm:$0xff] %vm2352, 0.0
        %vm2355 = vcmask 177152
        %2356 = vst.msk [vmem:[#allocation2 + $0x10] sm:$0x3f] %vm2355, 0.0
        %2357 = vst.msk [vmem:[#allocation3] sm:$0xff] %vm2352, 0.0
        %2358 = vst.msk [vmem:[#allocation3 + $0x8] sm:$0xff] %vm2352, 0.0
        %2359 = vst.msk [vmem:[#allocation3 + $0x10] sm:$0x3f] %vm2355, 0.0
        %2362 = vrot.lane.b32.xlu0 %v2224, 3
        %v2363 = vpop.permute.xlu0 %2362
        %2364 = vrot.lane.b32.xlu0 %v2225, 3
        %v2365 = vpop.permute.xlu0 %2364
        %vm2368 = vcmask 154648
        %2369 = vst.msk [vmem:[#allocation2 + $0x3] sm:$0xff] %vm2368, %v2363
        %2370 = vst.msk [vmem:[#allocation2 + $0xb] sm:$0xff] %vm2368, %v2365
        %2373 = vrot.lane.b32.xlu0 %v2288, 3
        %v2374 = vpop.permute.xlu0 %2373
        %2375 = vrot.lane.b32.xlu0 %v2351, 3
        %v2376 = vpop.permute.xlu0 %2375
        %2379 = vst.msk [vmem:[#allocation3 + $0x3] sm:$0xff] %vm2368, %v2374
        %2380 = vst.msk [vmem:[#allocation3 + $0xb] sm:$0xff] %vm2368, %v2376
        %s2381 = sld [smem:[#allocation4]]
        %v2382 = vstv %s2381
        %v2383 = vadd.f32 %v2382, 0.0
        %s2384 = sld [smem:[#allocation5]]
        %v2385 = vld [vmem:[#allocation2] sm:$0xff]
        %v2386 = vld [vmem:[#allocation2 + $0x8] sm:$0xff]
        %v2387 = vstv %s2384
        %v2388 = vmul.f32 %v2387, %v2385
        %v2389 = vmul.f32 %v2387, %v2386
        %v2390 = vadd.f32 %v2383, %v2388
        %v2391 = vadd.f32 %v2383, %v2389
        %s2392 = sld [smem:[#allocation5 + $0x1]]
        %v2393 = vstv %s2392
        %v2394 = vmul.f32 %v2393, %v2385
        %v2395 = vmul.f32 %v2393, %v2386
        %2398 = vrot.lane.b32.xlu0 %v2394, 127
        %v2399 = vpop.permute.xlu0 %2398
        %2400 = vrot.lane.b32.xlu0 %v2395, 127
        %v2401 = vpop.permute.xlu0 %2400
        %v2404 = vadd.f32 %v2390, %v2399
        %v2405 = vadd.f32 %v2391, %v2401
        %s2406 = sld [smem:[#allocation5 + $0x2]]
        %v2407 = vstv %s2406
        %v2408 = vmul.f32 %v2407, %v2385
        %v2409 = vmul.f32 %v2407, %v2386
        %2412 = vrot.lane.b32.xlu0 %v2408, 126
        %v2413 = vpop.permute.xlu0 %2412
        %2414 = vrot.lane.b32.xlu0 %v2409, 126
        %v2415 = vpop.permute.xlu0 %2414
        %v2418 = vadd.f32 %v2404, %v2413
        %v2419 = vadd.f32 %v2405, %v2415
        %s2420 = sld [smem:[#allocation5 + $0x3]]
        %v2421 = vstv %s2420
        %v2422 = vmul.f32 %v2421, %v2385
        %v2423 = vmul.f32 %v2421, %v2386
        %2426 = vrot.lane.b32.xlu0 %v2422, 125
        %v2427 = vpop.permute.xlu0 %2426
        %2428 = vrot.lane.b32.xlu0 %v2423, 125
        %v2429 = vpop.permute.xlu0 %2428
        %v2432 = vadd.f32 %v2418, %v2427
        %v2433 = vadd.f32 %v2419, %v2429
        %s2434 = sld [smem:[#allocation5 + $0x4]]
        %v2435 = vstv %s2434
        %v2436 = vmul.f32 %v2435, %v2385
        %v2437 = vmul.f32 %v2435, %v2386
        %2440 = vrot.lane.b32.xlu0 %v2436, 124
        %v2441 = vpop.permute.xlu0 %2440
        %2442 = vrot.lane.b32.xlu0 %v2437, 124
        %v2443 = vpop.permute.xlu0 %2442
        %v2446 = vadd.f32 %v2432, %v2441
        %v2447 = vadd.f32 %v2433, %v2443
        %s2448 = sld [smem:[#allocation5 + $0x5]]
        %v2449 = vstv %s2448
        %v2450 = vmul.f32 %v2449, %v2385
        %v2451 = vmul.f32 %v2449, %v2386
        %2454 = vrot.lane.b32.xlu0 %v2450, 123
        %v2455 = vpop.permute.xlu0 %2454
        %2456 = vrot.lane.b32.xlu0 %v2451, 123
        %v2457 = vpop.permute.xlu0 %2456
        %v2460 = vadd.f32 %v2446, %v2455
        %v2461 = vadd.f32 %v2447, %v2457
        %s2462 = sld [smem:[#allocation5 + $0x6]]
        %v2463 = vstv %s2462
        %v2464 = vmul.f32 %v2463, %v2385
        %v2465 = vmul.f32 %v2463, %v2386
        %2468 = vrot.lane.b32.xlu0 %v2464, 122
        %v2469 = vpop.permute.xlu0 %2468
        %2470 = vrot.lane.b32.xlu0 %v2465, 122
        %v2471 = vpop.permute.xlu0 %2470
        %v2474 = vadd.f32 %v2460, %v2469
        %v2475 = vadd.f32 %v2461, %v2471
        %s2476 = sld [smem:[#allocation5 + $0x7]]
        %v2477 = vld [vmem:[#allocation2 + $0x1] sm:$0xff]
        %v2478 = vld [vmem:[#allocation2 + $0x9] sm:$0xff]
        %v2479 = vstv %s2476
        %v2480 = vmul.f32 %v2479, %v2477
        %v2481 = vmul.f32 %v2479, %v2478
        %v2482 = vadd.f32 %v2474, %v2480
        %v2483 = vadd.f32 %v2475, %v2481
        %s2484 = sld [smem:[#allocation5 + $0x8]]
        %v2485 = vstv %s2484
        %v2486 = vmul.f32 %v2485, %v2477
        %v2487 = vmul.f32 %v2485, %v2478
        %2490 = vrot.lane.b32.xlu0 %v2486, 127
        %v2491 = vpop.permute.xlu0 %2490
        %2492 = vrot.lane.b32.xlu0 %v2487, 127
        %v2493 = vpop.permute.xlu0 %2492
        %v2496 = vadd.f32 %v2482, %v2491
        %v2497 = vadd.f32 %v2483, %v2493
        %s2498 = sld [smem:[#allocation5 + $0x9]]
        %v2499 = vstv %s2498
        %v2500 = vmul.f32 %v2499, %v2477
        %v2501 = vmul.f32 %v2499, %v2478
        %2504 = vrot.lane.b32.xlu0 %v2500, 126
        %v2505 = vpop.permute.xlu0 %2504
        %2506 = vrot.lane.b32.xlu0 %v2501, 126
        %v2507 = vpop.permute.xlu0 %2506
        %v2510 = vadd.f32 %v2496, %v2505
        %v2511 = vadd.f32 %v2497, %v2507
        %s2512 = sld [smem:[#allocation5 + $0xa]]
        %v2513 = vstv %s2512
        %v2514 = vmul.f32 %v2513, %v2477
        %v2515 = vmul.f32 %v2513, %v2478
        %2518 = vrot.lane.b32.xlu0 %v2514, 125
        %v2519 = vpop.permute.xlu0 %2518
        %2520 = vrot.lane.b32.xlu0 %v2515, 125
        %v2521 = vpop.permute.xlu0 %2520
        %v2524 = vadd.f32 %v2510, %v2519
        %v2525 = vadd.f32 %v2511, %v2521
        %s2526 = sld [smem:[#allocation5 + $0xb]]
        %v2527 = vstv %s2526
        %v2528 = vmul.f32 %v2527, %v2477
        %v2529 = vmul.f32 %v2527, %v2478
        %2532 = vrot.lane.b32.xlu0 %v2528, 124
        %v2533 = vpop.permute.xlu0 %2532
        %2534 = vrot.lane.b32.xlu0 %v2529, 124
        %v2535 = vpop.permute.xlu0 %2534
        %v2538 = vadd.f32 %v2524, %v2533
        %v2539 = vadd.f32 %v2525, %v2535
        %s2540 = sld [smem:[#allocation5 + $0xc]]
        %v2541 = vstv %s2540
        %v2542 = vmul.f32 %v2541, %v2477
        %v2543 = vmul.f32 %v2541, %v2478
        %2546 = vrot.lane.b32.xlu0 %v2542, 123
        %v2547 = vpop.permute.xlu0 %2546
        %2548 = vrot.lane.b32.xlu0 %v2543, 123
        %v2549 = vpop.permute.xlu0 %2548
        %v2552 = vadd.f32 %v2538, %v2547
        %v2553 = vadd.f32 %v2539, %v2549
        %s2554 = sld [smem:[#allocation5 + $0xd]]
        %v2555 = vstv %s2554
        %v2556 = vmul.f32 %v2555, %v2477
        %v2557 = vmul.f32 %v2555, %v2478
        %2560 = vrot.lane.b32.xlu0 %v2556, 122
        %v2561 = vpop.permute.xlu0 %2560
        %2562 = vrot.lane.b32.xlu0 %v2557, 122
        %v2563 = vpop.permute.xlu0 %2562
        %v2566 = vadd.f32 %v2552, %v2561
        %v2567 = vadd.f32 %v2553, %v2563
        %s2568 = sld [smem:[#allocation5 + $0xe]]
        %v2569 = vld [vmem:[#allocation2 + $0x2] sm:$0xff]
        %v2570 = vld [vmem:[#allocation2 + $0xa] sm:$0xff]
        %v2571 = vstv %s2568
        %v2572 = vmul.f32 %v2571, %v2569
        %v2573 = vmul.f32 %v2571, %v2570
        %v2574 = vadd.f32 %v2566, %v2572
        %v2575 = vadd.f32 %v2567, %v2573
        %s2576 = sld [smem:[#allocation5 + $0xf]]
        %v2577 = vstv %s2576
        %v2578 = vmul.f32 %v2577, %v2569
        %v2579 = vmul.f32 %v2577, %v2570
        %2582 = vrot.lane.b32.xlu0 %v2578, 127
        %v2583 = vpop.permute.xlu0 %2582
        %2584 = vrot.lane.b32.xlu0 %v2579, 127
        %v2585 = vpop.permute.xlu0 %2584
        %v2588 = vadd.f32 %v2574, %v2583
        %v2589 = vadd.f32 %v2575, %v2585
        %s2590 = sld [smem:[#allocation5 + $0x10]]
        %v2591 = vstv %s2590
        %v2592 = vmul.f32 %v2591, %v2569
        %v2593 = vmul.f32 %v2591, %v2570
        %2596 = vrot.lane.b32.xlu0 %v2592, 126
        %v2597 = vpop.permute.xlu0 %2596
        %2598 = vrot.lane.b32.xlu0 %v2593, 126
        %v2599 = vpop.permute.xlu0 %2598
        %v2602 = vadd.f32 %v2588, %v2597
        %v2603 = vadd.f32 %v2589, %v2599
        %s2604 = sld [smem:[#allocation5 + $0x11]]
        %v2605 = vstv %s2604
        %v2606 = vmul.f32 %v2605, %v2569
        %v2607 = vmul.f32 %v2605, %v2570
        %2610 = vrot.lane.b32.xlu0 %v2606, 125
        %v2611 = vpop.permute.xlu0 %2610
        %2612 = vrot.lane.b32.xlu0 %v2607, 125
        %v2613 = vpop.permute.xlu0 %2612
        %v2616 = vadd.f32 %v2602, %v2611
        %v2617 = vadd.f32 %v2603, %v2613
        %s2618 = sld [smem:[#allocation5 + $0x12]]
        %v2619 = vstv %s2618
        %v2620 = vmul.f32 %v2619, %v2569
        %v2621 = vmul.f32 %v2619, %v2570
        %2624 = vrot.lane.b32.xlu0 %v2620, 124
        %v2625 = vpop.permute.xlu0 %2624
        %2626 = vrot.lane.b32.xlu0 %v2621, 124
        %v2627 = vpop.permute.xlu0 %2626
        %v2630 = vadd.f32 %v2616, %v2625
        %v2631 = vadd.f32 %v2617, %v2627
        %s2632 = sld [smem:[#allocation5 + $0x13]]
        %v2633 = vstv %s2632
        %v2634 = vmul.f32 %v2633, %v2569
        %v2635 = vmul.f32 %v2633, %v2570
        %2638 = vrot.lane.b32.xlu0 %v2634, 123
        %v2639 = vpop.permute.xlu0 %2638
        %2640 = vrot.lane.b32.xlu0 %v2635, 123
        %v2641 = vpop.permute.xlu0 %2640
        %v2644 = vadd.f32 %v2630, %v2639
        %v2645 = vadd.f32 %v2631, %v2641
        %s2646 = sld [smem:[#allocation5 + $0x14]]
        %v2647 = vstv %s2646
        %v2648 = vmul.f32 %v2647, %v2569
        %v2649 = vmul.f32 %v2647, %v2570
        %2652 = vrot.lane.b32.xlu0 %v2648, 122
        %v2653 = vpop.permute.xlu0 %2652
        %2654 = vrot.lane.b32.xlu0 %v2649, 122
        %v2655 = vpop.permute.xlu0 %2654
        %v2658 = vadd.f32 %v2644, %v2653
        %v2659 = vadd.f32 %v2645, %v2655
        %s2660 = sld [smem:[#allocation5 + $0x15]]
        %v2661 = vld [vmem:[#allocation2 + $0x3] sm:$0xff]
        %v2662 = vld [vmem:[#allocation2 + $0xb] sm:$0xff]
        %v2663 = vstv %s2660
        %v2664 = vmul.f32 %v2663, %v2661
        %v2665 = vmul.f32 %v2663, %v2662
        %v2666 = vadd.f32 %v2658, %v2664
        %v2667 = vadd.f32 %v2659, %v2665
        %s2668 = sld [smem:[#allocation5 + $0x16]]
        %v2669 = vstv %s2668
        %v2670 = vmul.f32 %v2669, %v2661
        %v2671 = vmul.f32 %v2669, %v2662
        %2674 = vrot.lane.b32.xlu0 %v2670, 127
        %v2675 = vpop.permute.xlu0 %2674
        %2676 = vrot.lane.b32.xlu0 %v2671, 127
        %v2677 = vpop.permute.xlu0 %2676
        %v2680 = vadd.f32 %v2666, %v2675
        %v2681 = vadd.f32 %v2667, %v2677
        %s2682 = sld [smem:[#allocation5 + $0x17]]
        %v2683 = vstv %s2682
        %v2684 = vmul.f32 %v2683, %v2661
        %v2685 = vmul.f32 %v2683, %v2662
        %2688 = vrot.lane.b32.xlu0 %v2684, 126
        %v2689 = vpop.permute.xlu0 %2688
        %2690 = vrot.lane.b32.xlu0 %v2685, 126
        %v2691 = vpop.permute.xlu0 %2690
        %v2694 = vadd.f32 %v2680, %v2689
        %v2695 = vadd.f32 %v2681, %v2691
        %s2696 = sld [smem:[#allocation5 + $0x18]]
        %v2697 = vstv %s2696
        %v2698 = vmul.f32 %v2697, %v2661
        %v2699 = vmul.f32 %v2697, %v2662
        %2702 = vrot.lane.b32.xlu0 %v2698, 125
        %v2703 = vpop.permute.xlu0 %2702
        %2704 = vrot.lane.b32.xlu0 %v2699, 125
        %v2705 = vpop.permute.xlu0 %2704
        %v2708 = vadd.f32 %v2694, %v2703
        %v2709 = vadd.f32 %v2695, %v2705
        %s2710 = sld [smem:[#allocation5 + $0x19]]
        %v2711 = vstv %s2710
        %v2712 = vmul.f32 %v2711, %v2661
        %v2713 = vmul.f32 %v2711, %v2662
        %2716 = vrot.lane.b32.xlu0 %v2712, 124
        %v2717 = vpop.permute.xlu0 %2716
        %2718 = vrot.lane.b32.xlu0 %v2713, 124
        %v2719 = vpop.permute.xlu0 %2718
        %v2722 = vadd.f32 %v2708, %v2717
        %v2723 = vadd.f32 %v2709, %v2719
        %s2724 = sld [smem:[#allocation5 + $0x1a]]
        %v2725 = vstv %s2724
        %v2726 = vmul.f32 %v2725, %v2661
        %v2727 = vmul.f32 %v2725, %v2662
        %2730 = vrot.lane.b32.xlu0 %v2726, 123
        %v2731 = vpop.permute.xlu0 %2730
        %2732 = vrot.lane.b32.xlu0 %v2727, 123
        %v2733 = vpop.permute.xlu0 %2732
        %v2736 = vadd.f32 %v2722, %v2731
        %v2737 = vadd.f32 %v2723, %v2733
        %s2738 = sld [smem:[#allocation5 + $0x1b]]
        %v2739 = vstv %s2738
        %v2740 = vmul.f32 %v2739, %v2661
        %v2741 = vmul.f32 %v2739, %v2662
        %2744 = vrot.lane.b32.xlu0 %v2740, 122
        %v2745 = vpop.permute.xlu0 %2744
        %2746 = vrot.lane.b32.xlu0 %v2741, 122
        %v2747 = vpop.permute.xlu0 %2746
        %v2750 = vadd.f32 %v2736, %v2745
        %v2751 = vadd.f32 %v2737, %v2747
        %s2752 = sld [smem:[#allocation5 + $0x1c]]
        %v2753 = vld [vmem:[#allocation2 + $0x4] sm:$0xff]
        %v2754 = vld [vmem:[#allocation2 + $0xc] sm:$0xff]
        %v2755 = vstv %s2752
        %v2756 = vmul.f32 %v2755, %v2753
        %v2757 = vmul.f32 %v2755, %v2754
        %v2758 = vadd.f32 %v2750, %v2756
        %v2759 = vadd.f32 %v2751, %v2757
        %s2760 = sld [smem:[#allocation5 + $0x1d]]
        %v2761 = vstv %s2760
        %v2762 = vmul.f32 %v2761, %v2753
        %v2763 = vmul.f32 %v2761, %v2754
        %2766 = vrot.lane.b32.xlu0 %v2762, 127
        %v2767 = vpop.permute.xlu0 %2766
        %2768 = vrot.lane.b32.xlu0 %v2763, 127
        %v2769 = vpop.permute.xlu0 %2768
        %v2772 = vadd.f32 %v2758, %v2767
        %v2773 = vadd.f32 %v2759, %v2769
        %s2774 = sld [smem:[#allocation5 + $0x1e]]
        %v2775 = vstv %s2774
        %v2776 = vmul.f32 %v2775, %v2753
        %v2777 = vmul.f32 %v2775, %v2754
        %2780 = vrot.lane.b32.xlu0 %v2776, 126
        %v2781 = vpop.permute.xlu0 %2780
        %2782 = vrot.lane.b32.xlu0 %v2777, 126
        %v2783 = vpop.permute.xlu0 %2782
        %v2786 = vadd.f32 %v2772, %v2781
        %v2787 = vadd.f32 %v2773, %v2783
        %s2788 = sld [smem:[#allocation5 + $0x1f]]
        %v2789 = vstv %s2788
        %v2790 = vmul.f32 %v2789, %v2753
        %v2791 = vmul.f32 %v2789, %v2754
        %2794 = vrot.lane.b32.xlu0 %v2790, 125
        %v2795 = vpop.permute.xlu0 %2794
        %2796 = vrot.lane.b32.xlu0 %v2791, 125
        %v2797 = vpop.permute.xlu0 %2796
        %v2800 = vadd.f32 %v2786, %v2795
        %v2801 = vadd.f32 %v2787, %v2797
        %s2802 = sld [smem:[#allocation5 + $0x20]]
        %v2803 = vstv %s2802
        %v2804 = vmul.f32 %v2803, %v2753
        %v2805 = vmul.f32 %v2803, %v2754
        %2808 = vrot.lane.b32.xlu0 %v2804, 124
        %v2809 = vpop.permute.xlu0 %2808
        %2810 = vrot.lane.b32.xlu0 %v2805, 124
        %v2811 = vpop.permute.xlu0 %2810
        %v2814 = vadd.f32 %v2800, %v2809
        %v2815 = vadd.f32 %v2801, %v2811
        %s2816 = sld [smem:[#allocation5 + $0x21]]
        %v2817 = vstv %s2816
        %v2818 = vmul.f32 %v2817, %v2753
        %v2819 = vmul.f32 %v2817, %v2754
        %2822 = vrot.lane.b32.xlu0 %v2818, 123
        %v2823 = vpop.permute.xlu0 %2822
        %2824 = vrot.lane.b32.xlu0 %v2819, 123
        %v2825 = vpop.permute.xlu0 %2824
        %v2828 = vadd.f32 %v2814, %v2823
        %v2829 = vadd.f32 %v2815, %v2825
        %s2830 = sld [smem:[#allocation5 + $0x22]]
        %v2831 = vstv %s2830
        %v2832 = vmul.f32 %v2831, %v2753
        %v2833 = vmul.f32 %v2831, %v2754
        %2836 = vrot.lane.b32.xlu0 %v2832, 122
        %v2837 = vpop.permute.xlu0 %2836
        %2838 = vrot.lane.b32.xlu0 %v2833, 122
        %v2839 = vpop.permute.xlu0 %2838
        %v2842 = vadd.f32 %v2828, %v2837
        %v2843 = vadd.f32 %v2829, %v2839
        %s2844 = sld [smem:[#allocation5 + $0x23]]
        %v2845 = vld [vmem:[#allocation2 + $0x5] sm:$0xff]
        %v2846 = vld [vmem:[#allocation2 + $0xd] sm:$0xff]
        %v2847 = vstv %s2844
        %v2848 = vmul.f32 %v2847, %v2845
        %v2849 = vmul.f32 %v2847, %v2846
        %v2850 = vadd.f32 %v2842, %v2848
        %v2851 = vadd.f32 %v2843, %v2849
        %s2852 = sld [smem:[#allocation5 + $0x24]]
        %v2853 = vstv %s2852
        %v2854 = vmul.f32 %v2853, %v2845
        %v2855 = vmul.f32 %v2853, %v2846
        %2858 = vrot.lane.b32.xlu0 %v2854, 127
        %v2859 = vpop.permute.xlu0 %2858
        %2860 = vrot.lane.b32.xlu0 %v2855, 127
        %v2861 = vpop.permute.xlu0 %2860
        %v2864 = vadd.f32 %v2850, %v2859
        %v2865 = vadd.f32 %v2851, %v2861
        %s2866 = sld [smem:[#allocation5 + $0x25]]
        %v2867 = vstv %s2866
        %v2868 = vmul.f32 %v2867, %v2845
        %v2869 = vmul.f32 %v2867, %v2846
        %2872 = vrot.lane.b32.xlu0 %v2868, 126
        %v2873 = vpop.permute.xlu0 %2872
        %2874 = vrot.lane.b32.xlu0 %v2869, 126
        %v2875 = vpop.permute.xlu0 %2874
        %v2878 = vadd.f32 %v2864, %v2873
        %v2879 = vadd.f32 %v2865, %v2875
        %s2880 = sld [smem:[#allocation5 + $0x26]]
        %v2881 = vstv %s2880
        %v2882 = vmul.f32 %v2881, %v2845
        %v2883 = vmul.f32 %v2881, %v2846
        %2886 = vrot.lane.b32.xlu0 %v2882, 125
        %v2887 = vpop.permute.xlu0 %2886
        %2888 = vrot.lane.b32.xlu0 %v2883, 125
        %v2889 = vpop.permute.xlu0 %2888
        %v2892 = vadd.f32 %v2878, %v2887
        %v2893 = vadd.f32 %v2879, %v2889
        %s2894 = sld [smem:[#allocation5 + $0x27]]
        %v2895 = vstv %s2894
        %v2896 = vmul.f32 %v2895, %v2845
        %v2897 = vmul.f32 %v2895, %v2846
        %2900 = vrot.lane.b32.xlu0 %v2896, 124
        %v2901 = vpop.permute.xlu0 %2900
        %2902 = vrot.lane.b32.xlu0 %v2897, 124
        %v2903 = vpop.permute.xlu0 %2902
        %v2906 = vadd.f32 %v2892, %v2901
        %v2907 = vadd.f32 %v2893, %v2903
        %s2908 = sld [smem:[#allocation5 + $0x28]]
        %v2909 = vstv %s2908
        %v2910 = vmul.f32 %v2909, %v2845
        %v2911 = vmul.f32 %v2909, %v2846
        %2914 = vrot.lane.b32.xlu0 %v2910, 123
        %v2915 = vpop.permute.xlu0 %2914
        %2916 = vrot.lane.b32.xlu0 %v2911, 123
        %v2917 = vpop.permute.xlu0 %2916
        %v2920 = vadd.f32 %v2906, %v2915
        %v2921 = vadd.f32 %v2907, %v2917
        %s2922 = sld [smem:[#allocation5 + $0x29]]
        %v2923 = vstv %s2922
        %v2924 = vmul.f32 %v2923, %v2845
        %v2925 = vmul.f32 %v2923, %v2846
        %2928 = vrot.lane.b32.xlu0 %v2924, 122
        %v2929 = vpop.permute.xlu0 %2928
        %2930 = vrot.lane.b32.xlu0 %v2925, 122
        %v2931 = vpop.permute.xlu0 %2930
        %v2934 = vadd.f32 %v2920, %v2929
        %v2935 = vadd.f32 %v2921, %v2931
        %s2936 = sld [smem:[#allocation5 + $0x2a]]
        %v2937 = vld [vmem:[#allocation2 + $0x6] sm:$0xff]
        %v2938 = vld [vmem:[#allocation2 + $0xe] sm:$0xff]
        %v2939 = vstv %s2936
        %v2940 = vmul.f32 %v2939, %v2937
        %v2941 = vmul.f32 %v2939, %v2938
        %v2942 = vadd.f32 %v2934, %v2940
        %v2943 = vadd.f32 %v2935, %v2941
        %s2944 = sld [smem:[#allocation5 + $0x2b]]
        %v2945 = vstv %s2944
        %v2946 = vmul.f32 %v2945, %v2937
        %v2947 = vmul.f32 %v2945, %v2938
        %2950 = vrot.lane.b32.xlu0 %v2946, 127
        %v2951 = vpop.permute.xlu0 %2950
        %2952 = vrot.lane.b32.xlu0 %v2947, 127
        %v2953 = vpop.permute.xlu0 %2952
        %v2956 = vadd.f32 %v2942, %v2951
        %v2957 = vadd.f32 %v2943, %v2953
        %s2958 = sld [smem:[#allocation5 + $0x2c]]
        %v2959 = vstv %s2958
        %v2960 = vmul.f32 %v2959, %v2937
        %v2961 = vmul.f32 %v2959, %v2938
        %2964 = vrot.lane.b32.xlu0 %v2960, 126
        %v2965 = vpop.permute.xlu0 %2964
        %2966 = vrot.lane.b32.xlu0 %v2961, 126
        %v2967 = vpop.permute.xlu0 %2966
        %v2970 = vadd.f32 %v2956, %v2965
        %v2971 = vadd.f32 %v2957, %v2967
        %s2972 = sld [smem:[#allocation5 + $0x2d]]
        %v2973 = vstv %s2972
        %v2974 = vmul.f32 %v2973, %v2937
        %v2975 = vmul.f32 %v2973, %v2938
        %2978 = vrot.lane.b32.xlu0 %v2974, 125
        %v2979 = vpop.permute.xlu0 %2978
        %2980 = vrot.lane.b32.xlu0 %v2975, 125
        %v2981 = vpop.permute.xlu0 %2980
        %v2984 = vadd.f32 %v2970, %v2979
        %v2985 = vadd.f32 %v2971, %v2981
        %s2986 = sld [smem:[#allocation5 + $0x2e]]
        %v2987 = vstv %s2986
        %v2988 = vmul.f32 %v2987, %v2937
        %v2989 = vmul.f32 %v2987, %v2938
        %2992 = vrot.lane.b32.xlu0 %v2988, 124
        %v2993 = vpop.permute.xlu0 %2992
        %2994 = vrot.lane.b32.xlu0 %v2989, 124
        %v2995 = vpop.permute.xlu0 %2994
        %v2998 = vadd.f32 %v2984, %v2993
        %v2999 = vadd.f32 %v2985, %v2995
        %s3000 = sld [smem:[#allocation5 + $0x2f]]
        %v3001 = vstv %s3000
        %v3002 = vmul.f32 %v3001, %v2937
        %v3003 = vmul.f32 %v3001, %v2938
        %3006 = vrot.lane.b32.xlu0 %v3002, 123
        %v3007 = vpop.permute.xlu0 %3006
        %3008 = vrot.lane.b32.xlu0 %v3003, 123
        %v3009 = vpop.permute.xlu0 %3008
        %v3012 = vadd.f32 %v2998, %v3007
        %v3013 = vadd.f32 %v2999, %v3009
        %s3014 = sld [smem:[#allocation5 + $0x30]]
        %v3015 = vstv %s3014
        %v3016 = vmul.f32 %v3015, %v2937
        %v3017 = vmul.f32 %v3015, %v2938
        %3020 = vrot.lane.b32.xlu0 %v3016, 122
        %v3021 = vpop.permute.xlu0 %3020
        %3022 = vrot.lane.b32.xlu0 %v3017, 122
        %v3023 = vpop.permute.xlu0 %3022
        %v3026 = vadd.f32 %v3012, %v3021
        %v3027 = vadd.f32 %v3013, %v3023
        %s3028 = sld [smem:[#allocation5 + $0x31]]
        %v3029 = vld [vmem:[#allocation3] sm:$0xff]
        %v3030 = vld [vmem:[#allocation3 + $0x8] sm:$0xff]
        %v3031 = vstv %s3028
        %v3032 = vmul.f32 %v3031, %v3029
        %v3033 = vmul.f32 %v3031, %v3030
        %v3034 = vadd.f32 %v3026, %v3032
        %v3035 = vadd.f32 %v3027, %v3033
        %s3036 = sld [smem:[#allocation5 + $0x32]]
        %v3037 = vstv %s3036
        %v3038 = vmul.f32 %v3037, %v3029
        %v3039 = vmul.f32 %v3037, %v3030
        %3042 = vrot.lane.b32.xlu0 %v3038, 127
        %v3043 = vpop.permute.xlu0 %3042
        %3044 = vrot.lane.b32.xlu0 %v3039, 127
        %v3045 = vpop.permute.xlu0 %3044
        %v3048 = vadd.f32 %v3034, %v3043
        %v3049 = vadd.f32 %v3035, %v3045
        %s3050 = sld [smem:[#allocation5 + $0x33]]
        %v3051 = vstv %s3050
        %v3052 = vmul.f32 %v3051, %v3029
        %v3053 = vmul.f32 %v3051, %v3030
        %3056 = vrot.lane.b32.xlu0 %v3052, 126
        %v3057 = vpop.permute.xlu0 %3056
        %3058 = vrot.lane.b32.xlu0 %v3053, 126
        %v3059 = vpop.permute.xlu0 %3058
        %v3062 = vadd.f32 %v3048, %v3057
        %v3063 = vadd.f32 %v3049, %v3059
        %s3064 = sld [smem:[#allocation5 + $0x34]]
        %v3065 = vstv %s3064
        %v3066 = vmul.f32 %v3065, %v3029
        %v3067 = vmul.f32 %v3065, %v3030
        %3070 = vrot.lane.b32.xlu0 %v3066, 125
        %v3071 = vpop.permute.xlu0 %3070
        %3072 = vrot.lane.b32.xlu0 %v3067, 125
        %v3073 = vpop.permute.xlu0 %3072
        %v3076 = vadd.f32 %v3062, %v3071
        %v3077 = vadd.f32 %v3063, %v3073
        %s3078 = sld [smem:[#allocation5 + $0x35]]
        %v3079 = vstv %s3078
        %v3080 = vmul.f32 %v3079, %v3029
        %v3081 = vmul.f32 %v3079, %v3030
        %3084 = vrot.lane.b32.xlu0 %v3080, 124
        %v3085 = vpop.permute.xlu0 %3084
        %3086 = vrot.lane.b32.xlu0 %v3081, 124
        %v3087 = vpop.permute.xlu0 %3086
        %v3090 = vadd.f32 %v3076, %v3085
        %v3091 = vadd.f32 %v3077, %v3087
        %s3092 = sld [smem:[#allocation5 + $0x36]]
        %v3093 = vstv %s3092
        %v3094 = vmul.f32 %v3093, %v3029
        %v3095 = vmul.f32 %v3093, %v3030
        %3098 = vrot.lane.b32.xlu0 %v3094, 123
        %v3099 = vpop.permute.xlu0 %3098
        %3100 = vrot.lane.b32.xlu0 %v3095, 123
        %v3101 = vpop.permute.xlu0 %3100
        %v3104 = vadd.f32 %v3090, %v3099
        %v3105 = vadd.f32 %v3091, %v3101
        %s3106 = sld [smem:[#allocation5 + $0x37]]
        %v3107 = vstv %s3106
        %v3108 = vmul.f32 %v3107, %v3029
        %v3109 = vmul.f32 %v3107, %v3030
        %3112 = vrot.lane.b32.xlu0 %v3108, 122
        %v3113 = vpop.permute.xlu0 %3112
        %3114 = vrot.lane.b32.xlu0 %v3109, 122
        %v3115 = vpop.permute.xlu0 %3114
        %v3118 = vadd.f32 %v3104, %v3113
        %v3119 = vadd.f32 %v3105, %v3115
        %s3120 = sld [smem:[#allocation5 + $0x38]]
        %v3121 = vld [vmem:[#allocation3 + $0x1] sm:$0xff]
        %v3122 = vld [vmem:[#allocation3 + $0x9] sm:$0xff]
        %v3123 = vstv %s3120
        %v3124 = vmul.f32 %v3123, %v3121
        %v3125 = vmul.f32 %v3123, %v3122
        %v3126 = vadd.f32 %v3118, %v3124
        %v3127 = vadd.f32 %v3119, %v3125
        %s3128 = sld [smem:[#allocation5 + $0x39]]
        %v3129 = vstv %s3128
        %v3130 = vmul.f32 %v3129, %v3121
        %v3131 = vmul.f32 %v3129, %v3122
        %3134 = vrot.lane.b32.xlu0 %v3130, 127
        %v3135 = vpop.permute.xlu0 %3134
        %3136 = vrot.lane.b32.xlu0 %v3131, 127
        %v3137 = vpop.permute.xlu0 %3136
        %v3140 = vadd.f32 %v3126, %v3135
        %v3141 = vadd.f32 %v3127, %v3137
        %s3142 = sld [smem:[#allocation5 + $0x3a]]
        %v3143 = vstv %s3142
        %v3144 = vmul.f32 %v3143, %v3121
        %v3145 = vmul.f32 %v3143, %v3122
        %3148 = vrot.lane.b32.xlu0 %v3144, 126
        %v3149 = vpop.permute.xlu0 %3148
        %3150 = vrot.lane.b32.xlu0 %v3145, 126
        %v3151 = vpop.permute.xlu0 %3150
        %v3154 = vadd.f32 %v3140, %v3149
        %v3155 = vadd.f32 %v3141, %v3151
        %s3156 = sld [smem:[#allocation5 + $0x3b]]
        %v3157 = vstv %s3156
        %v3158 = vmul.f32 %v3157, %v3121
        %v3159 = vmul.f32 %v3157, %v3122
        %3162 = vrot.lane.b32.xlu0 %v3158, 125
        %v3163 = vpop.permute.xlu0 %3162
        %3164 = vrot.lane.b32.xlu0 %v3159, 125
        %v3165 = vpop.permute.xlu0 %3164
        %v3168 = vadd.f32 %v3154, %v3163
        %v3169 = vadd.f32 %v3155, %v3165
        %s3170 = sld [smem:[#allocation5 + $0x3c]]
        %v3171 = vstv %s3170
        %v3172 = vmul.f32 %v3171, %v3121
        %v3173 = vmul.f32 %v3171, %v3122
        %3176 = vrot.lane.b32.xlu0 %v3172, 124
        %v3177 = vpop.permute.xlu0 %3176
        %3178 = vrot.lane.b32.xlu0 %v3173, 124
        %v3179 = vpop.permute.xlu0 %3178
        %v3182 = vadd.f32 %v3168, %v3177
        %v3183 = vadd.f32 %v3169, %v3179
        %s3184 = sld [smem:[#allocation5 + $0x3d]]
        %v3185 = vstv %s3184
        %v3186 = vmul.f32 %v3185, %v3121
        %v3187 = vmul.f32 %v3185, %v3122
        %3190 = vrot.lane.b32.xlu0 %v3186, 123
        %v3191 = vpop.permute.xlu0 %3190
        %3192 = vrot.lane.b32.xlu0 %v3187, 123
        %v3193 = vpop.permute.xlu0 %3192
        %v3196 = vadd.f32 %v3182, %v3191
        %v3197 = vadd.f32 %v3183, %v3193
        %s3198 = sld [smem:[#allocation5 + $0x3e]]
        %v3199 = vstv %s3198
        %v3200 = vmul.f32 %v3199, %v3121
        %v3201 = vmul.f32 %v3199, %v3122
        %3204 = vrot.lane.b32.xlu0 %v3200, 122
        %v3205 = vpop.permute.xlu0 %3204
        %3206 = vrot.lane.b32.xlu0 %v3201, 122
        %v3207 = vpop.permute.xlu0 %3206
        %v3210 = vadd.f32 %v3196, %v3205
        %v3211 = vadd.f32 %v3197, %v3207
        %s3212 = sld [smem:[#allocation5 + $0x3f]]
        %v3213 = vld [vmem:[#allocation3 + $0x2] sm:$0xff]
        %v3214 = vld [vmem:[#allocation3 + $0xa] sm:$0xff]
        %v3215 = vstv %s3212
        %v3216 = vmul.f32 %v3215, %v3213
        %v3217 = vmul.f32 %v3215, %v3214
        %v3218 = vadd.f32 %v3210, %v3216
        %v3219 = vadd.f32 %v3211, %v3217
        %s3220 = sld [smem:[#allocation5 + $0x40]]
        %v3221 = vstv %s3220
        %v3222 = vmul.f32 %v3221, %v3213
        %v3223 = vmul.f32 %v3221, %v3214
        %3226 = vrot.lane.b32.xlu0 %v3222, 127
        %v3227 = vpop.permute.xlu0 %3226
        %3228 = vrot.lane.b32.xlu0 %v3223, 127
        %v3229 = vpop.permute.xlu0 %3228
        %v3232 = vadd.f32 %v3218, %v3227
        %v3233 = vadd.f32 %v3219, %v3229
        %s3234 = sld [smem:[#allocation5 + $0x41]]
        %v3235 = vstv %s3234
        %v3236 = vmul.f32 %v3235, %v3213
        %v3237 = vmul.f32 %v3235, %v3214
        %3240 = vrot.lane.b32.xlu0 %v3236, 126
        %v3241 = vpop.permute.xlu0 %3240
        %3242 = vrot.lane.b32.xlu0 %v3237, 126
        %v3243 = vpop.permute.xlu0 %3242
        %v3246 = vadd.f32 %v3232, %v3241
        %v3247 = vadd.f32 %v3233, %v3243
        %s3248 = sld [smem:[#allocation5 + $0x42]]
        %v3249 = vstv %s3248
        %v3250 = vmul.f32 %v3249, %v3213
        %v3251 = vmul.f32 %v3249, %v3214
        %3254 = vrot.lane.b32.xlu0 %v3250, 125
        %v3255 = vpop.permute.xlu0 %3254
        %3256 = vrot.lane.b32.xlu0 %v3251, 125
        %v3257 = vpop.permute.xlu0 %3256
        %v3260 = vadd.f32 %v3246, %v3255
        %v3261 = vadd.f32 %v3247, %v3257
        %s3262 = sld [smem:[#allocation5 + $0x43]]
        %v3263 = vstv %s3262
        %v3264 = vmul.f32 %v3263, %v3213
        %v3265 = vmul.f32 %v3263, %v3214
        %3268 = vrot.lane.b32.xlu0 %v3264, 124
        %v3269 = vpop.permute.xlu0 %3268
        %3270 = vrot.lane.b32.xlu0 %v3265, 124
        %v3271 = vpop.permute.xlu0 %3270
        %v3274 = vadd.f32 %v3260, %v3269
        %v3275 = vadd.f32 %v3261, %v3271
        %s3276 = sld [smem:[#allocation5 + $0x44]]
        %v3277 = vstv %s3276
        %v3278 = vmul.f32 %v3277, %v3213
        %v3279 = vmul.f32 %v3277, %v3214
        %3282 = vrot.lane.b32.xlu0 %v3278, 123
        %v3283 = vpop.permute.xlu0 %3282
        %3284 = vrot.lane.b32.xlu0 %v3279, 123
        %v3285 = vpop.permute.xlu0 %3284
        %v3288 = vadd.f32 %v3274, %v3283
        %v3289 = vadd.f32 %v3275, %v3285
        %s3290 = sld [smem:[#allocation5 + $0x45]]
        %v3291 = vstv %s3290
        %v3292 = vmul.f32 %v3291, %v3213
        %v3293 = vmul.f32 %v3291, %v3214
        %3296 = vrot.lane.b32.xlu0 %v3292, 122
        %v3297 = vpop.permute.xlu0 %3296
        %3298 = vrot.lane.b32.xlu0 %v3293, 122
        %v3299 = vpop.permute.xlu0 %3298
        %v3302 = vadd.f32 %v3288, %v3297
        %v3303 = vadd.f32 %v3289, %v3299
        %s3304 = sld [smem:[#allocation5 + $0x46]]
        %v3305 = vld [vmem:[#allocation3 + $0x3] sm:$0xff]
        %v3306 = vld [vmem:[#allocation3 + $0xb] sm:$0xff]
        %v3307 = vstv %s3304
        %v3308 = vmul.f32 %v3307, %v3305
        %v3309 = vmul.f32 %v3307, %v3306
        %v3310 = vadd.f32 %v3302, %v3308
        %v3311 = vadd.f32 %v3303, %v3309
        %s3312 = sld [smem:[#allocation5 + $0x47]]
        %v3313 = vstv %s3312
        %v3314 = vmul.f32 %v3313, %v3305
        %v3315 = vmul.f32 %v3313, %v3306
        %3318 = vrot.lane.b32.xlu0 %v3314, 127
        %v3319 = vpop.permute.xlu0 %3318
        %3320 = vrot.lane.b32.xlu0 %v3315, 127
        %v3321 = vpop.permute.xlu0 %3320
        %v3324 = vadd.f32 %v3310, %v3319
        %v3325 = vadd.f32 %v3311, %v3321
        %s3326 = sld [smem:[#allocation5 + $0x48]]
        %v3327 = vstv %s3326
        %v3328 = vmul.f32 %v3327, %v3305
        %v3329 = vmul.f32 %v3327, %v3306
        %3332 = vrot.lane.b32.xlu0 %v3328, 126
        %v3333 = vpop.permute.xlu0 %3332
        %3334 = vrot.lane.b32.xlu0 %v3329, 126
        %v3335 = vpop.permute.xlu0 %3334
        %v3338 = vadd.f32 %v3324, %v3333
        %v3339 = vadd.f32 %v3325, %v3335
        %s3340 = sld [smem:[#allocation5 + $0x49]]
        %v3341 = vstv %s3340
        %v3342 = vmul.f32 %v3341, %v3305
        %v3343 = vmul.f32 %v3341, %v3306
        %3346 = vrot.lane.b32.xlu0 %v3342, 125
        %v3347 = vpop.permute.xlu0 %3346
        %3348 = vrot.lane.b32.xlu0 %v3343, 125
        %v3349 = vpop.permute.xlu0 %3348
        %v3352 = vadd.f32 %v3338, %v3347
        %v3353 = vadd.f32 %v3339, %v3349
        %s3354 = sld [smem:[#allocation5 + $0x4a]]
        %v3355 = vstv %s3354
        %v3356 = vmul.f32 %v3355, %v3305
        %v3357 = vmul.f32 %v3355, %v3306
        %3360 = vrot.lane.b32.xlu0 %v3356, 124
        %v3361 = vpop.permute.xlu0 %3360
        %3362 = vrot.lane.b32.xlu0 %v3357, 124
        %v3363 = vpop.permute.xlu0 %3362
        %v3366 = vadd.f32 %v3352, %v3361
        %v3367 = vadd.f32 %v3353, %v3363
        %s3368 = sld [smem:[#allocation5 + $0x4b]]
        %v3369 = vstv %s3368
        %v3370 = vmul.f32 %v3369, %v3305
        %v3371 = vmul.f32 %v3369, %v3306
        %3374 = vrot.lane.b32.xlu0 %v3370, 123
        %v3375 = vpop.permute.xlu0 %3374
        %3376 = vrot.lane.b32.xlu0 %v3371, 123
        %v3377 = vpop.permute.xlu0 %3376
        %v3380 = vadd.f32 %v3366, %v3375
        %v3381 = vadd.f32 %v3367, %v3377
        %s3382 = sld [smem:[#allocation5 + $0x4c]]
        %v3383 = vstv %s3382
        %v3384 = vmul.f32 %v3383, %v3305
        %v3385 = vmul.f32 %v3383, %v3306
        %3388 = vrot.lane.b32.xlu0 %v3384, 122
        %v3389 = vpop.permute.xlu0 %3388
        %3390 = vrot.lane.b32.xlu0 %v3385, 122
        %v3391 = vpop.permute.xlu0 %3390
        %v3394 = vadd.f32 %v3380, %v3389
        %v3395 = vadd.f32 %v3381, %v3391
        %s3396 = sld [smem:[#allocation5 + $0x4d]]
        %v3397 = vld [vmem:[#allocation3 + $0x4] sm:$0xff]
        %v3398 = vld [vmem:[#allocation3 + $0xc] sm:$0xff]
        %v3399 = vstv %s3396
        %v3400 = vmul.f32 %v3399, %v3397
        %v3401 = vmul.f32 %v3399, %v3398
        %v3402 = vadd.f32 %v3394, %v3400
        %v3403 = vadd.f32 %v3395, %v3401
        %s3404 = sld [smem:[#allocation5 + $0x4e]]
        %v3405 = vstv %s3404
        %v3406 = vmul.f32 %v3405, %v3397
        %v3407 = vmul.f32 %v3405, %v3398
        %3410 = vrot.lane.b32.xlu0 %v3406, 127
        %v3411 = vpop.permute.xlu0 %3410
        %3412 = vrot.lane.b32.xlu0 %v3407, 127
        %v3413 = vpop.permute.xlu0 %3412
        %v3416 = vadd.f32 %v3402, %v3411
        %v3417 = vadd.f32 %v3403, %v3413
        %s3418 = sld [smem:[#allocation5 + $0x4f]]
        %v3419 = vstv %s3418
        %v3420 = vmul.f32 %v3419, %v3397
        %v3421 = vmul.f32 %v3419, %v3398
        %3424 = vrot.lane.b32.xlu0 %v3420, 126
        %v3425 = vpop.permute.xlu0 %3424
        %3426 = vrot.lane.b32.xlu0 %v3421, 126
        %v3427 = vpop.permute.xlu0 %3426
        %v3430 = vadd.f32 %v3416, %v3425
        %v3431 = vadd.f32 %v3417, %v3427
        %s3432 = sld [smem:[#allocation5 + $0x50]]
        %v3433 = vstv %s3432
        %v3434 = vmul.f32 %v3433, %v3397
        %v3435 = vmul.f32 %v3433, %v3398
        %3438 = vrot.lane.b32.xlu0 %v3434, 125
        %v3439 = vpop.permute.xlu0 %3438
        %3440 = vrot.lane.b32.xlu0 %v3435, 125
        %v3441 = vpop.permute.xlu0 %3440
        %v3444 = vadd.f32 %v3430, %v3439
        %v3445 = vadd.f32 %v3431, %v3441
        %s3446 = sld [smem:[#allocation5 + $0x51]]
        %v3447 = vstv %s3446
        %v3448 = vmul.f32 %v3447, %v3397
        %v3449 = vmul.f32 %v3447, %v3398
        %3452 = vrot.lane.b32.xlu0 %v3448, 124
        %v3453 = vpop.permute.xlu0 %3452
        %3454 = vrot.lane.b32.xlu0 %v3449, 124
        %v3455 = vpop.permute.xlu0 %3454
        %v3458 = vadd.f32 %v3444, %v3453
        %v3459 = vadd.f32 %v3445, %v3455
        %s3460 = sld [smem:[#allocation5 + $0x52]]
        %v3461 = vstv %s3460
        %v3462 = vmul.f32 %v3461, %v3397
        %v3463 = vmul.f32 %v3461, %v3398
        %3466 = vrot.lane.b32.xlu0 %v3462, 123
        %v3467 = vpop.permute.xlu0 %3466
        %3468 = vrot.lane.b32.xlu0 %v3463, 123
        %v3469 = vpop.permute.xlu0 %3468
        %v3472 = vadd.f32 %v3458, %v3467
        %v3473 = vadd.f32 %v3459, %v3469
        %s3474 = sld [smem:[#allocation5 + $0x53]]
        %v3475 = vstv %s3474
        %v3476 = vmul.f32 %v3475, %v3397
        %v3477 = vmul.f32 %v3475, %v3398
        %3480 = vrot.lane.b32.xlu0 %v3476, 122
        %v3481 = vpop.permute.xlu0 %3480
        %3482 = vrot.lane.b32.xlu0 %v3477, 122
        %v3483 = vpop.permute.xlu0 %3482
        %v3486 = vadd.f32 %v3472, %v3481
        %v3487 = vadd.f32 %v3473, %v3483
        %s3488 = sld [smem:[#allocation5 + $0x54]]
        %v3489 = vld [vmem:[#allocation3 + $0x5] sm:$0xff]
        %v3490 = vld [vmem:[#allocation3 + $0xd] sm:$0xff]
        %v3491 = vstv %s3488
        %v3492 = vmul.f32 %v3491, %v3489
        %v3493 = vmul.f32 %v3491, %v3490
        %v3494 = vadd.f32 %v3486, %v3492
        %v3495 = vadd.f32 %v3487, %v3493
        %s3496 = sld [smem:[#allocation5 + $0x55]]
        %v3497 = vstv %s3496
        %v3498 = vmul.f32 %v3497, %v3489
        %v3499 = vmul.f32 %v3497, %v3490
        %3502 = vrot.lane.b32.xlu0 %v3498, 127
        %v3503 = vpop.permute.xlu0 %3502
        %3504 = vrot.lane.b32.xlu0 %v3499, 127
        %v3505 = vpop.permute.xlu0 %3504
        %v3508 = vadd.f32 %v3494, %v3503
        %v3509 = vadd.f32 %v3495, %v3505
        %s3510 = sld [smem:[#allocation5 + $0x56]]
        %v3511 = vstv %s3510
        %v3512 = vmul.f32 %v3511, %v3489
        %v3513 = vmul.f32 %v3511, %v3490
        %3516 = vrot.lane.b32.xlu0 %v3512, 126
        %v3517 = vpop.permute.xlu0 %3516
        %3518 = vrot.lane.b32.xlu0 %v3513, 126
        %v3519 = vpop.permute.xlu0 %3518
        %v3522 = vadd.f32 %v3508, %v3517
        %v3523 = vadd.f32 %v3509, %v3519
        %s3524 = sld [smem:[#allocation5 + $0x57]]
        %v3525 = vstv %s3524
        %v3526 = vmul.f32 %v3525, %v3489
        %v3527 = vmul.f32 %v3525, %v3490
        %3530 = vrot.lane.b32.xlu0 %v3526, 125
        %v3531 = vpop.permute.xlu0 %3530
        %3532 = vrot.lane.b32.xlu0 %v3527, 125
        %v3533 = vpop.permute.xlu0 %3532
        %v3536 = vadd.f32 %v3522, %v3531
        %v3537 = vadd.f32 %v3523, %v3533
        %s3538 = sld [smem:[#allocation5 + $0x58]]
        %v3539 = vstv %s3538
        %v3540 = vmul.f32 %v3539, %v3489
        %v3541 = vmul.f32 %v3539, %v3490
        %3544 = vrot.lane.b32.xlu0 %v3540, 124
        %v3545 = vpop.permute.xlu0 %3544
        %3546 = vrot.lane.b32.xlu0 %v3541, 124
        %v3547 = vpop.permute.xlu0 %3546
        %v3550 = vadd.f32 %v3536, %v3545
        %v3551 = vadd.f32 %v3537, %v3547
        %s3552 = sld [smem:[#allocation5 + $0x59]]
        %v3553 = vstv %s3552
        %v3554 = vmul.f32 %v3553, %v3489
        %v3555 = vmul.f32 %v3553, %v3490
        %3558 = vrot.lane.b32.xlu0 %v3554, 123
        %v3559 = vpop.permute.xlu0 %3558
        %3560 = vrot.lane.b32.xlu0 %v3555, 123
        %v3561 = vpop.permute.xlu0 %3560
        %v3564 = vadd.f32 %v3550, %v3559
        %v3565 = vadd.f32 %v3551, %v3561
        %s3566 = sld [smem:[#allocation5 + $0x5a]]
        %v3567 = vstv %s3566
        %v3568 = vmul.f32 %v3567, %v3489
        %v3569 = vmul.f32 %v3567, %v3490
        %3572 = vrot.lane.b32.xlu0 %v3568, 122
        %v3573 = vpop.permute.xlu0 %3572
        %3574 = vrot.lane.b32.xlu0 %v3569, 122
        %v3575 = vpop.permute.xlu0 %3574
        %v3578 = vadd.f32 %v3564, %v3573
        %v3579 = vadd.f32 %v3565, %v3575
        %s3580 = sld [smem:[#allocation5 + $0x5b]]
        %v3581 = vld [vmem:[#allocation3 + $0x6] sm:$0xff]
        %v3582 = vld [vmem:[#allocation3 + $0xe] sm:$0xff]
        %v3583 = vstv %s3580
        %v3584 = vmul.f32 %v3583, %v3581
        %v3585 = vmul.f32 %v3583, %v3582
        %v3586 = vadd.f32 %v3578, %v3584
        %v3587 = vadd.f32 %v3579, %v3585
        %s3588 = sld [smem:[#allocation5 + $0x5c]]
        %v3589 = vstv %s3588
        %v3590 = vmul.f32 %v3589, %v3581
        %v3591 = vmul.f32 %v3589, %v3582
        %3594 = vrot.lane.b32.xlu0 %v3590, 127
        %v3595 = vpop.permute.xlu0 %3594
        %3596 = vrot.lane.b32.xlu0 %v3591, 127
        %v3597 = vpop.permute.xlu0 %3596
        %v3600 = vadd.f32 %v3586, %v3595
        %v3601 = vadd.f32 %v3587, %v3597
        %s3602 = sld [smem:[#allocation5 + $0x5d]]
        %v3603 = vstv %s3602
        %v3604 = vmul.f32 %v3603, %v3581
        %v3605 = vmul.f32 %v3603, %v3582
        %3608 = vrot.lane.b32.xlu0 %v3604, 126
        %v3609 = vpop.permute.xlu0 %3608
        %3610 = vrot.lane.b32.xlu0 %v3605, 126
        %v3611 = vpop.permute.xlu0 %3610
        %v3614 = vadd.f32 %v3600, %v3609
        %v3615 = vadd.f32 %v3601, %v3611
        %s3616 = sld [smem:[#allocation5 + $0x5e]]
        %v3617 = vstv %s3616
        %v3618 = vmul.f32 %v3617, %v3581
        %v3619 = vmul.f32 %v3617, %v3582
        %3622 = vrot.lane.b32.xlu0 %v3618, 125
        %v3623 = vpop.permute.xlu0 %3622
        %3624 = vrot.lane.b32.xlu0 %v3619, 125
        %v3625 = vpop.permute.xlu0 %3624
        %v3628 = vadd.f32 %v3614, %v3623
        %v3629 = vadd.f32 %v3615, %v3625
        %s3630 = sld [smem:[#allocation5 + $0x5f]]
        %v3631 = vstv %s3630
        %v3632 = vmul.f32 %v3631, %v3581
        %v3633 = vmul.f32 %v3631, %v3582
        %3636 = vrot.lane.b32.xlu0 %v3632, 124
        %v3637 = vpop.permute.xlu0 %3636
        %3638 = vrot.lane.b32.xlu0 %v3633, 124
        %v3639 = vpop.permute.xlu0 %3638
        %v3642 = vadd.f32 %v3628, %v3637
        %v3643 = vadd.f32 %v3629, %v3639
        %s3644 = sld [smem:[#allocation5 + $0x60]]
        %v3645 = vstv %s3644
        %v3646 = vmul.f32 %v3645, %v3581
        %v3647 = vmul.f32 %v3645, %v3582
        %3650 = vrot.lane.b32.xlu0 %v3646, 123
        %v3651 = vpop.permute.xlu0 %3650
        %3652 = vrot.lane.b32.xlu0 %v3647, 123
        %v3653 = vpop.permute.xlu0 %3652
        %v3656 = vadd.f32 %v3642, %v3651
        %v3657 = vadd.f32 %v3643, %v3653
        %s3658 = sld [smem:[#allocation5 + $0x61]]
        %v3659 = vstv %s3658
        %v3660 = vmul.f32 %v3659, %v3581
        %v3661 = vmul.f32 %v3659, %v3582
        %3664 = vrot.lane.b32.xlu0 %v3660, 122
        %v3665 = vpop.permute.xlu0 %3664
        %3666 = vrot.lane.b32.xlu0 %v3661, 122
        %v3667 = vpop.permute.xlu0 %3666
        %v3670 = vadd.f32 %v3656, %v3665
        %v3671 = vadd.f32 %v3657, %v3667
        %v3672 = vsub.f32 0.0, %v3670
        %v3673 = vsub.f32 0.0, %v3671
        %v3674 = vmul.f32 %v3672, 1.442695
        %v3675 = vpow.pop %v3674
        %v3676 = vmul.f32 %v3673, 1.442695
        %v3677 = vpow.pop %v3676
        %v3678 = vadd.f32 %v3675, 1.0
        %v3679 = vadd.f32 %v3677, 1.0
        %v3680 = vrcp.pop %v3678
        %v3681 = vmul.f32 1.0, %v3680
        %v3682 = vrcp.pop %v3679
        %v3683 = vmul.f32 1.0, %v3682
        %v3684 = vmul.f32 %v2034, %v3681
        %v3685 = vmul.f32 %v2035, %v3683
        %v3686 = vmul.f32 %v2036, %v3681
        %v3687 = vmul.f32 %v2037, %v3683
        %v3688 = vmul.f32 %v2038, %v3681
        %v3689 = vmul.f32 %v2039, %v3683
        %v3690 = vmul.f32 %v2040, %v3681
        %v3691 = vmul.f32 %v2041, %v3683
        %v3692 = vmul.f32 %v2042, %v3681
        %v3693 = vmul.f32 %v2043, %v3683
        %v3694 = vmul.f32 %v2044, %v3681
        %v3695 = vmul.f32 %v2045, %v3683
        %v3696 = vmul.f32 %v2046, %v3681
        %v3697 = vmul.f32 %v2047, %v3683
        %v3698 = vmul.f32 %v2048, %v3681
        %v3699 = vmul.f32 %v2049, %v3683
        %v3700 = vmul.f32 %v2050, %v3681
        %v3701 = vmul.f32 %v2051, %v3683
        %v3702 = vmul.f32 %v2052, %v3681
        %v3703 = vmul.f32 %v2053, %v3683
        %v3704 = vmul.f32 %v2054, %v3681
        %v3705 = vmul.f32 %v2055, %v3683
        %v3706 = vmul.f32 %v2056, %v3681
        %v3707 = vmul.f32 %v2057, %v3683
        %v3708 = vmul.f32 %v2058, %v3681
        %v3709 = vmul.f32 %v2059, %v3683
        %v3710 = vmul.f32 %v2060, %v3681
        %v3711 = vmul.f32 %v2061, %v3683
        %v3712 = vmul.f32 %v2062, %v3681
        %v3713 = vmul.f32 %v2063, %v3683
        %v3714 = vmul.f32 %v2064, %v3681
        %v3715 = vmul.f32 %v2065, %v3683
        %v3716 = vmul.f32 %v2066, %v3681
        %v3717 = vmul.f32 %v2067, %v3683
        %v3718 = vmul.f32 %v2068, %v3681
        %v3719 = vmul.f32 %v2069, %v3683
        %v3720 = vmul.f32 %v2070, %v3681
        %v3721 = vmul.f32 %v2071, %v3683
        %v3722 = vmul.f32 %v2072, %v3681
        %v3723 = vmul.f32 %v2073, %v3683
        %v3724 = vmul.f32 %v2074, %v3681
        %v3725 = vmul.f32 %v2075, %v3683
        %v3726 = vmul.f32 %v2076, %v3681
        %v3727 = vmul.f32 %v2077, %v3683
        %v3728 = vmul.f32 %v2078, %v3681
        %v3729 = vmul.f32 %v2079, %v3683
        %v3730 = vmul.f32 %v2080, %v3681
        %v3731 = vmul.f32 %v2081, %v3683
        %v3732 = vmul.f32 %v2082, %v3681
        %v3733 = vmul.f32 %v2083, %v3683
        %v3734 = vmul.f32 %v2084, %v3681
        %v3735 = vmul.f32 %v2085, %v3683
        %v3736 = vmul.f32 %v2086, %v3681
        %v3737 = vmul.f32 %v2087, %v3683
        %v3738 = vmul.f32 %v2088, %v3681
        %v3739 = vmul.f32 %v2089, %v3683
        %v3740 = vmul.f32 %v2090, %v3681
        %v3741 = vmul.f32 %v2091, %v3683
        %v3742 = vmul.f32 %v2092, %v3681
        %v3743 = vmul.f32 %v2093, %v3683
        %v3744 = vmul.f32 %v2094, %v3681
        %v3745 = vmul.f32 %v2095, %v3683
        %v3746 = vmul.f32 %v2096, %v3681
        %v3747 = vmul.f32 %v2097, %v3683
        %3748 = vst.msk [vmem:[%s239] sm:$0xff] %vm304, %v3684
        %3749 = vst.msk [vmem:[%s239 + $0x8] sm:$0xff] %vm304, %v3685
        %3750 = vst.msk [vmem:[%s239 + $0x10] sm:$0xff] %vm304, %v3686
        %3751 = vst.msk [vmem:[%s239 + $0x18] sm:$0xff] %vm304, %v3687
        %3752 = vst.msk [vmem:[%s239 + $0x20] sm:$0xff] %vm304, %v3688
        %3753 = vst.msk [vmem:[%s239 + $0x28] sm:$0xff] %vm304, %v3689
        %3754 = vst.msk [vmem:[%s239 + $0x30] sm:$0xff] %vm304, %v3690
        %3755 = vst.msk [vmem:[%s239 + $0x38] sm:$0xff] %vm304, %v3691
        %3756 = vst.msk [vmem:[%s239 + $0x40] sm:$0xff] %vm304, %v3692
        %3757 = vst.msk [vmem:[%s239 + $0x48] sm:$0xff] %vm304, %v3693
        %3758 = vst.msk [vmem:[%s239 + $0x50] sm:$0xff] %vm304, %v3694
        %3759 = vst.msk [vmem:[%s239 + $0x58] sm:$0xff] %vm304, %v3695
        %3760 = vst.msk [vmem:[%s239 + $0x60] sm:$0xff] %vm304, %v3696
        %3761 = vst.msk [vmem:[%s239 + $0x68] sm:$0xff] %vm304, %v3697
        %3762 = vst.msk [vmem:[%s239 + $0x70] sm:$0xff] %vm304, %v3698
        %3763 = vst.msk [vmem:[%s239 + $0x78] sm:$0xff] %vm304, %v3699
        %3764 = vst.msk [vmem:[%s239 + $0x80] sm:$0xff] %vm304, %v3700
        %3765 = vst.msk [vmem:[%s239 + $0x88] sm:$0xff] %vm304, %v3701
        %3766 = vst.msk [vmem:[%s239 + $0x90] sm:$0xff] %vm304, %v3702
        %3767 = vst.msk [vmem:[%s239 + $0x98] sm:$0xff] %vm304, %v3703
        %3768 = vst.msk [vmem:[%s239 + $0xa0] sm:$0xff] %vm304, %v3704
        %3769 = vst.msk [vmem:[%s239 + $0xa8] sm:$0xff] %vm304, %v3705
        %3770 = vst.msk [vmem:[%s239 + $0xb0] sm:$0xff] %vm304, %v3706
        %3771 = vst.msk [vmem:[%s239 + $0xb8] sm:$0xff] %vm304, %v3707
        %3772 = vst.msk [vmem:[%s239 + $0xc0] sm:$0xff] %vm304, %v3708
        %3773 = vst.msk [vmem:[%s239 + $0xc8] sm:$0xff] %vm304, %v3709
        %3774 = vst.msk [vmem:[%s239 + $0xd0] sm:$0xff] %vm304, %v3710
        %3775 = vst.msk [vmem:[%s239 + $0xd8] sm:$0xff] %vm304, %v3711
        %3776 = vst.msk [vmem:[%s239 + $0xe0] sm:$0xff] %vm304, %v3712
        %3777 = vst.msk [vmem:[%s239 + $0xe8] sm:$0xff] %vm304, %v3713
        %3778 = vst.msk [vmem:[%s239 + $0xf0] sm:$0xff] %vm304, %v3714
        %3779 = vst.msk [vmem:[%s239 + $0xf8] sm:$0xff] %vm304, %v3715
        %3780 = vst.msk [vmem:[%s239 + $0x100] sm:$0xff] %vm304, %v3716
        %3781 = vst.msk [vmem:[%s239 + $0x108] sm:$0xff] %vm304, %v3717
        %3782 = vst.msk [vmem:[%s239 + $0x110] sm:$0xff] %vm304, %v3718
        %3783 = vst.msk [vmem:[%s239 + $0x118] sm:$0xff] %vm304, %v3719
        %3784 = vst.msk [vmem:[%s239 + $0x120] sm:$0xff] %vm304, %v3720
        %3785 = vst.msk [vmem:[%s239 + $0x128] sm:$0xff] %vm304, %v3721
        %3786 = vst.msk [vmem:[%s239 + $0x130] sm:$0xff] %vm304, %v3722
        %3787 = vst.msk [vmem:[%s239 + $0x138] sm:$0xff] %vm304, %v3723
        %3788 = vst.msk [vmem:[%s239 + $0x140] sm:$0xff] %vm304, %v3724
        %3789 = vst.msk [vmem:[%s239 + $0x148] sm:$0xff] %vm304, %v3725
        %3790 = vst.msk [vmem:[%s239 + $0x150] sm:$0xff] %vm304, %v3726
        %3791 = vst.msk [vmem:[%s239 + $0x158] sm:$0xff] %vm304, %v3727
        %3792 = vst.msk [vmem:[%s239 + $0x160] sm:$0xff] %vm304, %v3728
        %3793 = vst.msk [vmem:[%s239 + $0x168] sm:$0xff] %vm304, %v3729
        %3794 = vst.msk [vmem:[%s239 + $0x170] sm:$0xff] %vm304, %v3730
        %3795 = vst.msk [vmem:[%s239 + $0x178] sm:$0xff] %vm304, %v3731
        %3796 = vst.msk [vmem:[%s239 + $0x180] sm:$0xff] %vm304, %v3732
        %3797 = vst.msk [vmem:[%s239 + $0x188] sm:$0xff] %vm304, %v3733
        %3798 = vst.msk [vmem:[%s239 + $0x190] sm:$0xff] %vm304, %v3734
        %3799 = vst.msk [vmem:[%s239 + $0x198] sm:$0xff] %vm304, %v3735
        %3800 = vst.msk [vmem:[%s239 + $0x1a0] sm:$0xff] %vm304, %v3736
        %3801 = vst.msk [vmem:[%s239 + $0x1a8] sm:$0xff] %vm304, %v3737
        %3802 = vst.msk [vmem:[%s239 + $0x1b0] sm:$0xff] %vm304, %v3738
        %3803 = vst.msk [vmem:[%s239 + $0x1b8] sm:$0xff] %vm304, %v3739
        %3804 = vst.msk [vmem:[%s239 + $0x1c0] sm:$0xff] %vm304, %v3740
        %3805 = vst.msk [vmem:[%s239 + $0x1c8] sm:$0xff] %vm304, %v3741
        %3806 = vst.msk [vmem:[%s239 + $0x1d0] sm:$0xff] %vm304, %v3742
        %3807 = vst.msk [vmem:[%s239 + $0x1d8] sm:$0xff] %vm304, %v3743
        %3808 = vst.msk [vmem:[%s239 + $0x1e0] sm:$0xff] %vm304, %v3744
        %3809 = vst.msk [vmem:[%s239 + $0x1e8] sm:$0xff] %vm304, %v3745
        %3810 = vst.msk [vmem:[%s239 + $0x1f0] sm:$0xff] %vm304, %v3746
        %3811 = vst.msk [vmem:[%s239 + $0x1f8] sm:$0xff] %vm304, %v3747
        %p3812 = scmp.lt.s32.totalorder %s18, 1
        %s3813 = scalar_select %p3812, %s18, 1
        %s3814 = smul.addr %s3813, 64
        %s3815 = smul.addr %s3814, 8
        %s3816 = scalar_lea.vmem %s5, %s3815
        // Predicated region
        $region45: #{cbam_forward.1} parent=39 // pred_check
          %p3817 = pneg %p146
        $region46: #{cbam_forward.1} parent=39 // pred_check_branch
          %3819 = sbr.rel (%p3817) target = $region48
        $region47: #{cbam_forward.1} parent=39 // pred_region
          _
        $region48: #{cbam_forward.1} parent=39 // pred_fallthru
          _
      $region40: #{cbam_forward.1} parent=5 // pred_fallthru
        _
      %p3820 = scmp.le.s32.totalorder 2, %s13
      // Predicated region
      $region49: #{cbam_forward.1} parent=5 // pred_check
        %p3821 = pneg %p3820
      $region50: #{cbam_forward.1} parent=5 // pred_check_branch
        %3823 = sbr.rel (%p3821) target = $region52
      $region51: #{cbam_forward.1} parent=5 // pred_region
        %s3824 = ssub.s32 %s13, 2
        // Predicated region
        $region53: #{cbam_forward.1} parent=51 // pred_check
          %p3825 = pneg %p152
        $region54: #{cbam_forward.1} parent=51 // pred_check_branch
          %3827 = sbr.rel (%p3825) target = $region56
        $region55: #{cbam_forward.1} parent=51 // pred_region
          %p3828 = scmp.lt.s32.totalorder %s19, 1
          %s3829 = scalar_select %p3828, %s19, 1
          %s3830 = smul.addr %s3829, 64
          %s3831 = smul.addr %s3830, 8
          %s3832 = scalar_lea.vmem %s5, %s3831
        $region56: #{cbam_forward.1} parent=51 // pred_fallthru
          _
      $region52: #{cbam_forward.1} parent=5 // pred_fallthru
        _
    $region6: #{cbam_forward.1} parent=1 // loop_footer
      %s17 = sadd.s32 1, %s13
    $region7: #{cbam_forward.1} parent=1 // loop_footer_branch
      %12 = sbr.rel target = $region3
    $region8: #{cbam_forward.1} parent=1 // loop_exit
      _
    %3833 = vsyncpa [#allocation6], 1
    %s3834 = scalar_lea.sflag [#allocation6], 1
    %3835 = vsyncpa %s3834, 1

</llo_original>
